<compile_context>
chip_gen: v7x
topology: tpu7x:2x2x1
jax: 0.10.0
libtpu: 0.0.40
codegen_flags: <defaults>
</compile_context>

<pallas_src>
import functools

import jax
import jax.numpy as jnp
import numpy as np
from jax.experimental import pallas as pl
from jax.experimental.pallas import tpu as pltpu


def _round_up(x, m):
  return (x + m - 1) // m * m


# ----------------------------- Pallas kernel --------------------------------


def sat_step_kernel(
    xt_ref, h0_ref, att_ref, patt_ref,
    wh2att_ref, bh2att_ref, walpha_ref, balpha_ref,
    wg_ref, bg_ref, wlog_ref, blog_ref,
    out_ref,
    h_sc, c_sc,
):
  t = pl.program_id(1)

  # init_h = fc2h(fc_feats); init_c = init_h.clone()  (h0 precomputed outside the kernel)
  @pl.when(t == 0)
  def _init():
    h0 = h0_ref[...]
    h_sc[...] = h0
    c_sc[...] = h0

  h = h_sc[...]                       # (Bt, Hp) f32
  c = c_sc[...]                       # (Bt, Hp) f32
  h_b = h.astype(jnp.bfloat16)
  xt = xt_ref[0]                      # (Bt, Ep) bf16 embedded token for this step
  att = att_ref[...]                  # (Bt, L, Fp) bf16

  # ---------------- soft attention (only h-dependent work in the loop) ----------------
  att_h = jnp.dot(h_b, wh2att_ref[...],
                  preferred_element_type=jnp.float32) + bh2att_ref[...]     # (Bt, Ap)
  d = jnp.tanh(patt_ref[...] + att_h[:, None, :])                           # (Bt, L, Ap) f32
  e = jnp.sum(d * walpha_ref[...], axis=-1) + balpha_ref[...]               # (Bt, L)
  e_max = jnp.max(e, axis=-1, keepdims=True)
  w_exp = jnp.exp(e - e_max)
  alpha = w_exp / jnp.sum(w_exp, axis=-1, keepdims=True)                    # exact softmax
  # attention context on the MXU: never materialize an f32 copy of the att tile.
  att_res = jnp.einsum('bql,blf->bqf',
                       alpha[:, None, :].astype(jnp.bfloat16), att,
                       preferred_element_type=jnp.float32)[:, 0, :]         # (Bt, Fp) f32

  # ---------------- LSTM cell: single fused gate GEMM over [xt ; h ; att_res] ----------
  gate_in = jnp.concatenate(
      [xt, h_b, att_res.astype(jnp.bfloat16)], axis=-1)                     # (Bt, Ep+Hp+Fp)
  gates = jnp.dot(gate_in, wg_ref[...],
                  preferred_element_type=jnp.float32) + bg_ref[...]         # (Bt, 4*Hp)
  Hp = h.shape[-1]
  i_g = jax.nn.sigmoid(gates[:, 0 * Hp:1 * Hp])
  f_g = jax.nn.sigmoid(gates[:, 1 * Hp:2 * Hp])
  o_g = jax.nn.sigmoid(gates[:, 2 * Hp:3 * Hp])
  g_t = jnp.tanh(gates[:, 3 * Hp:4 * Hp])
  c_new = f_g * c + i_g * g_t
  h_new = o_g * jnp.tanh(c_new)
  h_sc[...] = h_new
  c_sc[...] = c_new

  # ---------------- logits + log_softmax (Vp is 128-aligned; pad bias = -1e30) ---------
  logits = jnp.dot(h_new.astype(jnp.bfloat16), wlog_ref[...],
                   preferred_element_type=jnp.float32) + blog_ref[...]      # (Bt, Vp)
  m = jnp.max(logits, axis=-1, keepdims=True)
  lse = jnp.log(jnp.sum(jnp.exp(logits - m), axis=-1, keepdims=True)) + m
  out_ref[0] = logits - lse


# ----------------------------- wrapper ----------------------------------


def _spec(shape, index_map, single_buffer):
  """BlockSpec; request a single pipeline buffer for loop-invariant blocks."""
  if single_buffer:
    return pl.BlockSpec(shape, index_map, pipeline_mode=pl.Buffered(1))
  return pl.BlockSpec(shape, index_map)


@functools.partial(jax.jit, static_argnums=(4,))
def _forward_impl(params, fc_feats, att_feats, seq, single_buffer):
  B, _ = fc_feats.shape
  _, L, F = att_feats.shape
  T = seq.shape[1] - 1
  E = params['embed'].shape[1]
  H = params['w_fc2h'].shape[1]
  A = params['w_h2att'].shape[1]
  V = params['w_logit'].shape[1]

  f32, bf16 = jnp.float32, jnp.bfloat16

  # lane / sublane alignment
  Ep = _round_up(E, 128)
  Hp = _round_up(H, 128)
  Ap = _round_up(A, 128)
  Fp = _round_up(F, 128)
  Vp = _round_up(V, 128)

  # Batch tile: cap at 64 so the "parallel" batch axis has >=2 iterations whenever
  # possible (lets v7x split across its two TensorCores and halves per-TC residency
  # of the att / p_att blocks).
  # TODO(synk): on v6e with B>=256, Bt=256 better fills the 256-wide MXU.
  Bp8 = _round_up(B, 8)
  Bt = min(64, _round_up(Bp8 // 2, 8)) if Bp8 >= 16 else Bp8
  Bp = _round_up(B, Bt)
  n_b = Bp // Bt

  # ---- loop-invariant work hoisted out of the kernel (flat GEMMs in plain JAX) ----
  h0 = fc_feats @ params['w_fc2h'] + params['b_fc2h']                      # (B, H)
  p_att = (att_feats.reshape(B * L, F) @ params['w_ctx2att']
           + params['b_ctx2att']).reshape(B, L, A)                         # (B, L, A)
  xt = params['embed'][seq[:, :T]]                                         # (B, T, E)

  h0p = jnp.pad(h0, ((0, Bp - B), (0, Hp - H))).astype(f32)
  p_attp = jnp.pad(p_att, ((0, Bp - B), (0, 0), (0, Ap - A))).astype(bf16)  # bf16 resident
  xt_all = jnp.transpose(jnp.pad(xt, ((0, Bp - B), (0, 0), (0, Ep - E))),
                         (1, 0, 2)).astype(bf16)                            # (T, Bp, Ep)
  attp = jnp.pad(att_feats, ((0, Bp - B), (0, 0), (0, Fp - F))).astype(bf16)  # (Bp, L, Fp)

  # ---- weights: per-gate zero padding so gate slices stay lane-aligned ----
  def pad_gate_w(w, rows_to):
    din = w.shape[0]
    w4 = w.reshape(din, 4, H)
    w4 = jnp.pad(w4, ((0, rows_to - din), (0, 0), (0, Hp - H)))
    return w4.reshape(rows_to, 4 * Hp)

  def pad_gate_b(b):
    b4 = b.reshape(1, 4, H)
    return jnp.pad(b4, ((0, 0), (0, 0), (0, Hp - H))).reshape(1, 4 * Hp)

  w_h2att = jnp.pad(params['w_h2att'], ((0, Hp - H), (0, Ap - A))).astype(bf16)
  b_h2att = jnp.pad(params['b_h2att'], ((0, 0), (0, Ap - A))).astype(f32)
  w_alpha = jnp.pad(params['w_alpha'], ((0, 0), (0, Ap - A))).astype(f32)
  b_alpha = params['b_alpha'].astype(f32)
  # fused [i2h ; h2h ; a2h] gate weight: one long-K MXU matmul per step
  w_gates = jnp.concatenate([pad_gate_w(params['w_i2h'], Ep),
                             pad_gate_w(params['w_h2h'], Hp),
                             pad_gate_w(params['w_a2h'], Fp)],
                            axis=0).astype(bf16)                            # (Ep+Hp+Fp, 4Hp)
  b_gates = pad_gate_b(params['b_i2h'] + params['b_h2h'] + params['b_a2h']).astype(f32)
  w_logit = jnp.pad(params['w_logit'], ((0, Hp - H), (0, Vp - V))).astype(bf16)
  b_logit = jnp.pad(params['b_logit'], ((0, 0), (0, Vp - V)),
                    constant_values=-1e30).astype(f32)

  weights = (w_h2att, b_h2att, w_alpha, b_alpha, w_gates, b_gates, w_logit, b_logit)

  def weight_spec(arr):
    nd = arr.ndim
    return _spec(arr.shape, lambda b, t, nd=nd: (0,) * nd, single_buffer)

  in_specs = [
      pl.BlockSpec((1, Bt, Ep), lambda b, t: (t, b, 0)),           # xt (per-step, pipelined)
      _spec((Bt, Hp), lambda b, t: (b, 0), single_buffer),         # h0
      _spec((Bt, L, Fp), lambda b, t: (b, 0, 0), single_buffer),   # att_feats
      _spec((Bt, L, Ap), lambda b, t: (b, 0, 0), single_buffer),   # hoisted ctx2att(att)
  ] + [weight_spec(w) for w in weights]

  out_spec = pl.BlockSpec((1, Bt, Vp), lambda b, t: (t, b, 0))

  # ---- exact resident VMEM footprint + headroom, capped by chip capacity ----
  def nbytes(shape, dt):
    return int(np.prod(shape)) * jnp.dtype(dt).itemsize

  nbuf = 1 if single_buffer else 2
  resident = (2 * nbytes((1, Bt, Ep), bf16)            # xt (double-buffered)
              + 2 * nbytes((1, Bt, Vp), f32)           # output block (double-buffered)
              + nbuf * (nbytes((Bt, Hp), f32)          # h0
                        + nbytes((Bt, L, Fp), bf16)    # att
                        + nbytes((Bt, L, Ap), bf16)    # p_att
                        + sum(int(np.prod(w.shape)) * jnp.dtype(w.dtype).itemsize
                              for w in weights))
              + 2 * nbytes((Bt, Hp), f32))             # h/c scratch
  try:
    vmem_cap = int(pltpu.get_tpu_info().vmem_capacity_bytes)
  except Exception:
    vmem_cap = 64 * 2**20   # conservative (v7x) if the query is unavailable
  vmem_limit = int(min(max(resident + 8 * 2**20, 16 * 2**20), (vmem_cap * 7) // 8))

  out = pl.pallas_call(
      sat_step_kernel,
      out_shape=jax.ShapeDtypeStruct((T, Bp, Vp), f32),
      grid_spec=pltpu.PrefetchScalarGridSpec(
          num_scalar_prefetch=0,
          grid=(n_b, T),
          in_specs=in_specs,
          out_specs=out_spec,
          scratch_shapes=[pltpu.VMEM((Bt, Hp), f32),
                          pltpu.VMEM((Bt, Hp), f32)],
      ),
      compiler_params=pltpu.CompilerParams(
          dimension_semantics=("parallel", "arbitrary"),
          vmem_limit_bytes=vmem_limit),
  )(xt_all, h0p, attp, p_attp, *weights)

  # TODO(synk): at production sizes keep (T, B, V) for the downstream loss (or gather the
  # target log-prob in-kernel) instead of materializing this transpose in HBM.
  out = jnp.transpose(out, (1, 0, 2))[:B, :, :V]  # (B, T, V)
  return out


def show_attend_tell_forward(params, fc_feats, att_feats, seq):
  # pipeline_mode=pl.Buffered(1) (single-buffered loop-invariant blocks) is a newer Pallas
  # feature; if this JAX / libtpu combination rejects it, retry with default buffering.
  try:
    return _forward_impl(params, fc_feats, att_feats, seq, True)
  except Exception:
    return _forward_impl(params, fc_feats, att_feats, seq, False)


# ----------------------------- pure-JAX reference ----------------------------


def reference_forward(params, fc_feats, att_feats, seq):
  T = seq.shape[1] - 1
  H = params['w_fc2h'].shape[1]
  h = fc_feats @ params['w_fc2h'] + params['b_fc2h']
  c = h
  outs = []
  for i in range(T):
    xt = params['embed'][seq[:, i]]
    p_att = jnp.einsum('blf,fa->bla', att_feats, params['w_ctx2att']) + params['b_ctx2att']
    att_h = h @ params['w_h2att'] + params['b_h2att']
    dot = jnp.tanh(p_att + att_h[:, None, :])
    e = jnp.sum(dot * params['w_alpha'], axis=-1) + params['b_alpha']
    alpha = jax.nn.softmax(e, axis=-1)
    att_res = jnp.sum(alpha[:, :, None] * att_feats, axis=1)
    gates = (xt @ params['w_i2h'] + params['b_i2h']
             + h @ params['w_h2h'] + params['b_h2h']
             + att_res @ params['w_a2h'] + params['b_a2h'])
    i_g = jax.nn.sigmoid(gates[:, 0 * H:1 * H])
    f_g = jax.nn.sigmoid(gates[:, 1 * H:2 * H])
    o_g = jax.nn.sigmoid(gates[:, 2 * H:3 * H])
    g_t = jnp.tanh(gates[:, 3 * H:4 * H])
    c = f_g * c + i_g * g_t
    h = o_g * jnp.tanh(c)
    logits = h @ params['w_logit'] + params['b_logit']
    outs.append(jax.nn.log_softmax(logits, axis=-1))
  return jnp.stack(outs, axis=1)


# ----------------------------- setup & run ----------------------------------


def make_params(key, vocab_size, E, H, Ffc, F, A, V):
  ks = jax.random.split(key, 20)
  u = lambda k, shape, s=0.1: jax.random.uniform(k, shape, jnp.float32, -s, s)
  return {
      'embed':     u(ks[0], (vocab_size + 1, E)),
      'w_fc2h':    u(ks[1], (Ffc, H)),
      'b_fc2h':    u(ks[2], (1, H)),
      'w_i2h':     u(ks[3], (E, 4 * H)),
      'b_i2h':     u(ks[4], (1, 4 * H)),
      'w_h2h':     u(ks[5], (H, 4 * H)),
      'b_h2h':     u(ks[6], (1, 4 * H)),
      'w_a2h':     u(ks[7], (F, 4 * H)),
      'b_a2h':     u(ks[8], (1, 4 * H)),
      'w_h2att':   u(ks[9], (H, A)),
      'b_h2att':   u(ks[10], (1, A)),
      'w_ctx2att': u(ks[11], (F, A)),
      'b_ctx2att': u(ks[12], (1, A)),
      'w_alpha':   u(ks[13], (1, A)),
      'b_alpha':   u(ks[14], (1, 1)),
      'w_logit':   u(ks[15], (H, V)),
      'b_logit':   jnp.zeros((1, V), jnp.float32),
  }


if __name__ == "__main__":
  # small opt-like config
  vocab_size = 20
  input_encoding_size = 32   # E
  lstm_size = 32             # H
  fc_feat_size = 64
  conv_feat_size = 32        # F
  conv_att_size = 16         # L
  att_hidden_size = 32       # A
  seq_length = 8
  batch = 2

  key = jax.random.PRNGKey(0)
  kp, kfc, katt, kseq = jax.random.split(key, 4)

  params = make_params(kp, vocab_size, input_encoding_size, lstm_size,
                       fc_feat_size, conv_feat_size, att_hidden_size, vocab_size)

  fc_feats = jax.random.normal(kfc, (batch, fc_feat_size), jnp.float32)
  att_feats = jax.random.normal(katt, (batch, conv_att_size, conv_feat_size), jnp.float32)
  # non-zero tokens so the torch early-break never triggers
  seq = jax.random.randint(kseq, (batch, seq_length), 1, vocab_size + 1, jnp.int32)

  out = show_attend_tell_forward(params, fc_feats, att_feats, seq)
  out = jax.block_until_ready(out)

  ref = reference_forward(params, fc_feats, att_feats, seq)
  assert out.shape == (batch, seq_length - 1, vocab_size), out.shape
  # bf16 matmul weights -> looser tolerance vs the f32 reference
  np.testing.assert_allclose(np.asarray(out), np.asarray(ref), rtol=2e-2, atol=2e-2)

  print("KERNEL_OK")
</pallas_src>

<mosaic_0001>
module attributes {stable_mosaic.version = 11 : i64} {
  func.func @sat_step_kernel(%arg0: i32, %arg1: i32, %arg2: memref<1x8x128xbf16, #tpu.memory_space<vmem>>, %arg3: memref<8x128xf32, #tpu.memory_space<vmem>>, %arg4: memref<8x16x128xbf16, #tpu.memory_space<vmem>>, %arg5: memref<8x16x128xbf16, #tpu.memory_space<vmem>>, %arg6: memref<128x128xbf16, #tpu.memory_space<vmem>>, %arg7: memref<1x128xf32, #tpu.memory_space<vmem>>, %arg8: memref<1x128xf32, #tpu.memory_space<vmem>>, %arg9: memref<1x1xf32, #tpu.memory_space<vmem>>, %arg10: memref<384x512xbf16, #tpu.memory_space<vmem>>, %arg11: memref<1x512xf32, #tpu.memory_space<vmem>>, %arg12: memref<128x128xbf16, #tpu.memory_space<vmem>>, %arg13: memref<1x128xf32, #tpu.memory_space<vmem>>, %arg14: memref<1x8x128xf32, #tpu.memory_space<vmem>>, %arg15: memref<8x128xf32, #tpu.memory_space<vmem>>, %arg16: memref<8x128xf32, #tpu.memory_space<vmem>>) attributes {dimension_semantics = [#tpu.dimension_semantics<parallel>, #tpu.dimension_semantics<arbitrary>], iteration_bounds = array<i64: 1, 7>, scalar_prefetch = 0 : i64, scratch_operands = 2 : i64, tpu.core_type = #tpu.core_type<tc>, window_params = [{transform_indices = @transform_0, window_bounds = array<i64: 1, 8, 128>}, {pipeline_mode = #tpu.pipeline_mode<synchronous>, transform_indices = @transform_1, window_bounds = array<i64: 8, 128>}, {pipeline_mode = #tpu.pipeline_mode<synchronous>, transform_indices = @transform_2, window_bounds = array<i64: 8, 16, 128>}, {pipeline_mode = #tpu.pipeline_mode<synchronous>, transform_indices = @transform_3, window_bounds = array<i64: 8, 16, 128>}, {pipeline_mode = #tpu.pipeline_mode<synchronous>, transform_indices = @transform_4, window_bounds = array<i64: 128, 128>}, {pipeline_mode = #tpu.pipeline_mode<synchronous>, transform_indices = @transform_5, window_bounds = array<i64: 1, 128>}, {pipeline_mode = #tpu.pipeline_mode<synchronous>, transform_indices = @transform_6, window_bounds = array<i64: 1, 128>}, {pipeline_mode = #tpu.pipeline_mode<synchronous>, transform_indices = @transform_7, window_bounds = array<i64: 1, 1>}, {pipeline_mode = #tpu.pipeline_mode<synchronous>, transform_indices = @transform_8, window_bounds = array<i64: 384, 512>}, {pipeline_mode = #tpu.pipeline_mode<synchronous>, transform_indices = @transform_9, window_bounds = array<i64: 1, 512>}, {pipeline_mode = #tpu.pipeline_mode<synchronous>, transform_indices = @transform_10, window_bounds = array<i64: 128, 128>}, {pipeline_mode = #tpu.pipeline_mode<synchronous>, transform_indices = @transform_11, window_bounds = array<i64: 1, 128>}, {transform_indices = @transform_12, window_bounds = array<i64: 1, 8, 128>}]} {
    %c0_i32 = arith.constant 0 : i32
    %0 = arith.cmpi eq, %arg1, %c0_i32 : i32
    %1 = arith.extui %0 : i1 to i32
    %c0_i32_0 = arith.constant 0 : i32
    %2 = arith.cmpi ne, %1, %c0_i32_0 : i32
    scf.if %2 {
      %c0_47 = arith.constant 0 : index
      %c0_48 = arith.constant 0 : index
      %95 = vector.load %arg3[%c0_47, %c0_48] : memref<8x128xf32, #tpu.memory_space<vmem>>, vector<8x128xf32>
      %c0_49 = arith.constant 0 : index
      %c0_50 = arith.constant 0 : index
      %96 = vector.load %arg15[%c0_49, %c0_50] : memref<8x128xf32, #tpu.memory_space<vmem>>, vector<8x128xf32>
      tpu.vector_store %arg15[%c0_49, %c0_50], %95 {strides = array<i32>} : memref<8x128xf32, #tpu.memory_space<vmem>>, vector<8x128xf32>,
      %c0_51 = arith.constant 0 : index
      %c0_52 = arith.constant 0 : index
      %97 = vector.load %arg16[%c0_51, %c0_52] : memref<8x128xf32, #tpu.memory_space<vmem>>, vector<8x128xf32>
      tpu.vector_store %arg16[%c0_51, %c0_52], %95 {strides = array<i32>} : memref<8x128xf32, #tpu.memory_space<vmem>>, vector<8x128xf32>,
    } else {
    }
    %c0 = arith.constant 0 : index
    %c0_1 = arith.constant 0 : index
    %3 = vector.load %arg15[%c0, %c0_1] : memref<8x128xf32, #tpu.memory_space<vmem>>, vector<8x128xf32>
    %c0_2 = arith.constant 0 : index
    %c0_3 = arith.constant 0 : index
    %4 = vector.load %arg16[%c0_2, %c0_3] : memref<8x128xf32, #tpu.memory_space<vmem>>, vector<8x128xf32>
    %5 = arith.truncf %3 : vector<8x128xf32> to vector<8x128xbf16>
    %c0_4 = arith.constant 0 : index
    %c0_5 = arith.constant 0 : index
    %c0_6 = arith.constant 0 : index
    %6 = vector.load %arg2[%c0_4, %c0_5, %c0_6] : memref<1x8x128xbf16, #tpu.memory_space<vmem>>, vector<1x8x128xbf16>
    %7 = vector.shape_cast %6 : vector<1x8x128xbf16> to vector<8x128xbf16>
    %c0_7 = arith.constant 0 : index
    %c0_8 = arith.constant 0 : index
    %c0_9 = arith.constant 0 : index
    %8 = vector.load %arg4[%c0_7, %c0_8, %c0_9] : memref<8x16x128xbf16, #tpu.memory_space<vmem>>, vector<8x16x128xbf16>
    %c0_10 = arith.constant 0 : index
    %c0_11 = arith.constant 0 : index
    %9 = vector.load %arg6[%c0_10, %c0_11] : memref<128x128xbf16, #tpu.memory_space<vmem>>, vector<128x128xbf16>
    %cst = arith.constant dense<0.000000e+00> : vector<8x128xf32>
    %10 = tpu.matmul %5, %9, %cst {dimension_numbers = #tpu.dot_dimension_numbers<[1], [0], [0], [1], [0, 0, 1, 1], [], []>} : vector<8x128xbf16>, vector<128x128xbf16>, vector<8x128xf32> -> vector<8x128xf32>
    %c0_12 = arith.constant 0 : index
    %c0_13 = arith.constant 0 : index
    %11 = vector.load %arg7[%c0_12, %c0_13] : memref<1x128xf32, #tpu.memory_space<vmem>>, vector<1x128xf32>
    %12 = vector.broadcast %11 : vector<1x128xf32> to vector<8x128xf32>
    %13 = arith.addf %10, %12 : vector<8x128xf32>
    %c0_14 = arith.constant 0 : index
    %c0_15 = arith.constant 0 : index
    %c0_16 = arith.constant 0 : index
    %14 = vector.load %arg5[%c0_14, %c0_15, %c0_16] : memref<8x16x128xbf16, #tpu.memory_space<vmem>>, vector<8x16x128xbf16>
    %15 = vector.shape_cast %13 : vector<8x128xf32> to vector<8x1x128xf32>
    %16 = arith.extf %14 : vector<8x16x128xbf16> to vector<8x16x128xf32>
    %17 = vector.broadcast %15 : vector<8x1x128xf32> to vector<8x16x128xf32>
    %18 = arith.addf %16, %17 : vector<8x16x128xf32>
    %19 = math.tanh %18 : vector<8x16x128xf32>
    %c0_17 = arith.constant 0 : index
    %c0_18 = arith.constant 0 : index
    %20 = vector.load %arg8[%c0_17, %c0_18] : memref<1x128xf32, #tpu.memory_space<vmem>>, vector<1x128xf32>
    %21 = vector.shape_cast %20 : vector<1x128xf32> to vector<1x1x128xf32>
    %22 = vector.broadcast %21 : vector<1x1x128xf32> to vector<8x16x128xf32>
    %23 = arith.mulf %19, %22 : vector<8x16x128xf32>
    %cst_19 = arith.constant dense<0.000000e+00> : vector<8x16xf32>
    %24 = vector.multi_reduction <add>, %23, %cst_19 [2] : vector<8x16x128xf32> to vector<8x16xf32>
    %c0_20 = arith.constant 0 : index
    %c0_21 = arith.constant 0 : index
    %25 = vector.load %arg9[%c0_20, %c0_21] : memref<1x1xf32, #tpu.memory_space<vmem>>, vector<1x1xf32>
    %26 = vector.broadcast %25 : vector<1x1xf32> to vector<8x16xf32>
    %27 = arith.addf %24, %26 : vector<8x16xf32>
    %cst_22 = arith.constant dense<0xFF800000> : vector<8xf32>
    %28 = vector.multi_reduction <maximumf>, %27, %cst_22 [1] : vector<8x16xf32> to vector<8xf32>
    %29 = vector.shape_cast %28 : vector<8xf32> to vector<8x1xf32>
    %30 = vector.broadcast %29 : vector<8x1xf32> to vector<8x16xf32>
    %31 = arith.subf %27, %30 : vector<8x16xf32>
    %32 = math.exp %31 : vector<8x16xf32>
    %cst_23 = arith.constant dense<0.000000e+00> : vector<8xf32>
    %33 = vector.multi_reduction <add>, %32, %cst_23 [1] : vector<8x16xf32> to vector<8xf32>
    %34 = vector.shape_cast %33 : vector<8xf32> to vector<8x1xf32>
    %35 = vector.broadcast %34 : vector<8x1xf32> to vector<8x16xf32>
    %36 = arith.divf %32, %35 : vector<8x16xf32>
    %37 = vector.shape_cast %36 : vector<8x16xf32> to vector<8x1x16xf32>
    %38 = arith.truncf %37 : vector<8x1x16xf32> to vector<8x1x16xbf16>
    "tpu.trace_start"() <{level = 10 : i32, message = "bql,blf->bqf"}> : () -> ()
    %cst_24 = arith.constant dense<0.000000e+00> : vector<8x1x128xf32>
    %39 = tpu.matmul %38, %8, %cst_24 {dimension_numbers = #tpu.dot_dimension_numbers<[2], [1], [1], [2], [0, 0, 0, 1, 1, 2], [0], [0]>} : vector<8x1x16xbf16>, vector<8x16x128xbf16>, vector<8x1x128xf32> -> vector<8x1x128xf32>
    "tpu.trace_stop"() : () -> ()
    %40 = vector.shape_cast %39 : vector<8x1x128xf32> to vector<8x128xf32>
    %41 = arith.truncf %40 : vector<8x128xf32> to vector<8x128xbf16>
    %42 = tpu.concatenate %7, %5, %41 in 1 : vector<8x128xbf16>, vector<8x128xbf16>, vector<8x128xbf16> -> vector<8x384xbf16>
    %c0_25 = arith.constant 0 : index
    %c0_26 = arith.constant 0 : index
    %43 = vector.load %arg10[%c0_25, %c0_26] : memref<384x512xbf16, #tpu.memory_space<vmem>>, vector<384x512xbf16>
    %cst_27 = arith.constant dense<0.000000e+00> : vector<8x512xf32>
    %44 = tpu.matmul %42, %43, %cst_27 {dimension_numbers = #tpu.dot_dimension_numbers<[1], [0], [0], [1], [0, 0, 1, 1], [], []>} : vector<8x384xbf16>, vector<384x512xbf16>, vector<8x512xf32> -> vector<8x512xf32>
    %c0_28 = arith.constant 0 : index
    %c0_29 = arith.constant 0 : index
    %45 = vector.load %arg11[%c0_28, %c0_29] : memref<1x512xf32, #tpu.memory_space<vmem>>, vector<1x512xf32>
    %46 = vector.broadcast %45 : vector<1x512xf32> to vector<8x512xf32>
    %47 = arith.addf %44, %46 : vector<8x512xf32>
    %48 = vector.extract_strided_slice %47 {offsets = [0, 0], sizes = [8, 128], strides = [1, 1]} : vector<8x512xf32> to vector<8x128xf32>
    %49 = arith.negf %48 : vector<8x128xf32>
    %50 = math.exp %49 : vector<8x128xf32>
    %cst_30 = arith.constant 1.000000e+00 : f32
    %51 = vector.broadcast %cst_30 : f32 to vector<8x128xf32>
    %52 = arith.addf %51, %50 : vector<8x128xf32>
    %53 = arith.divf %51, %52 : vector<8x128xf32>
    %54 = vector.extract_strided_slice %47 {offsets = [0, 128], sizes = [8, 128], strides = [1, 1]} : vector<8x512xf32> to vector<8x128xf32>
    %55 = arith.negf %54 : vector<8x128xf32>
    %56 = math.exp %55 : vector<8x128xf32>
    %cst_31 = arith.constant 1.000000e+00 : f32
    %57 = vector.broadcast %cst_31 : f32 to vector<8x128xf32>
    %58 = arith.addf %57, %56 : vector<8x128xf32>
    %59 = arith.divf %57, %58 : vector<8x128xf32>
    %60 = vector.extract_strided_slice %47 {offsets = [0, 256], sizes = [8, 128], strides = [1, 1]} : vector<8x512xf32> to vector<8x128xf32>
    %61 = arith.negf %60 : vector<8x128xf32>
    %62 = math.exp %61 : vector<8x128xf32>
    %cst_32 = arith.constant 1.000000e+00 : f32
    %63 = vector.broadcast %cst_32 : f32 to vector<8x128xf32>
    %64 = arith.addf %63, %62 : vector<8x128xf32>
    %65 = arith.divf %63, %64 : vector<8x128xf32>
    %66 = vector.extract_strided_slice %47 {offsets = [0, 384], sizes = [8, 128], strides = [1, 1]} : vector<8x512xf32> to vector<8x128xf32>
    %67 = math.tanh %66 : vector<8x128xf32>
    %68 = arith.mulf %59, %4 : vector<8x128xf32>
    %69 = arith.mulf %53, %67 : vector<8x128xf32>
    %70 = arith.addf %68, %69 : vector<8x128xf32>
    %71 = math.tanh %70 : vector<8x128xf32>
    %72 = arith.mulf %65, %71 : vector<8x128xf32>
    %c0_33 = arith.constant 0 : index
    %c0_34 = arith.constant 0 : index
    %73 = vector.load %arg15[%c0_33, %c0_34] : memref<8x128xf32, #tpu.memory_space<vmem>>, vector<8x128xf32>
    tpu.vector_store %arg15[%c0_33, %c0_34], %72 {strides = array<i32>} : memref<8x128xf32, #tpu.memory_space<vmem>>, vector<8x128xf32>,
    %c0_35 = arith.constant 0 : index
    %c0_36 = arith.constant 0 : index
    %74 = vector.load %arg16[%c0_35, %c0_36] : memref<8x128xf32, #tpu.memory_space<vmem>>, vector<8x128xf32>
    tpu.vector_store %arg16[%c0_35, %c0_36], %70 {strides = array<i32>} : memref<8x128xf32, #tpu.memory_space<vmem>>, vector<8x128xf32>,
    %75 = arith.truncf %72 : vector<8x128xf32> to vector<8x128xbf16>
    %c0_37 = arith.constant 0 : index
    %c0_38 = arith.constant 0 : index
    %76 = vector.load %arg12[%c0_37, %c0_38] : memref<128x128xbf16, #tpu.memory_space<vmem>>, vector<128x128xbf16>
    %cst_39 = arith.constant dense<0.000000e+00> : vector<8x128xf32>
    %77 = tpu.matmul %75, %76, %cst_39 {dimension_numbers = #tpu.dot_dimension_numbers<[1], [0], [0], [1], [0, 0, 1, 1], [], []>} : vector<8x128xbf16>, vector<128x128xbf16>, vector<8x128xf32> -> vector<8x128xf32>
    %c0_40 = arith.constant 0 : index
    %c0_41 = arith.constant 0 : index
    %78 = vector.load %arg13[%c0_40, %c0_41] : memref<1x128xf32, #tpu.memory_space<vmem>>, vector<1x128xf32>
    %79 = vector.broadcast %78 : vector<1x128xf32> to vector<8x128xf32>
    %80 = arith.addf %77, %79 : vector<8x128xf32>
    %cst_42 = arith.constant dense<0xFF800000> : vector<8xf32>
    %81 = vector.multi_reduction <maximumf>, %80, %cst_42 [1] : vector<8x128xf32> to vector<8xf32>
    %82 = vector.shape_cast %81 : vector<8xf32> to vector<8x1xf32>
    %83 = vector.broadcast %82 : vector<8x1xf32> to vector<8x128xf32>
    %84 = arith.subf %80, %83 : vector<8x128xf32>
    %85 = math.exp %84 : vector<8x128xf32>
    %cst_43 = arith.constant dense<0.000000e+00> : vector<8xf32>
    %86 = vector.multi_reduction <add>, %85, %cst_43 [1] : vector<8x128xf32> to vector<8xf32>
    %87 = vector.shape_cast %86 : vector<8xf32> to vector<8x1xf32>
    %88 = math.log %87 : vector<8x1xf32>
    %89 = arith.addf %88, %82 : vector<8x1xf32>
    %90 = vector.broadcast %89 : vector<8x1xf32> to vector<8x128xf32>
    %91 = arith.subf %80, %90 : vector<8x128xf32>
    %c0_44 = arith.constant 0 : index
    %c0_45 = arith.constant 0 : index
    %c0_46 = arith.constant 0 : index
    %92 = vector.load %arg14[%c0_44, %c0_45, %c0_46] : memref<1x8x128xf32, #tpu.memory_space<vmem>>, vector<1x8x128xf32>
    %93 = vector.shape_cast %92 : vector<1x8x128xf32> to vector<8x128xf32>
    %94 = vector.shape_cast %91 : vector<8x128xf32> to vector<1x8x128xf32>
    tpu.vector_store %arg14[%c0_44, %c0_45, %c0_46], %94 {strides = array<i32>} : memref<1x8x128xf32, #tpu.memory_space<vmem>>, vector<1x8x128xf32>,
    return
  }
  func.func @transform_0(%arg0: i32, %arg1: i32) -> (i32, i32, i32) {
    %c0_i32 = arith.constant 0 : i32
    %c0_i32_0 = arith.constant 0 : i32
    return %arg1, %arg0, %c0_i32 : i32, i32, i32
  }
  func.func @transform_1(%arg0: i32, %arg1: i32) -> (i32, i32) {
    %c0_i32 = arith.constant 0 : i32
    %c0_i32_0 = arith.constant 0 : i32
    return %arg0, %c0_i32 : i32, i32
  }
  func.func @transform_2(%arg0: i32, %arg1: i32) -> (i32, i32, i32) {
    %c0_i32 = arith.constant 0 : i32
    %c0_i32_0 = arith.constant 0 : i32
    %c0_i32_1 = arith.constant 0 : i32
    return %arg0, %c0_i32, %c0_i32_0 : i32, i32, i32
  }
  func.func @transform_3(%arg0: i32, %arg1: i32) -> (i32, i32, i32) {
    %c0_i32 = arith.constant 0 : i32
    %c0_i32_0 = arith.constant 0 : i32
    %c0_i32_1 = arith.constant 0 : i32
    return %arg0, %c0_i32, %c0_i32_0 : i32, i32, i32
  }
  func.func @transform_4(%arg0: i32, %arg1: i32) -> (i32, i32) {
    %c0_i32 = arith.constant 0 : i32
    %c0_i32_0 = arith.constant 0 : i32
    %c0_i32_1 = arith.constant 0 : i32
    return %c0_i32, %c0_i32_0 : i32, i32
  }
  func.func @transform_5(%arg0: i32, %arg1: i32) -> (i32, i32) {
    %c0_i32 = arith.constant 0 : i32
    %c0_i32_0 = arith.constant 0 : i32
    %c0_i32_1 = arith.constant 0 : i32
    return %c0_i32, %c0_i32_0 : i32, i32
  }
  func.func @transform_6(%arg0: i32, %arg1: i32) -> (i32, i32) {
    %c0_i32 = arith.constant 0 : i32
    %c0_i32_0 = arith.constant 0 : i32
    %c0_i32_1 = arith.constant 0 : i32
    return %c0_i32, %c0_i32_0 : i32, i32
  }
  func.func @transform_7(%arg0: i32, %arg1: i32) -> (i32, i32) {
    %c0_i32 = arith.constant 0 : i32
    %c0_i32_0 = arith.constant 0 : i32
    %c0_i32_1 = arith.constant 0 : i32
    return %c0_i32, %c0_i32_0 : i32, i32
  }
  func.func @transform_8(%arg0: i32, %arg1: i32) -> (i32, i32) {
    %c0_i32 = arith.constant 0 : i32
    %c0_i32_0 = arith.constant 0 : i32
    %c0_i32_1 = arith.constant 0 : i32
    return %c0_i32, %c0_i32_0 : i32, i32
  }
  func.func @transform_9(%arg0: i32, %arg1: i32) -> (i32, i32) {
    %c0_i32 = arith.constant 0 : i32
    %c0_i32_0 = arith.constant 0 : i32
    %c0_i32_1 = arith.constant 0 : i32
    return %c0_i32, %c0_i32_0 : i32, i32
  }
  func.func @transform_10(%arg0: i32, %arg1: i32) -> (i32, i32) {
    %c0_i32 = arith.constant 0 : i32
    %c0_i32_0 = arith.constant 0 : i32
    %c0_i32_1 = arith.constant 0 : i32
    return %c0_i32, %c0_i32_0 : i32, i32
  }
  func.func @transform_11(%arg0: i32, %arg1: i32) -> (i32, i32) {
    %c0_i32 = arith.constant 0 : i32
    %c0_i32_0 = arith.constant 0 : i32
    %c0_i32_1 = arith.constant 0 : i32
    return %c0_i32, %c0_i32_0 : i32, i32
  }
  func.func @transform_12(%arg0: i32, %arg1: i32) -> (i32, i32, i32) {
    %c0_i32 = arith.constant 0 : i32
    %c0_i32_0 = arith.constant 0 : i32
    return %arg1, %arg0, %c0_i32 : i32, i32, i32
  }
}

module attributes {stable_mosaic.version = 11 : i64} {
  func.func @sat_step_kernel(%arg0: i32, %arg1: i32, %arg2: memref<1x8x128xbf16, #tpu.memory_space<vmem>>, %arg3: memref<8x128xf32, #tpu.memory_space<vmem>>, %arg4: memref<8x16x128xbf16, #tpu.memory_space<vmem>>, %arg5: memref<8x16x128xbf16, #tpu.memory_space<vmem>>, %arg6: memref<128x128xbf16, #tpu.memory_space<vmem>>, %arg7: memref<1x128xf32, #tpu.memory_space<vmem>>, %arg8: memref<1x128xf32, #tpu.memory_space<vmem>>, %arg9: memref<1x1xf32, #tpu.memory_space<vmem>>, %arg10: memref<384x512xbf16, #tpu.memory_space<vmem>>, %arg11: memref<1x512xf32, #tpu.memory_space<vmem>>, %arg12: memref<128x128xbf16, #tpu.memory_space<vmem>>, %arg13: memref<1x128xf32, #tpu.memory_space<vmem>>, %arg14: memref<1x8x128xf32, #tpu.memory_space<vmem>>, %arg15: memref<8x128xf32, #tpu.memory_space<vmem>>, %arg16: memref<8x128xf32, #tpu.memory_space<vmem>>) attributes {dimension_semantics = [#tpu.dimension_semantics<parallel>, #tpu.dimension_semantics<arbitrary>], iteration_bounds = array<i64: 1, 7>, scalar_prefetch = 0 : i64, scratch_operands = 2 : i64, tpu.core_type = #tpu.core_type<tc>, window_params = [{transform_indices = @transform_0, window_bounds = array<i64: 1, 8, 128>}, {transform_indices = @transform_1, window_bounds = array<i64: 8, 128>}, {transform_indices = @transform_2, window_bounds = array<i64: 8, 16, 128>}, {transform_indices = @transform_3, window_bounds = array<i64: 8, 16, 128>}, {pipeline_mode = #tpu.pipeline_mode<synchronous>, transform_indices = @transform_4, window_bounds = array<i64: 128, 128>}, {pipeline_mode = #tpu.pipeline_mode<synchronous>, transform_indices = @transform_5, window_bounds = array<i64: 1, 128>}, {pipeline_mode = #tpu.pipeline_mode<synchronous>, transform_indices = @transform_6, window_bounds = array<i64: 1, 128>}, {pipeline_mode = #tpu.pipeline_mode<synchronous>, transform_indices = @transform_7, window_bounds = array<i64: 1, 1>}, {pipeline_mode = #tpu.pipeline_mode<synchronous>, transform_indices = @transform_8, window_bounds = array<i64: 384, 512>}, {pipeline_mode = #tpu.pipeline_mode<synchronous>, transform_indices = @transform_9, window_bounds = array<i64: 1, 512>}, {pipeline_mode = #tpu.pipeline_mode<synchronous>, transform_indices = @transform_10, window_bounds = array<i64: 128, 128>}, {pipeline_mode = #tpu.pipeline_mode<synchronous>, transform_indices = @transform_11, window_bounds = array<i64: 1, 128>}, {transform_indices = @transform_12, window_bounds = array<i64: 1, 8, 128>}]} {
    %c0_i32 = arith.constant 0 : i32
    %0 = arith.cmpi eq, %arg1, %c0_i32 : i32
    %1 = arith.extui %0 : i1 to i32
    %c0_i32_0 = arith.constant 0 : i32
    %2 = arith.cmpi ne, %1, %c0_i32_0 : i32
    scf.if %2 {
      %c0_47 = arith.constant 0 : index
      %c0_48 = arith.constant 0 : index
      %95 = vector.load %arg3[%c0_47, %c0_48] : memref<8x128xf32, #tpu.memory_space<vmem>>, vector<8x128xf32>
      %c0_49 = arith.constant 0 : index
      %c0_50 = arith.constant 0 : index
      %96 = vector.load %arg15[%c0_49, %c0_50] : memref<8x128xf32, #tpu.memory_space<vmem>>, vector<8x128xf32>
      tpu.vector_store %arg15[%c0_49, %c0_50], %95 {strides = array<i32>} : memref<8x128xf32, #tpu.memory_space<vmem>>, vector<8x128xf32>,
      %c0_51 = arith.constant 0 : index
      %c0_52 = arith.constant 0 : index
      %97 = vector.load %arg16[%c0_51, %c0_52] : memref<8x128xf32, #tpu.memory_space<vmem>>, vector<8x128xf32>
      tpu.vector_store %arg16[%c0_51, %c0_52], %95 {strides = array<i32>} : memref<8x128xf32, #tpu.memory_space<vmem>>, vector<8x128xf32>,
    } else {
    }
    %c0 = arith.constant 0 : index
    %c0_1 = arith.constant 0 : index
    %3 = vector.load %arg15[%c0, %c0_1] : memref<8x128xf32, #tpu.memory_space<vmem>>, vector<8x128xf32>
    %c0_2 = arith.constant 0 : index
    %c0_3 = arith.constant 0 : index
    %4 = vector.load %arg16[%c0_2, %c0_3] : memref<8x128xf32, #tpu.memory_space<vmem>>, vector<8x128xf32>
    %5 = arith.truncf %3 : vector<8x128xf32> to vector<8x128xbf16>
    %c0_4 = arith.constant 0 : index
    %c0_5 = arith.constant 0 : index
    %c0_6 = arith.constant 0 : index
    %6 = vector.load %arg2[%c0_4, %c0_5, %c0_6] : memref<1x8x128xbf16, #tpu.memory_space<vmem>>, vector<1x8x128xbf16>
    %7 = vector.shape_cast %6 : vector<1x8x128xbf16> to vector<8x128xbf16>
    %c0_7 = arith.constant 0 : index
    %c0_8 = arith.constant 0 : index
    %c0_9 = arith.constant 0 : index
    %8 = vector.load %arg4[%c0_7, %c0_8, %c0_9] : memref<8x16x128xbf16, #tpu.memory_space<vmem>>, vector<8x16x128xbf16>
    %c0_10 = arith.constant 0 : index
    %c0_11 = arith.constant 0 : index
    %9 = vector.load %arg6[%c0_10, %c0_11] : memref<128x128xbf16, #tpu.memory_space<vmem>>, vector<128x128xbf16>
    %cst = arith.constant dense<0.000000e+00> : vector<8x128xf32>
    %10 = tpu.matmul %5, %9, %cst {dimension_numbers = #tpu.dot_dimension_numbers<[1], [0], [0], [1], [0, 0, 1, 1], [], []>} : vector<8x128xbf16>, vector<128x128xbf16>, vector<8x128xf32> -> vector<8x128xf32>
    %c0_12 = arith.constant 0 : index
    %c0_13 = arith.constant 0 : index
    %11 = vector.load %arg7[%c0_12, %c0_13] : memref<1x128xf32, #tpu.memory_space<vmem>>, vector<1x128xf32>
    %12 = vector.broadcast %11 : vector<1x128xf32> to vector<8x128xf32>
    %13 = arith.addf %10, %12 : vector<8x128xf32>
    %c0_14 = arith.constant 0 : index
    %c0_15 = arith.constant 0 : index
    %c0_16 = arith.constant 0 : index
    %14 = vector.load %arg5[%c0_14, %c0_15, %c0_16] : memref<8x16x128xbf16, #tpu.memory_space<vmem>>, vector<8x16x128xbf16>
    %15 = vector.shape_cast %13 : vector<8x128xf32> to vector<8x1x128xf32>
    %16 = arith.extf %14 : vector<8x16x128xbf16> to vector<8x16x128xf32>
    %17 = vector.broadcast %15 : vector<8x1x128xf32> to vector<8x16x128xf32>
    %18 = arith.addf %16, %17 : vector<8x16x128xf32>
    %19 = math.tanh %18 : vector<8x16x128xf32>
    %c0_17 = arith.constant 0 : index
    %c0_18 = arith.constant 0 : index
    %20 = vector.load %arg8[%c0_17, %c0_18] : memref<1x128xf32, #tpu.memory_space<vmem>>, vector<1x128xf32>
    %21 = vector.shape_cast %20 : vector<1x128xf32> to vector<1x1x128xf32>
    %22 = vector.broadcast %21 : vector<1x1x128xf32> to vector<8x16x128xf32>
    %23 = arith.mulf %19, %22 : vector<8x16x128xf32>
    %cst_19 = arith.constant dense<0.000000e+00> : vector<8x16xf32>
    %24 = vector.multi_reduction <add>, %23, %cst_19 [2] : vector<8x16x128xf32> to vector<8x16xf32>
    %c0_20 = arith.constant 0 : index
    %c0_21 = arith.constant 0 : index
    %25 = vector.load %arg9[%c0_20, %c0_21] : memref<1x1xf32, #tpu.memory_space<vmem>>, vector<1x1xf32>
    %26 = vector.broadcast %25 : vector<1x1xf32> to vector<8x16xf32>
    %27 = arith.addf %24, %26 : vector<8x16xf32>
    %cst_22 = arith.constant dense<0xFF800000> : vector<8xf32>
    %28 = vector.multi_reduction <maximumf>, %27, %cst_22 [1] : vector<8x16xf32> to vector<8xf32>
    %29 = vector.shape_cast %28 : vector<8xf32> to vector<8x1xf32>
    %30 = vector.broadcast %29 : vector<8x1xf32> to vector<8x16xf32>
    %31 = arith.subf %27, %30 : vector<8x16xf32>
    %32 = math.exp %31 : vector<8x16xf32>
    %cst_23 = arith.constant dense<0.000000e+00> : vector<8xf32>
    %33 = vector.multi_reduction <add>, %32, %cst_23 [1] : vector<8x16xf32> to vector<8xf32>
    %34 = vector.shape_cast %33 : vector<8xf32> to vector<8x1xf32>
    %35 = vector.broadcast %34 : vector<8x1xf32> to vector<8x16xf32>
    %36 = arith.divf %32, %35 : vector<8x16xf32>
    %37 = vector.shape_cast %36 : vector<8x16xf32> to vector<8x1x16xf32>
    %38 = arith.truncf %37 : vector<8x1x16xf32> to vector<8x1x16xbf16>
    "tpu.trace_start"() <{level = 10 : i32, message = "bql,blf->bqf"}> : () -> ()
    %cst_24 = arith.constant dense<0.000000e+00> : vector<8x1x128xf32>
    %39 = tpu.matmul %38, %8, %cst_24 {dimension_numbers = #tpu.dot_dimension_numbers<[2], [1], [1], [2], [0, 0, 0, 1, 1, 2], [0], [0]>} : vector<8x1x16xbf16>, vector<8x16x128xbf16>, vector<8x1x128xf32> -> vector<8x1x128xf32>
    "tpu.trace_stop"() : () -> ()
    %40 = vector.shape_cast %39 : vector<8x1x128xf32> to vector<8x128xf32>
    %41 = arith.truncf %40 : vector<8x128xf32> to vector<8x128xbf16>
    %42 = tpu.concatenate %7, %5, %41 in 1 : vector<8x128xbf16>, vector<8x128xbf16>, vector<8x128xbf16> -> vector<8x384xbf16>
    %c0_25 = arith.constant 0 : index
    %c0_26 = arith.constant 0 : index
    %43 = vector.load %arg10[%c0_25, %c0_26] : memref<384x512xbf16, #tpu.memory_space<vmem>>, vector<384x512xbf16>
    %cst_27 = arith.constant dense<0.000000e+00> : vector<8x512xf32>
    %44 = tpu.matmul %42, %43, %cst_27 {dimension_numbers = #tpu.dot_dimension_numbers<[1], [0], [0], [1], [0, 0, 1, 1], [], []>} : vector<8x384xbf16>, vector<384x512xbf16>, vector<8x512xf32> -> vector<8x512xf32>
    %c0_28 = arith.constant 0 : index
    %c0_29 = arith.constant 0 : index
    %45 = vector.load %arg11[%c0_28, %c0_29] : memref<1x512xf32, #tpu.memory_space<vmem>>, vector<1x512xf32>
    %46 = vector.broadcast %45 : vector<1x512xf32> to vector<8x512xf32>
    %47 = arith.addf %44, %46 : vector<8x512xf32>
    %48 = vector.extract_strided_slice %47 {offsets = [0, 0], sizes = [8, 128], strides = [1, 1]} : vector<8x512xf32> to vector<8x128xf32>
    %49 = arith.negf %48 : vector<8x128xf32>
    %50 = math.exp %49 : vector<8x128xf32>
    %cst_30 = arith.constant 1.000000e+00 : f32
    %51 = vector.broadcast %cst_30 : f32 to vector<8x128xf32>
    %52 = arith.addf %51, %50 : vector<8x128xf32>
    %53 = arith.divf %51, %52 : vector<8x128xf32>
    %54 = vector.extract_strided_slice %47 {offsets = [0, 128], sizes = [8, 128], strides = [1, 1]} : vector<8x512xf32> to vector<8x128xf32>
    %55 = arith.negf %54 : vector<8x128xf32>
    %56 = math.exp %55 : vector<8x128xf32>
    %cst_31 = arith.constant 1.000000e+00 : f32
    %57 = vector.broadcast %cst_31 : f32 to vector<8x128xf32>
    %58 = arith.addf %57, %56 : vector<8x128xf32>
    %59 = arith.divf %57, %58 : vector<8x128xf32>
    %60 = vector.extract_strided_slice %47 {offsets = [0, 256], sizes = [8, 128], strides = [1, 1]} : vector<8x512xf32> to vector<8x128xf32>
    %61 = arith.negf %60 : vector<8x128xf32>
    %62 = math.exp %61 : vector<8x128xf32>
    %cst_32 = arith.constant 1.000000e+00 : f32
    %63 = vector.broadcast %cst_32 : f32 to vector<8x128xf32>
    %64 = arith.addf %63, %62 : vector<8x128xf32>
    %65 = arith.divf %63, %64 : vector<8x128xf32>
    %66 = vector.extract_strided_slice %47 {offsets = [0, 384], sizes = [8, 128], strides = [1, 1]} : vector<8x512xf32> to vector<8x128xf32>
    %67 = math.tanh %66 : vector<8x128xf32>
    %68 = arith.mulf %59, %4 : vector<8x128xf32>
    %69 = arith.mulf %53, %67 : vector<8x128xf32>
    %70 = arith.addf %68, %69 : vector<8x128xf32>
    %71 = math.tanh %70 : vector<8x128xf32>
    %72 = arith.mulf %65, %71 : vector<8x128xf32>
    %c0_33 = arith.constant 0 : index
    %c0_34 = arith.constant 0 : index
    %73 = vector.load %arg15[%c0_33, %c0_34] : memref<8x128xf32, #tpu.memory_space<vmem>>, vector<8x128xf32>
    tpu.vector_store %arg15[%c0_33, %c0_34], %72 {strides = array<i32>} : memref<8x128xf32, #tpu.memory_space<vmem>>, vector<8x128xf32>,
    %c0_35 = arith.constant 0 : index
    %c0_36 = arith.constant 0 : index
    %74 = vector.load %arg16[%c0_35, %c0_36] : memref<8x128xf32, #tpu.memory_space<vmem>>, vector<8x128xf32>
    tpu.vector_store %arg16[%c0_35, %c0_36], %70 {strides = array<i32>} : memref<8x128xf32, #tpu.memory_space<vmem>>, vector<8x128xf32>,
    %75 = arith.truncf %72 : vector<8x128xf32> to vector<8x128xbf16>
    %c0_37 = arith.constant 0 : index
    %c0_38 = arith.constant 0 : index
    %76 = vector.load %arg12[%c0_37, %c0_38] : memref<128x128xbf16, #tpu.memory_space<vmem>>, vector<128x128xbf16>
    %cst_39 = arith.constant dense<0.000000e+00> : vector<8x128xf32>
    %77 = tpu.matmul %75, %76, %cst_39 {dimension_numbers = #tpu.dot_dimension_numbers<[1], [0], [0], [1], [0, 0, 1, 1], [], []>} : vector<8x128xbf16>, vector<128x128xbf16>, vector<8x128xf32> -> vector<8x128xf32>
    %c0_40 = arith.constant 0 : index
    %c0_41 = arith.constant 0 : index
    %78 = vector.load %arg13[%c0_40, %c0_41] : memref<1x128xf32, #tpu.memory_space<vmem>>, vector<1x128xf32>
    %79 = vector.broadcast %78 : vector<1x128xf32> to vector<8x128xf32>
    %80 = arith.addf %77, %79 : vector<8x128xf32>
    %cst_42 = arith.constant dense<0xFF800000> : vector<8xf32>
    %81 = vector.multi_reduction <maximumf>, %80, %cst_42 [1] : vector<8x128xf32> to vector<8xf32>
    %82 = vector.shape_cast %81 : vector<8xf32> to vector<8x1xf32>
    %83 = vector.broadcast %82 : vector<8x1xf32> to vector<8x128xf32>
    %84 = arith.subf %80, %83 : vector<8x128xf32>
    %85 = math.exp %84 : vector<8x128xf32>
    %cst_43 = arith.constant dense<0.000000e+00> : vector<8xf32>
    %86 = vector.multi_reduction <add>, %85, %cst_43 [1] : vector<8x128xf32> to vector<8xf32>
    %87 = vector.shape_cast %86 : vector<8xf32> to vector<8x1xf32>
    %88 = math.log %87 : vector<8x1xf32>
    %89 = arith.addf %88, %82 : vector<8x1xf32>
    %90 = vector.broadcast %89 : vector<8x1xf32> to vector<8x128xf32>
    %91 = arith.subf %80, %90 : vector<8x128xf32>
    %c0_44 = arith.constant 0 : index
    %c0_45 = arith.constant 0 : index
    %c0_46 = arith.constant 0 : index
    %92 = vector.load %arg14[%c0_44, %c0_45, %c0_46] : memref<1x8x128xf32, #tpu.memory_space<vmem>>, vector<1x8x128xf32>
    %93 = vector.shape_cast %92 : vector<1x8x128xf32> to vector<8x128xf32>
    %94 = vector.shape_cast %91 : vector<8x128xf32> to vector<1x8x128xf32>
    tpu.vector_store %arg14[%c0_44, %c0_45, %c0_46], %94 {strides = array<i32>} : memref<1x8x128xf32, #tpu.memory_space<vmem>>, vector<1x8x128xf32>,
    return
  }
  func.func @transform_0(%arg0: i32, %arg1: i32) -> (i32, i32, i32) {
    %c0_i32 = arith.constant 0 : i32
    %c0_i32_0 = arith.constant 0 : i32
    return %arg1, %arg0, %c0_i32 : i32, i32, i32
  }
  func.func @transform_1(%arg0: i32, %arg1: i32) -> (i32, i32) {
    %c0_i32 = arith.constant 0 : i32
    %c0_i32_0 = arith.constant 0 : i32
    return %arg0, %c0_i32 : i32, i32
  }
  func.func @transform_2(%arg0: i32, %arg1: i32) -> (i32, i32, i32) {
    %c0_i32 = arith.constant 0 : i32
    %c0_i32_0 = arith.constant 0 : i32
    %c0_i32_1 = arith.constant 0 : i32
    return %arg0, %c0_i32, %c0_i32_0 : i32, i32, i32
  }
  func.func @transform_3(%arg0: i32, %arg1: i32) -> (i32, i32, i32) {
    %c0_i32 = arith.constant 0 : i32
    %c0_i32_0 = arith.constant 0 : i32
    %c0_i32_1 = arith.constant 0 : i32
    return %arg0, %c0_i32, %c0_i32_0 : i32, i32, i32
  }
  func.func @transform_4(%arg0: i32, %arg1: i32) -> (i32, i32) {
    %c0_i32 = arith.constant 0 : i32
    %c0_i32_0 = arith.constant 0 : i32
    %c0_i32_1 = arith.constant 0 : i32
    return %c0_i32, %c0_i32_0 : i32, i32
  }
  func.func @transform_5(%arg0: i32, %arg1: i32) -> (i32, i32) {
    %c0_i32 = arith.constant 0 : i32
    %c0_i32_0 = arith.constant 0 : i32
    %c0_i32_1 = arith.constant 0 : i32
    return %c0_i32, %c0_i32_0 : i32, i32
  }
  func.func @transform_6(%arg0: i32, %arg1: i32) -> (i32, i32) {
    %c0_i32 = arith.constant 0 : i32
    %c0_i32_0 = arith.constant 0 : i32
    %c0_i32_1 = arith.constant 0 : i32
    return %c0_i32, %c0_i32_0 : i32, i32
  }
  func.func @transform_7(%arg0: i32, %arg1: i32) -> (i32, i32) {
    %c0_i32 = arith.constant 0 : i32
    %c0_i32_0 = arith.constant 0 : i32
    %c0_i32_1 = arith.constant 0 : i32
    return %c0_i32, %c0_i32_0 : i32, i32
  }
  func.func @transform_8(%arg0: i32, %arg1: i32) -> (i32, i32) {
    %c0_i32 = arith.constant 0 : i32
    %c0_i32_0 = arith.constant 0 : i32
    %c0_i32_1 = arith.constant 0 : i32
    return %c0_i32, %c0_i32_0 : i32, i32
  }
  func.func @transform_9(%arg0: i32, %arg1: i32) -> (i32, i32) {
    %c0_i32 = arith.constant 0 : i32
    %c0_i32_0 = arith.constant 0 : i32
    %c0_i32_1 = arith.constant 0 : i32
    return %c0_i32, %c0_i32_0 : i32, i32
  }
  func.func @transform_10(%arg0: i32, %arg1: i32) -> (i32, i32) {
    %c0_i32 = arith.constant 0 : i32
    %c0_i32_0 = arith.constant 0 : i32
    %c0_i32_1 = arith.constant 0 : i32
    return %c0_i32, %c0_i32_0 : i32, i32
  }
  func.func @transform_11(%arg0: i32, %arg1: i32) -> (i32, i32) {
    %c0_i32 = arith.constant 0 : i32
    %c0_i32_0 = arith.constant 0 : i32
    %c0_i32_1 = arith.constant 0 : i32
    return %c0_i32, %c0_i32_0 : i32, i32
  }
  func.func @transform_12(%arg0: i32, %arg1: i32) -> (i32, i32, i32) {
    %c0_i32 = arith.constant 0 : i32
    %c0_i32_0 = arith.constant 0 : i32
    return %arg1, %arg0, %c0_i32 : i32, i32, i32
  }
}

</mosaic_0001>

<llo_original>
// kernel: _forward_impl.1
$region0: #{_forward_impl.1}
  #allocation0 [shape = 'u32[]', space=smem, size = 0x4, offset = 0x4, fixed_abs, tag = 'smem constant byte address 0x4 - core index']
  #allocation1 [shape = 'u32[144,128]{1,0:T(1,128)}', space=vmem, size = 0x12000, scoped, tag = 'internal scratch']
  #allocation2 [shape = 'f32[8,128]{1,0:T(8,128)}', space=vmem, size = 0x1000, scoped, tag = 'scratch operand']
  #allocation3 [shape = 'f32[8,128]{1,0:T(8,128)}', space=vmem, size = 0x1000, scoped, tag = 'scratch operand']
  #allocation4 [shape = 'f32[1,1]{1,0:T(1,128)S(1)}', space=vmem, size = 0x200, scoped, tag = 'scoped memory for _forward_impl.1']
  %s0 = inlined_call_operand.vmem [shape: bf16[7,8,128], index: 0, kind: input, shape index: {}]
  %s1 = inlined_call_operand.vmem [shape: f32[8,128], index: 1, kind: input, shape index: {}]
  %s2 = inlined_call_operand.vmem [shape: bf16[8,16,128], index: 2, kind: input, shape index: {}]
  %s3 = inlined_call_operand.vmem [shape: bf16[8,16,128], index: 3, kind: input, shape index: {}]
  %s4 = inlined_call_operand.vmem [shape: bf16[128,128], index: 4, kind: input, shape index: {}]
  %s5 = inlined_call_operand.vmem [shape: f32[1,128], index: 5, kind: input, shape index: {}]
  %s6 = inlined_call_operand.vmem [shape: f32[1,128], index: 6, kind: input, shape index: {}]
  %s7 = inlined_call_operand.<no memory space> [shape: f32[1,1], index: 7, kind: input, shape index: {}]
  %s8 = inlined_call_operand.vmem [shape: bf16[384,512], index: 8, kind: input, shape index: {}]
  %s9 = inlined_call_operand.vmem [shape: f32[1,512], index: 9, kind: input, shape index: {}]
  %s10 = inlined_call_operand.vmem [shape: bf16[128,128], index: 10, kind: input, shape index: {}]
  %s11 = inlined_call_operand.vmem [shape: f32[1,128], index: 11, kind: input, shape index: {}]
  %s12 = inlined_call_operand.vmem [shape: f32[7,8,128], index: 12, kind: output, shape index: {}]
  %s13 = sld [smem:[#allocation0]]
  $region85: #{_forward_impl.1} parent=0
    _
  %s15 = ssub.s32 1, %s13
  %s16 = scalar_select 0, %s15, %s13
  %v17 = vstv %s7
  %18 = vst [vmem:[#allocation4] sm:$0x1] %v17
  loop: start=0, step=1, limit=9
  $region2: #{_forward_impl.1} parent=0 // loop_pre_header
    _
  $region3: #{_forward_impl.1} parent=0 // loop_header
    %s20 = sphi 0, %s24
    %p21 = scmp.ge.s32.totalorder %s20, 9
    %s27 = sphi 0, %s39
    %s28 = sphi 0, %s35
    %s29 = sphi 0, %s27
    %s30 = sphi 0, %s28
    %s31 = sphi 0, %s29
    %s32 = sphi 0, %s30
    %s44 = sphi 0, %s46
    %s47 = sphi 0, %s44
    %s48 = sphi 0, %s47
    %s64 = sphi 0, %s48
    %s70 = sphi 0, %s72
    %s73 = sphi 0, %s70
    %s74 = sphi 0, %s73
    %s90 = sphi 0, %s74
    %s96 = sphi 0, %s98
    %s99 = sphi 0, %s96
    %s100 = sphi 0, %s99
    %s116 = sphi 0, %s100
    %s122 = sphi 0, %s124
    %s125 = sphi 0, %s122
    %s126 = sphi 0, %s125
    %s142 = sphi 0, %s126
    %s146 = sphi 0, %s146
    %s148 = sphi 0, %s146
    %s149 = sphi 0, %s148
    %s163 = sphi 0, %s149
    %s167 = sphi 0, %s167
    %s169 = sphi 0, %s167
    %s170 = sphi 0, %s169
    %s184 = sphi 0, %s170
    %s188 = sphi 0, %s188
    %s190 = sphi 0, %s188
    %s191 = sphi 0, %s190
    %s205 = sphi 0, %s191
    %s209 = sphi 0, %s209
    %s211 = sphi 0, %s209
    %s212 = sphi 0, %s211
    %s226 = sphi 0, %s212
    %s230 = sphi 0, %s230
    %s232 = sphi 0, %s230
    %s233 = sphi 0, %s232
    %s247 = sphi 0, %s233
    %s251 = sphi 0, %s251
    %s253 = sphi 0, %s251
    %s254 = sphi 0, %s253
    %s268 = sphi 0, %s254
    %s272 = sphi 0, %s272
    %s274 = sphi 0, %s272
    %s275 = sphi 0, %s274
    %s289 = sphi 0, %s275
    %s293 = sphi 0, %s293
    %s295 = sphi 0, %s293
    %s296 = sphi 0, %s295
    %s310 = sphi 0, %s296
    %s318 = sphi 0, %s320
    %s321 = sphi 0, %s318
    %s322 = sphi 0, %s321
    %s338 = sphi 0, %s322
  $region4: #{_forward_impl.1} parent=0 // loop_header_branch
    %23 = sbr.rel (%p21) target = $region8
  $region5: #{_forward_impl.1} parent=0 // loop_body
    %s25 = ssub.s32 %s20, 1
    %s26 = ssub.s32 %s20, 2
    %s33 = sadd.s32 1, %s28
    %p34 = scmp.ge.s32.totalorder %s33, 7
    %s35 = scalar_select %p34, 0, %s33
    %s36 = sadd.s32 1, %s27
    %s37 = scalar_select %p34, %s36, %s27
    %p38 = scmp.ge.s32.totalorder %s37, 1
    %s39 = scalar_select %p38, 0, %s37
    %s40 = ssub.s32 %s28, %s35
    %s41 = ssub.s32 %s27, %s39
    %s42 = sor.u32 %s40, %s41
    %p43 = scmp.eq.s32.totalorder %s42, 0
    %s45 = sadd.s32 %s44, 1
    %s46 = scalar_select %p43, %s44, %s45
    %p49 = pneg %p43
    %p50 = scmp.eq.s32.totalorder %s20, 6
    %p51 = por %p49, %p50
    %p52 = scmp.ne.s32.totalorder %s44, %s47
    %p53 = scmp.eq.s32.totalorder %s20, 0
    %p54 = por %p52, %p53
    %p55 = scmp.ne.s32.totalorder %s44, %s47
    %p56 = scmp.eq.s32.totalorder %s25, 6
    %p57 = por %p55, %p56
    %p58 = scmp.ne.s32.totalorder %s47, %s48
    %p59 = scmp.eq.s32.totalorder %s25, 0
    %p60 = por %p58, %p59
    %p61 = scmp.ne.s32.totalorder %s47, %s48
    %p62 = scmp.eq.s32.totalorder %s26, 6
    %p63 = por %p61, %p62
    %p65 = scmp.ne.s32.totalorder %s48, %s64
    %p66 = scmp.eq.s32.totalorder %s26, 0
    %p67 = por %p65, %p66
    %s68 = ssub.s32 %s27, %s39
    %p69 = scmp.eq.s32.totalorder %s68, 0
    %s71 = sadd.s32 %s70, 1
    %s72 = scalar_select %p69, %s70, %s71
    %p75 = pneg %p69
    %p76 = scmp.eq.s32.totalorder %s20, 6
    %p77 = por %p75, %p76
    %p78 = scmp.ne.s32.totalorder %s70, %s73
    %p79 = scmp.eq.s32.totalorder %s20, 0
    %p80 = por %p78, %p79
    %p81 = scmp.ne.s32.totalorder %s70, %s73
    %p82 = scmp.eq.s32.totalorder %s25, 6
    %p83 = por %p81, %p82
    %p84 = scmp.ne.s32.totalorder %s73, %s74
    %p85 = scmp.eq.s32.totalorder %s25, 0
    %p86 = por %p84, %p85
    %p87 = scmp.ne.s32.totalorder %s73, %s74
    %p88 = scmp.eq.s32.totalorder %s26, 6
    %p89 = por %p87, %p88
    %p91 = scmp.ne.s32.totalorder %s74, %s90
    %p92 = scmp.eq.s32.totalorder %s26, 0
    %p93 = por %p91, %p92
    %s94 = ssub.s32 %s27, %s39
    %p95 = scmp.eq.s32.totalorder %s94, 0
    %s97 = sadd.s32 %s96, 1
    %s98 = scalar_select %p95, %s96, %s97
    %p101 = pneg %p95
    %p102 = scmp.eq.s32.totalorder %s20, 6
    %p103 = por %p101, %p102
    %p104 = scmp.ne.s32.totalorder %s96, %s99
    %p105 = scmp.eq.s32.totalorder %s20, 0
    %p106 = por %p104, %p105
    %p107 = scmp.ne.s32.totalorder %s96, %s99
    %p108 = scmp.eq.s32.totalorder %s25, 6
    %p109 = por %p107, %p108
    %p110 = scmp.ne.s32.totalorder %s99, %s100
    %p111 = scmp.eq.s32.totalorder %s25, 0
    %p112 = por %p110, %p111
    %p113 = scmp.ne.s32.totalorder %s99, %s100
    %p114 = scmp.eq.s32.totalorder %s26, 6
    %p115 = por %p113, %p114
    %p117 = scmp.ne.s32.totalorder %s100, %s116
    %p118 = scmp.eq.s32.totalorder %s26, 0
    %p119 = por %p117, %p118
    %s120 = ssub.s32 %s27, %s39
    %p121 = scmp.eq.s32.totalorder %s120, 0
    %s123 = sadd.s32 %s122, 1
    %s124 = scalar_select %p121, %s122, %s123
    %p127 = pneg %p121
    %p128 = scmp.eq.s32.totalorder %s20, 6
    %p129 = por %p127, %p128
    %p130 = scmp.ne.s32.totalorder %s122, %s125
    %p131 = scmp.eq.s32.totalorder %s20, 0
    %p132 = por %p130, %p131
    %p133 = scmp.ne.s32.totalorder %s122, %s125
    %p134 = scmp.eq.s32.totalorder %s25, 6
    %p135 = por %p133, %p134
    %p136 = scmp.ne.s32.totalorder %s125, %s126
    %p137 = scmp.eq.s32.totalorder %s25, 0
    %p138 = por %p136, %p137
    %p139 = scmp.ne.s32.totalorder %s125, %s126
    %p140 = scmp.eq.s32.totalorder %s26, 6
    %p141 = por %p139, %p140
    %p143 = scmp.ne.s32.totalorder %s126, %s142
    %p144 = scmp.eq.s32.totalorder %s26, 0
    %p145 = por %p143, %p144
    %s147 = sadd.s32 %s146, 1
    %p150 = scmp.eq.s32.totalorder %s20, 6
    %p151 = scmp.ne.s32.totalorder %s146, %s148
    %p152 = scmp.eq.s32.totalorder %s20, 0
    %p153 = por %p151, %p152
    %p154 = scmp.ne.s32.totalorder %s146, %s148
    %p155 = scmp.eq.s32.totalorder %s25, 6
    %p156 = por %p154, %p155
    %p157 = scmp.ne.s32.totalorder %s148, %s149
    %p158 = scmp.eq.s32.totalorder %s25, 0
    %p159 = por %p157, %p158
    %p160 = scmp.ne.s32.totalorder %s148, %s149
    %p161 = scmp.eq.s32.totalorder %s26, 6
    %p162 = por %p160, %p161
    %p164 = scmp.ne.s32.totalorder %s149, %s163
    %p165 = scmp.eq.s32.totalorder %s26, 0
    %p166 = por %p164, %p165
    %s168 = sadd.s32 %s167, 1
    %p171 = scmp.eq.s32.totalorder %s20, 6
    %p172 = scmp.ne.s32.totalorder %s167, %s169
    %p173 = scmp.eq.s32.totalorder %s20, 0
    %p174 = por %p172, %p173
    %p175 = scmp.ne.s32.totalorder %s167, %s169
    %p176 = scmp.eq.s32.totalorder %s25, 6
    %p177 = por %p175, %p176
    %p178 = scmp.ne.s32.totalorder %s169, %s170
    %p179 = scmp.eq.s32.totalorder %s25, 0
    %p180 = por %p178, %p179
    %p181 = scmp.ne.s32.totalorder %s169, %s170
    %p182 = scmp.eq.s32.totalorder %s26, 6
    %p183 = por %p181, %p182
    %p185 = scmp.ne.s32.totalorder %s170, %s184
    %p186 = scmp.eq.s32.totalorder %s26, 0
    %p187 = por %p185, %p186
    %s189 = sadd.s32 %s188, 1
    %p192 = scmp.eq.s32.totalorder %s20, 6
    %p193 = scmp.ne.s32.totalorder %s188, %s190
    %p194 = scmp.eq.s32.totalorder %s20, 0
    %p195 = por %p193, %p194
    %p196 = scmp.ne.s32.totalorder %s188, %s190
    %p197 = scmp.eq.s32.totalorder %s25, 6
    %p198 = por %p196, %p197
    %p199 = scmp.ne.s32.totalorder %s190, %s191
    %p200 = scmp.eq.s32.totalorder %s25, 0
    %p201 = por %p199, %p200
    %p202 = scmp.ne.s32.totalorder %s190, %s191
    %p203 = scmp.eq.s32.totalorder %s26, 6
    %p204 = por %p202, %p203
    %p206 = scmp.ne.s32.totalorder %s191, %s205
    %p207 = scmp.eq.s32.totalorder %s26, 0
    %p208 = por %p206, %p207
    %s210 = sadd.s32 %s209, 1
    %p213 = scmp.eq.s32.totalorder %s20, 6
    %p214 = scmp.ne.s32.totalorder %s209, %s211
    %p215 = scmp.eq.s32.totalorder %s20, 0
    %p216 = por %p214, %p215
    %p217 = scmp.ne.s32.totalorder %s209, %s211
    %p218 = scmp.eq.s32.totalorder %s25, 6
    %p219 = por %p217, %p218
    %p220 = scmp.ne.s32.totalorder %s211, %s212
    %p221 = scmp.eq.s32.totalorder %s25, 0
    %p222 = por %p220, %p221
    %p223 = scmp.ne.s32.totalorder %s211, %s212
    %p224 = scmp.eq.s32.totalorder %s26, 6
    %p225 = por %p223, %p224
    %p227 = scmp.ne.s32.totalorder %s212, %s226
    %p228 = scmp.eq.s32.totalorder %s26, 0
    %p229 = por %p227, %p228
    %s231 = sadd.s32 %s230, 1
    %p234 = scmp.eq.s32.totalorder %s20, 6
    %p235 = scmp.ne.s32.totalorder %s230, %s232
    %p236 = scmp.eq.s32.totalorder %s20, 0
    %p237 = por %p235, %p236
    %p238 = scmp.ne.s32.totalorder %s230, %s232
    %p239 = scmp.eq.s32.totalorder %s25, 6
    %p240 = por %p238, %p239
    %p241 = scmp.ne.s32.totalorder %s232, %s233
    %p242 = scmp.eq.s32.totalorder %s25, 0
    %p243 = por %p241, %p242
    %p244 = scmp.ne.s32.totalorder %s232, %s233
    %p245 = scmp.eq.s32.totalorder %s26, 6
    %p246 = por %p244, %p245
    %p248 = scmp.ne.s32.totalorder %s233, %s247
    %p249 = scmp.eq.s32.totalorder %s26, 0
    %p250 = por %p248, %p249
    %s252 = sadd.s32 %s251, 1
    %p255 = scmp.eq.s32.totalorder %s20, 6
    %p256 = scmp.ne.s32.totalorder %s251, %s253
    %p257 = scmp.eq.s32.totalorder %s20, 0
    %p258 = por %p256, %p257
    %p259 = scmp.ne.s32.totalorder %s251, %s253
    %p260 = scmp.eq.s32.totalorder %s25, 6
    %p261 = por %p259, %p260
    %p262 = scmp.ne.s32.totalorder %s253, %s254
    %p263 = scmp.eq.s32.totalorder %s25, 0
    %p264 = por %p262, %p263
    %p265 = scmp.ne.s32.totalorder %s253, %s254
    %p266 = scmp.eq.s32.totalorder %s26, 6
    %p267 = por %p265, %p266
    %p269 = scmp.ne.s32.totalorder %s254, %s268
    %p270 = scmp.eq.s32.totalorder %s26, 0
    %p271 = por %p269, %p270
    %s273 = sadd.s32 %s272, 1
    %p276 = scmp.eq.s32.totalorder %s20, 6
    %p277 = scmp.ne.s32.totalorder %s272, %s274
    %p278 = scmp.eq.s32.totalorder %s20, 0
    %p279 = por %p277, %p278
    %p280 = scmp.ne.s32.totalorder %s272, %s274
    %p281 = scmp.eq.s32.totalorder %s25, 6
    %p282 = por %p280, %p281
    %p283 = scmp.ne.s32.totalorder %s274, %s275
    %p284 = scmp.eq.s32.totalorder %s25, 0
    %p285 = por %p283, %p284
    %p286 = scmp.ne.s32.totalorder %s274, %s275
    %p287 = scmp.eq.s32.totalorder %s26, 6
    %p288 = por %p286, %p287
    %p290 = scmp.ne.s32.totalorder %s275, %s289
    %p291 = scmp.eq.s32.totalorder %s26, 0
    %p292 = por %p290, %p291
    %s294 = sadd.s32 %s293, 1
    %p297 = scmp.eq.s32.totalorder %s20, 6
    %p298 = scmp.ne.s32.totalorder %s293, %s295
    %p299 = scmp.eq.s32.totalorder %s20, 0
    %p300 = por %p298, %p299
    %p301 = scmp.ne.s32.totalorder %s293, %s295
    %p302 = scmp.eq.s32.totalorder %s25, 6
    %p303 = por %p301, %p302
    %p304 = scmp.ne.s32.totalorder %s295, %s296
    %p305 = scmp.eq.s32.totalorder %s25, 0
    %p306 = por %p304, %p305
    %p307 = scmp.ne.s32.totalorder %s295, %s296
    %p308 = scmp.eq.s32.totalorder %s26, 6
    %p309 = por %p307, %p308
    %p311 = scmp.ne.s32.totalorder %s296, %s310
    %p312 = scmp.eq.s32.totalorder %s26, 0
    %p313 = por %p311, %p312
    %s314 = ssub.s32 %s28, %s35
    %s315 = ssub.s32 %s27, %s39
    %s316 = sor.u32 %s314, %s315
    %p317 = scmp.eq.s32.totalorder %s316, 0
    %s319 = sadd.s32 %s318, 1
    %s320 = scalar_select %p317, %s318, %s319
    %p323 = pneg %p317
    %p324 = scmp.eq.s32.totalorder %s20, 6
    %p325 = por %p323, %p324
    %p326 = scmp.ne.s32.totalorder %s318, %s321
    %p327 = scmp.eq.s32.totalorder %s20, 0
    %p328 = por %p326, %p327
    %p329 = scmp.ne.s32.totalorder %s318, %s321
    %p330 = scmp.eq.s32.totalorder %s25, 6
    %p331 = por %p329, %p330
    %p332 = scmp.ne.s32.totalorder %s321, %s322
    %p333 = scmp.eq.s32.totalorder %s25, 0
    %p334 = por %p332, %p333
    %p335 = scmp.ne.s32.totalorder %s321, %s322
    %p336 = scmp.eq.s32.totalorder %s26, 6
    %p337 = por %p335, %p336
    %p339 = scmp.ne.s32.totalorder %s322, %s338
    %p340 = scmp.eq.s32.totalorder %s26, 0
    %p341 = por %p339, %p340
    %p342 = scmp.le.s32.totalorder 1, %s20
    %p343 = scmp.lt.s32.totalorder %s20, 8
    %p344 = pnand %p342, %p343
    %p345 = pneg %p344
    // Predicated region
    $region9: #{_forward_impl.1} parent=5 // pred_check
      _
    $region10: #{_forward_impl.1} parent=5 // pred_check_branch
      %347 = sbr.rel (%p344) target = $region12
    $region11: #{_forward_impl.1} parent=5 // pred_region
      %s348 = ssub.s32 %s20, 1
      // Predicated region
      $region13: #{_forward_impl.1} parent=11 // pred_check
        %p349 = pneg %p86
      $region14: #{_forward_impl.1} parent=11 // pred_check_branch
        %351 = sbr.rel (%p349) target = $region16
      $region15: #{_forward_impl.1} parent=11 // pred_region
        %p352 = scmp.lt.s32.totalorder %s29, 0
        %s353 = scalar_select %p352, %s29, 0
        %s354 = smul.addr %s353, 8
        %s355 = scalar_lea.vmem %s1, %s354
      $region16: #{_forward_impl.1} parent=11 // pred_fallthru
        _
      // Predicated region
      $region17: #{_forward_impl.1} parent=11 // pred_check
        %p356 = pneg %p112
      $region18: #{_forward_impl.1} parent=11 // pred_check_branch
        %358 = sbr.rel (%p356) target = $region20
      $region19: #{_forward_impl.1} parent=11 // pred_region
        %s359 = smul.u32 8, %s29
        %p360 = scmp.lt.s32.totalorder %s359, 7
        %s361 = scalar_select %p360, %s359, 7
        %s362 = smul.addr %s361, 2
        %s363 = smul.addr %s362, 4
        %s364 = scalar_lea.vmem %s2, %s363
        %s365 = smul.u32 8, %s29
      $region20: #{_forward_impl.1} parent=11 // pred_fallthru
        _
      // Predicated region
      $region21: #{_forward_impl.1} parent=11 // pred_check
        %p366 = pneg %p138
      $region22: #{_forward_impl.1} parent=11 // pred_check_branch
        %368 = sbr.rel (%p366) target = $region24
      $region23: #{_forward_impl.1} parent=11 // pred_region
        %s369 = smul.u32 8, %s29
        %p370 = scmp.lt.s32.totalorder %s369, 7
        %s371 = scalar_select %p370, %s369, 7
        %s372 = smul.addr %s371, 2
        %s373 = smul.addr %s372, 4
        %s374 = scalar_lea.vmem %s3, %s373
        %s375 = smul.u32 8, %s29
      $region24: #{_forward_impl.1} parent=11 // pred_fallthru
        _
      // Predicated region
      $region25: #{_forward_impl.1} parent=11 // pred_check
        %p376 = pneg %p159
      $region26: #{_forward_impl.1} parent=11 // pred_check_branch
        %378 = sbr.rel (%p376) target = $region28
      $region27: #{_forward_impl.1} parent=11 // pred_region
        _
      $region28: #{_forward_impl.1} parent=11 // pred_fallthru
        _
      // Predicated region
      $region29: #{_forward_impl.1} parent=11 // pred_check
        %p379 = pneg %p180
      $region30: #{_forward_impl.1} parent=11 // pred_check_branch
        %381 = sbr.rel (%p379) target = $region32
      $region31: #{_forward_impl.1} parent=11 // pred_region
        _
      $region32: #{_forward_impl.1} parent=11 // pred_fallthru
        _
      // Predicated region
      $region33: #{_forward_impl.1} parent=11 // pred_check
        %p382 = pneg %p201
      $region34: #{_forward_impl.1} parent=11 // pred_check_branch
        %384 = sbr.rel (%p382) target = $region36
      $region35: #{_forward_impl.1} parent=11 // pred_region
        _
      $region36: #{_forward_impl.1} parent=11 // pred_fallthru
        _
      // Predicated region
      $region37: #{_forward_impl.1} parent=11 // pred_check
        %p385 = pneg %p222
      $region38: #{_forward_impl.1} parent=11 // pred_check_branch
        %387 = sbr.rel (%p385) target = $region40
      $region39: #{_forward_impl.1} parent=11 // pred_region
        _
      $region40: #{_forward_impl.1} parent=11 // pred_fallthru
        _
      // Predicated region
      $region41: #{_forward_impl.1} parent=11 // pred_check
        %p388 = pneg %p243
      $region42: #{_forward_impl.1} parent=11 // pred_check_branch
        %390 = sbr.rel (%p388) target = $region44
      $region43: #{_forward_impl.1} parent=11 // pred_region
        _
      $region44: #{_forward_impl.1} parent=11 // pred_fallthru
        _
      // Predicated region
      $region45: #{_forward_impl.1} parent=11 // pred_check
        %p391 = pneg %p264
      $region46: #{_forward_impl.1} parent=11 // pred_check_branch
        %393 = sbr.rel (%p391) target = $region48
      $region47: #{_forward_impl.1} parent=11 // pred_region
        _
      $region48: #{_forward_impl.1} parent=11 // pred_fallthru
        _
      // Predicated region
      $region49: #{_forward_impl.1} parent=11 // pred_check
        %p394 = pneg %p285
      $region50: #{_forward_impl.1} parent=11 // pred_check_branch
        %396 = sbr.rel (%p394) target = $region52
      $region51: #{_forward_impl.1} parent=11 // pred_region
        _
      $region52: #{_forward_impl.1} parent=11 // pred_fallthru
        _
      // Predicated region
      $region53: #{_forward_impl.1} parent=11 // pred_check
        %p397 = pneg %p306
      $region54: #{_forward_impl.1} parent=11 // pred_check_branch
        %399 = sbr.rel (%p397) target = $region56
      $region55: #{_forward_impl.1} parent=11 // pred_region
        _
      $region56: #{_forward_impl.1} parent=11 // pred_fallthru
        _
    $region12: #{_forward_impl.1} parent=5 // pred_fallthru
      _
    %p400 = scmp.lt.s32.totalorder %s20, 7
    // Predicated region
    $region57: #{_forward_impl.1} parent=5 // pred_check
      %p401 = pneg %p400
    $region58: #{_forward_impl.1} parent=5 // pred_check_branch
      %403 = sbr.rel (%p401) target = $region60
    $region59: #{_forward_impl.1} parent=5 // pred_region
      // Predicated region
      $region61: #{_forward_impl.1} parent=59 // pred_check
        %p404 = pneg %p54
      $region62: #{_forward_impl.1} parent=59 // pred_check_branch
        %406 = sbr.rel (%p404) target = $region64
      $region63: #{_forward_impl.1} parent=59 // pred_region
        %p407 = scmp.lt.s32.totalorder %s28, 6
        %s408 = scalar_select %p407, %s28, 6
        %p409 = scmp.lt.s32.totalorder %s27, 0
        %s410 = scalar_select %p409, %s27, 0
        %s411 = sadd.s32 %s410, %s408
        %s412 = smul.addr %s411, 4
        %s413 = scalar_lea.vmem %s0, %s412
      $region64: #{_forward_impl.1} parent=59 // pred_fallthru
        _
    $region60: #{_forward_impl.1} parent=5 // pred_fallthru
      _
    %p414 = scmp.le.s32.totalorder 1, %s20
    %p415 = scmp.lt.s32.totalorder %s20, 8
    %p416 = pnand %p414, %p415
    %p417 = pneg %p416
    // Predicated region
    $region65: #{_forward_impl.1} parent=5 // pred_check
      _
    $region66: #{_forward_impl.1} parent=5 // pred_check_branch
      %419 = sbr.rel (%p416) target = $region68
    $region67: #{_forward_impl.1} parent=5 // pred_region
      %s420 = ssub.s32 %s20, 1
      %p421 = scmp.lt.s32.totalorder %s30, 6
      %s422 = scalar_select %p421, %s30, 6
      %p423 = scmp.lt.s32.totalorder %s29, 0
      %s424 = scalar_select %p423, %s29, 0
      %s425 = sadd.s32 %s424, %s422
      %s426 = smul.addr %s425, 4
      %s427 = scalar_lea.vmem %s0, %s426
      %p428 = pneg %p60
      %p429 = pneg %p57
      %p430 = scmp.lt.s32.totalorder %s29, 0
      %s431 = scalar_select %p430, %s29, 0
      %s432 = smul.addr %s431, 8
      %s433 = scalar_lea.vmem %s1, %s432
      %p434 = pneg %p86
      %p435 = pneg %p83
      %s436 = smul.u32 8, %s29
      %p437 = scmp.lt.s32.totalorder %s436, 7
      %s438 = scalar_select %p437, %s436, 7
      %s439 = smul.addr %s438, 2
      %s440 = smul.addr %s439, 4
      %s441 = scalar_lea.vmem %s2, %s440
      %p442 = pneg %p112
      %p443 = pneg %p109
      %s444 = smul.u32 8, %s29
      %p445 = scmp.lt.s32.totalorder %s444, 7
      %s446 = scalar_select %p445, %s444, 7
      %s447 = smul.addr %s446, 2
      %s448 = smul.addr %s447, 4
      %s449 = scalar_lea.vmem %s3, %s448
      %p450 = pneg %p138
      %p451 = pneg %p135
      %p452 = pneg %p159
      %p453 = pneg %p156
      %p454 = pneg %p180
      %p455 = pneg %p177
      %p456 = pneg %p201
      %p457 = pneg %p198
      %p458 = pneg %p222
      %p459 = pneg %p219
      %p460 = pneg %p243
      %p461 = pneg %p240
      %p462 = pneg %p264
      %p463 = pneg %p261
      %p464 = pneg %p285
      %p465 = pneg %p282
      %p466 = pneg %p306
      %p467 = pneg %p303
      %p468 = pneg %p334
      %p469 = pneg %p331
      %p470 = scmp.lt.s32.totalorder %s30, 6
      %s471 = scalar_select %p470, %s30, 6
      %p472 = scmp.lt.s32.totalorder %s29, 0
      %s473 = scalar_select %p472, %s29, 0
      %s474 = sadd.s32 %s473, %s471
      %s475 = smul.addr %s474, 8
      %s476 = scalar_lea.vmem %s12, %s475
      %p477 = scmp.lt.s32.totalorder %s30, 6
      %s478 = scalar_select %p477, %s30, 6
      %p479 = scmp.lt.s32.totalorder %s29, 0
      %s480 = scalar_select %p479, %s29, 0
      %s481 = sadd.s32 %s480, %s478
      %s482 = smul.addr %s481, 4
      %s483 = scalar_lea.vmem %s0, %s482
      %p484 = scmp.lt.s32.totalorder %s29, 0
      %s485 = scalar_select %p484, %s29, 0
      %s486 = smul.addr %s485, 8
      %s487 = scalar_lea.vmem %s1, %s486
      %s488 = smul.u32 8, %s29
      %p489 = scmp.lt.s32.totalorder %s488, 7
      %s490 = scalar_select %p489, %s488, 7
      %s491 = smul.addr %s490, 2
      %s492 = smul.addr %s491, 4
      %s493 = scalar_lea.vmem %s2, %s492
      %s494 = smul.u32 8, %s29
      %s495 = smul.u32 8, %s29
      %p496 = scmp.lt.s32.totalorder %s495, 7
      %s497 = scalar_select %p496, %s495, 7
      %s498 = smul.addr %s497, 2
      %s499 = smul.addr %s498, 4
      %s500 = scalar_lea.vmem %s3, %s499
      %s501 = smul.u32 8, %s29
      %p502 = scmp.lt.s32.totalorder %s30, 6
      %s503 = scalar_select %p502, %s30, 6
      %p504 = scmp.lt.s32.totalorder %s29, 0
      %s505 = scalar_select %p504, %s29, 0
      %s506 = sadd.s32 %s505, %s503
      %s507 = smul.addr %s506, 8
      %s508 = scalar_lea.vmem %s12, %s507
      %p510 = scmp.eq.s32.totalorder %s30, 0
      // Predicated region
      $region69: #{_forward_impl.1} parent=67 // pred_check
        %p511 = pneg %p510
      $region70: #{_forward_impl.1} parent=67 // pred_check_branch
        %513 = sbr.rel (%p511) target = $region72
      $region71: #{_forward_impl.1} parent=67 // pred_region
        %v514 = vld [vmem:[%s487] sm:$0xff]
        %515 = vst [vmem:[#allocation2] sm:$0xff] %v514
        %516 = vst [vmem:[#allocation3] sm:$0xff] %v514
      $region72: #{_forward_impl.1} parent=67 // pred_fallthru
        _
      %v517 = vld [vmem:[#allocation2] sm:$0xff]
      %v518 = vld [vmem:[#allocation3] sm:$0xff]
      %v519 = vpack.c.bf16 %v517, %v517
      %v520 = vld [vmem:[%s483] sm:$0xf]
      %v521 = vld [vmem:[%s493] sm:$0xf]
      %v522 = vld [vmem:[%s493 + $0x4] sm:$0xf]
      %v523 = vld [vmem:[%s493 + $0x8] sm:$0xf]
      %v524 = vld [vmem:[%s493 + $0xc] sm:$0xf]
      %v525 = vld [vmem:[%s493 + $0x10] sm:$0xf]
      %v526 = vld [vmem:[%s493 + $0x14] sm:$0xf]
      %v527 = vld [vmem:[%s493 + $0x18] sm:$0xf]
      %v528 = vld [vmem:[%s493 + $0x1c] sm:$0xf]
      %v529 = vld [vmem:[%s493 + $0x20] sm:$0xf]
      %v530 = vld [vmem:[%s493 + $0x24] sm:$0xf]
      %v531 = vld [vmem:[%s493 + $0x28] sm:$0xf]
      %v532 = vld [vmem:[%s493 + $0x2c] sm:$0xf]
      %v533 = vld [vmem:[%s493 + $0x30] sm:$0xf]
      %v534 = vld [vmem:[%s493 + $0x34] sm:$0xf]
      %v535 = vld [vmem:[%s493 + $0x38] sm:$0xf]
      %v536 = vld [vmem:[%s493 + $0x3c] sm:$0xf]
      %v537 = vld [vmem:[%s4] sm:$0xf]
      %v538 = vld [vmem:[%s4 + $0x4] sm:$0xf]
      %v539 = vld [vmem:[%s4 + $0x8] sm:$0xf]
      %v540 = vld [vmem:[%s4 + $0xc] sm:$0xf]
      %v541 = vld [vmem:[%s4 + $0x10] sm:$0xf]
      %v542 = vld [vmem:[%s4 + $0x14] sm:$0xf]
      %v543 = vld [vmem:[%s4 + $0x18] sm:$0xf]
      %v544 = vld [vmem:[%s4 + $0x1c] sm:$0xf]
      %v545 = vld [vmem:[%s4 + $0x20] sm:$0xf]
      %v546 = vld [vmem:[%s4 + $0x24] sm:$0xf]
      %v547 = vld [vmem:[%s4 + $0x28] sm:$0xf]
      %v548 = vld [vmem:[%s4 + $0x2c] sm:$0xf]
      %v549 = vld [vmem:[%s4 + $0x30] sm:$0xf]
      %v550 = vld [vmem:[%s4 + $0x34] sm:$0xf]
      %v551 = vld [vmem:[%s4 + $0x38] sm:$0xf]
      %v552 = vld [vmem:[%s4 + $0x3c] sm:$0xf]
      %v553 = vld [vmem:[%s5] sm:$0x1]
      %v555 = vlaneseq
      %v556 = vshrl.u32 %v555, 7
      %v557 = vsub.s32 0, %v556
      %v558 = vrot.slane %v553, %v557
      %v576 = vunpack.c.l.b16 %v537
      %v577 = vunpack.c.l.b16 %v538
      %v578 = vunpack.c.l.b16 %v539
      %v579 = vunpack.c.l.b16 %v540
      %v580 = vunpack.c.l.b16 %v541
      %v581 = vunpack.c.l.b16 %v542
      %v582 = vunpack.c.l.b16 %v543
      %v583 = vunpack.c.l.b16 %v544
      %v584 = vunpack.c.l.b16 %v545
      %v585 = vunpack.c.l.b16 %v546
      %v586 = vunpack.c.l.b16 %v547
      %v587 = vunpack.c.l.b16 %v548
      %v588 = vunpack.c.l.b16 %v549
      %v589 = vunpack.c.l.b16 %v550
      %v590 = vunpack.c.l.b16 %v551
      %v591 = vunpack.c.l.b16 %v552
      %v592 = vpack.c.b16 %v577, %v576
      %v593 = vpack.c.b16 %v579, %v578
      %v594 = vpack.c.b16 %v581, %v580
      %v595 = vpack.c.b16 %v583, %v582
      %v596 = vpack.c.b16 %v585, %v584
      %v597 = vpack.c.b16 %v587, %v586
      %v598 = vpack.c.b16 %v589, %v588
      %v599 = vpack.c.b16 %v591, %v590
      %608 = vmatprep.subr.bf16.mxu0 0
      %609 = vmatpush1.bf16.msra.mxu0 %v592
      %610 = vmatprep.subr.bf16.mxu0 0
      %611 = vmatpush1.bf16.msra.mxu0 %v593
      %612 = vmatprep.subr.bf16.mxu0 0
      %613 = vmatpush1.bf16.msra.mxu0 %v594
      %614 = vmatprep.subr.bf16.mxu0 0
      %615 = vmatpush1.bf16.msra.mxu0 %v595
      %616 = vmatprep.subr.bf16.mxu0 0
      %617 = vmatpush1.bf16.msra.mxu0 %v596
      %618 = vmatprep.subr.bf16.mxu0 0
      %619 = vmatpush1.bf16.msra.mxu0 %v597
      %620 = vmatprep.subr.bf16.mxu0 0
      %621 = vmatpush1.bf16.msra.mxu0 %v598
      %622 = vmatprep.subr.bf16.mxu0 0
      %623 = vmatpush1.bf16.msra.mxu0 %v599
      %624 = vmatprep.subr.bf16.mxu0 0
      %625 = vmatpush1.bf16.msra.mxu0 0
      %626 = vmatprep.subr.bf16.mxu0 0
      %627 = vmatpush1.bf16.msra.mxu0 0
      %628 = vmatprep.subr.bf16.mxu0 0
      %629 = vmatpush1.bf16.msra.mxu0 0
      %630 = vmatprep.subr.bf16.mxu0 0
      %631 = vmatpush1.bf16.msra.mxu0 0
      %632 = vmatprep.subr.bf16.mxu0 0
      %633 = vmatpush1.bf16.msra.mxu0 0
      %634 = vmatprep.subr.bf16.mxu0 0
      %635 = vmatpush1.bf16.msra.mxu0 0
      %636 = vmatprep.subr.bf16.mxu0 0
      %637 = vmatpush1.bf16.msra.mxu0 0
      %638 = vmatprep.subr.bf16.mxu0 0
      %639 = vmatpush1.bf16.msra.mxu0 0
      %640 = vmatprep.mubr.bf16.mxu0 0
      %641 = vmatmul.mubr.bf16.gmra.mrb[0].mxu0 %v519
      %v642 = vpop.f32.mrb[0].mxu0
      %v643 = vadd.f32 %v558, %v642
      %v644 = vpop.f32.mrb[0].mxu0
      %v645 = vpop.f32.mrb[0].mxu0
      %v646 = vpop.f32.mrb[0].mxu0
      %647 = vdwg.mxu0
      %v648 = vld [vmem:[%s500] sm:$0xf]
      %v649 = vld [vmem:[%s500 + $0x4] sm:$0xf]
      %v650 = vld [vmem:[%s500 + $0x8] sm:$0xf]
      %v651 = vld [vmem:[%s500 + $0xc] sm:$0xf]
      %v652 = vld [vmem:[%s500 + $0x10] sm:$0xf]
      %v653 = vld [vmem:[%s500 + $0x14] sm:$0xf]
      %v654 = vld [vmem:[%s500 + $0x18] sm:$0xf]
      %v655 = vld [vmem:[%s500 + $0x1c] sm:$0xf]
      %v656 = vld [vmem:[%s500 + $0x20] sm:$0xf]
      %v657 = vld [vmem:[%s500 + $0x24] sm:$0xf]
      %v658 = vld [vmem:[%s500 + $0x28] sm:$0xf]
      %v659 = vld [vmem:[%s500 + $0x2c] sm:$0xf]
      %v660 = vld [vmem:[%s500 + $0x30] sm:$0xf]
      %v661 = vld [vmem:[%s500 + $0x34] sm:$0xf]
      %v662 = vld [vmem:[%s500 + $0x38] sm:$0xf]
      %v663 = vld [vmem:[%s500 + $0x3c] sm:$0xf]
      %v665 = vcombine.high %v643, %v643
      %v667 = vunpack.c.l.s4 1966171168
      %v668 = vunpack.c.0.s8 %v667
      %v669 = vlaneseq
      %v670 = vshrl.u32 %v669, 7
      %v671 = vsub.s32 %v668, %v670
      %v672 = vrot.slane %v643, %v671
      %v674 = vunpack.c.l.s4 1966171168
      %v675 = vunpack.c.0.s8 %v674
      %v676 = vlaneseq
      %v677 = vshrl.u32 %v676, 7
      %v678 = vsub.s32 %v675, %v677
      %v679 = vrot.slane %v665, %v678
      %v680 = vcombine.high %v672, %v672
      %v681 = vcombine.high %v679, %v679
      %v683 = vunpack.c.l.s4 1966171168
      %v684 = vunpack.c.0.s8 %v683
      %v685 = vlaneseq
      %v686 = vshrl.u32 %v685, 7
      %v687 = vsub.s32 %v684, %v686
      %v688 = vrot.slane %v672, %v687
      %v690 = vunpack.c.l.s4 1966171168
      %v691 = vunpack.c.0.s8 %v690
      %v692 = vlaneseq
      %v693 = vshrl.u32 %v692, 7
      %v694 = vsub.s32 %v691, %v693
      %v695 = vrot.slane %v679, %v694
      %v697 = vunpack.c.l.s4 1966171168
      %v698 = vunpack.c.0.s8 %v697
      %v699 = vlaneseq
      %v700 = vshrl.u32 %v699, 7
      %v701 = vsub.s32 %v698, %v700
      %v702 = vrot.slane %v680, %v701
      %v704 = vunpack.c.l.s4 1966171168
      %v705 = vunpack.c.0.s8 %v704
      %v706 = vlaneseq
      %v707 = vshrl.u32 %v706, 7
      %v708 = vsub.s32 %v705, %v707
      %v709 = vrot.slane %v681, %v708
      %v710 = vcombine.high %v688, %v688
      %v711 = vcombine.high %v695, %v695
      %v712 = vcombine.high %v702, %v702
      %v713 = vcombine.high %v709, %v709
      %v714 = vunpack.c.l.bf16 %v648
      %v715 = vunpack.c.l.bf16 %v649
      %v716 = vunpack.c.l.bf16 %v650
      %v717 = vunpack.c.l.bf16 %v651
      %v718 = vunpack.c.l.bf16 %v652
      %v719 = vunpack.c.l.bf16 %v653
      %v720 = vunpack.c.l.bf16 %v654
      %v721 = vunpack.c.l.bf16 %v655
      %v722 = vunpack.c.l.bf16 %v656
      %v723 = vunpack.c.l.bf16 %v657
      %v724 = vunpack.c.l.bf16 %v658
      %v725 = vunpack.c.l.bf16 %v659
      %v726 = vunpack.c.l.bf16 %v660
      %v727 = vunpack.c.l.bf16 %v661
      %v728 = vunpack.c.l.bf16 %v662
      %v729 = vunpack.c.l.bf16 %v663
      %v730 = vlaneseq
      %v731 = vshrl.u32 %v730, 7
      %v732 = vsub.s32 0, %v731
      %v733 = vrot.slane %v688, %v732
      %v734 = vlaneseq
      %v735 = vshrl.u32 %v734, 7
      %v736 = vsub.s32 0, %v735
      %v737 = vrot.slane %v702, %v736
      %v738 = vlaneseq
      %v739 = vshrl.u32 %v738, 7
      %v740 = vsub.s32 0, %v739
      %v741 = vrot.slane %v710, %v740
      %v742 = vlaneseq
      %v743 = vshrl.u32 %v742, 7
      %v744 = vsub.s32 0, %v743
      %v745 = vrot.slane %v712, %v744
      %v746 = vlaneseq
      %v747 = vshrl.u32 %v746, 7
      %v748 = vsub.s32 0, %v747
      %v749 = vrot.slane %v695, %v748
      %v750 = vlaneseq
      %v751 = vshrl.u32 %v750, 7
      %v752 = vsub.s32 0, %v751
      %v753 = vrot.slane %v709, %v752
      %v754 = vlaneseq
      %v755 = vshrl.u32 %v754, 7
      %v756 = vsub.s32 0, %v755
      %v757 = vrot.slane %v711, %v756
      %v758 = vlaneseq
      %v759 = vshrl.u32 %v758, 7
      %v760 = vsub.s32 0, %v759
      %v761 = vrot.slane %v713, %v760
      %v770 = vadd.f32 %v714, %v733
      %v771 = vadd.f32 %v715, %v733
      %v772 = vadd.f32 %v716, %v737
      %v773 = vadd.f32 %v717, %v737
      %v774 = vadd.f32 %v718, %v741
      %v775 = vadd.f32 %v719, %v741
      %v776 = vadd.f32 %v720, %v745
      %v777 = vadd.f32 %v721, %v745
      %v778 = vadd.f32 %v722, %v749
      %v779 = vadd.f32 %v723, %v749
      %v780 = vadd.f32 %v724, %v753
      %v781 = vadd.f32 %v725, %v753
      %v782 = vadd.f32 %v726, %v757
      %v783 = vadd.f32 %v727, %v757
      %v784 = vadd.f32 %v728, %v761
      %v785 = vadd.f32 %v729, %v761
      %v786 = vtanh.pop %v770
      %v787 = vtanh.pop %v771
      %v788 = vtanh.pop %v772
      %v789 = vtanh.pop %v773
      %v790 = vtanh.pop %v774
      %v791 = vtanh.pop %v775
      %v792 = vtanh.pop %v776
      %v793 = vtanh.pop %v777
      %v794 = vtanh.pop %v778
      %v795 = vtanh.pop %v779
      %v796 = vtanh.pop %v780
      %v797 = vtanh.pop %v781
      %v798 = vtanh.pop %v782
      %v799 = vtanh.pop %v783
      %v800 = vtanh.pop %v784
      %v801 = vtanh.pop %v785
      %v802 = vld [vmem:[%s6] sm:$0x1]
      %v804 = vlaneseq
      %v805 = vshrl.u32 %v804, 7
      %v806 = vsub.s32 0, %v805
      %v807 = vrot.slane %v802, %v806
      %v809 = vmul.f32 %v786, %v807
      %v810 = vmul.f32 %v787, %v807
      %v811 = vmul.f32 %v788, %v807
      %v812 = vmul.f32 %v789, %v807
      %v813 = vmul.f32 %v790, %v807
      %v814 = vmul.f32 %v791, %v807
      %v815 = vmul.f32 %v792, %v807
      %v816 = vmul.f32 %v793, %v807
      %v817 = vmul.f32 %v794, %v807
      %v818 = vmul.f32 %v795, %v807
      %v819 = vmul.f32 %v796, %v807
      %v820 = vmul.f32 %v797, %v807
      %v821 = vmul.f32 %v798, %v807
      %v822 = vmul.f32 %v799, %v807
      %v823 = vmul.f32 %v800, %v807
      %v824 = vmul.f32 %v801, %v807
      %825 = vadd.xlane.f32.xlu0 %v809
      %v826 = vpop.xlane.xlu0 %825
      %827 = vadd.xlane.f32.xlu0 %v810
      %v828 = vpop.xlane.xlu0 %827
      %829 = vadd.xlane.f32.xlu0 %v811
      %v830 = vpop.xlane.xlu0 %829
      %831 = vadd.xlane.f32.xlu0 %v812
      %v832 = vpop.xlane.xlu0 %831
      %833 = vadd.xlane.f32.xlu0 %v813
      %v834 = vpop.xlane.xlu0 %833
      %835 = vadd.xlane.f32.xlu0 %v814
      %v836 = vpop.xlane.xlu0 %835
      %837 = vadd.xlane.f32.xlu0 %v815
      %v838 = vpop.xlane.xlu0 %837
      %839 = vadd.xlane.f32.xlu0 %v816
      %v840 = vpop.xlane.xlu0 %839
      %841 = vadd.xlane.f32.xlu0 %v817
      %v842 = vpop.xlane.xlu0 %841
      %843 = vadd.xlane.f32.xlu0 %v818
      %v844 = vpop.xlane.xlu0 %843
      %845 = vadd.xlane.f32.xlu0 %v819
      %v846 = vpop.xlane.xlu0 %845
      %847 = vadd.xlane.f32.xlu0 %v820
      %v848 = vpop.xlane.xlu0 %847
      %849 = vadd.xlane.f32.xlu0 %v821
      %v850 = vpop.xlane.xlu0 %849
      %851 = vadd.xlane.f32.xlu0 %v822
      %v852 = vpop.xlane.xlu0 %851
      %853 = vadd.xlane.f32.xlu0 %v823
      %v854 = vpop.xlane.xlu0 %853
      %855 = vadd.xlane.f32.xlu0 %v824
      %v856 = vpop.xlane.xlu0 %855
      %v857 = vld [vmem:[#allocation4] sm:$0x1]
      %v859 = vlaneseq
      %v860 = vshrl.u32 %v859, 7
      %v861 = vsub.s32 0, %v860
      %v862 = vrot.slane %v857, %v861
      %863 = vset.pattern.permute.xlu0 0
      %864 = vperm.xlu0 %863, %v862
      %v865 = vpop.permute.xlu0 %864
      %v867 = vadd.f32 %v826, %v865
      %v868 = vadd.f32 %v828, %v865
      %v869 = vadd.f32 %v830, %v865
      %v870 = vadd.f32 %v832, %v865
      %v871 = vadd.f32 %v834, %v865
      %v872 = vadd.f32 %v836, %v865
      %v873 = vadd.f32 %v838, %v865
      %v874 = vadd.f32 %v840, %v865
      %v875 = vadd.f32 %v842, %v865
      %v876 = vadd.f32 %v844, %v865
      %v877 = vadd.f32 %v846, %v865
      %v878 = vadd.f32 %v848, %v865
      %v879 = vadd.f32 %v850, %v865
      %v880 = vadd.f32 %v852, %v865
      %v881 = vadd.f32 %v854, %v865
      %v882 = vadd.f32 %v856, %v865
      %v899 = vlaneseq
      %v900 = vand.u32 %v899, 127
      %v901 = vlaneseq
      %v902 = vshrl.u32 %v901, 7
      %v903 = vsub.s32 %v900, %v902
      %v904 = vrot.slane %v867, %v903
      %v905 = vadd.s32 %v900, 4294967288
      %v906 = vlaneseq
      %v907 = vshrl.u32 %v906, 7
      %v908 = vsub.s32 %v905, %v907
      %v909 = vrot.slane %v868, %v908
      %vm910 = vcmask 130112
      %v911 = vsel %vm910, %v909, %v904
      %v912 = vlaneseq
      %v913 = vshrl.u32 %v912, 7
      %v914 = vsub.s32 %v900, %v913
      %v915 = vrot.slane %v869, %v914
      %v916 = vlaneseq
      %v917 = vshrl.u32 %v916, 7
      %v918 = vsub.s32 %v905, %v917
      %v919 = vrot.slane %v870, %v918
      %v920 = vsel %vm910, %v919, %v915
      %v921 = vlaneseq
      %v922 = vshrl.u32 %v921, 7
      %v923 = vsub.s32 %v900, %v922
      %v924 = vrot.slane %v871, %v923
      %v925 = vlaneseq
      %v926 = vshrl.u32 %v925, 7
      %v927 = vsub.s32 %v905, %v926
      %v928 = vrot.slane %v872, %v927
      %v929 = vsel %vm910, %v928, %v924
      %v930 = vlaneseq
      %v931 = vshrl.u32 %v930, 7
      %v932 = vsub.s32 %v900, %v931
      %v933 = vrot.slane %v873, %v932
      %v934 = vlaneseq
      %v935 = vshrl.u32 %v934, 7
      %v936 = vsub.s32 %v905, %v935
      %v937 = vrot.slane %v874, %v936
      %v938 = vsel %vm910, %v937, %v933
      %v939 = vlaneseq
      %v940 = vshrl.u32 %v939, 7
      %v941 = vsub.s32 %v900, %v940
      %v942 = vrot.slane %v875, %v941
      %v943 = vlaneseq
      %v944 = vshrl.u32 %v943, 7
      %v945 = vsub.s32 %v905, %v944
      %v946 = vrot.slane %v876, %v945
      %v947 = vsel %vm910, %v946, %v942
      %v948 = vlaneseq
      %v949 = vshrl.u32 %v948, 7
      %v950 = vsub.s32 %v900, %v949
      %v951 = vrot.slane %v877, %v950
      %v952 = vlaneseq
      %v953 = vshrl.u32 %v952, 7
      %v954 = vsub.s32 %v905, %v953
      %v955 = vrot.slane %v878, %v954
      %v956 = vsel %vm910, %v955, %v951
      %v957 = vlaneseq
      %v958 = vshrl.u32 %v957, 7
      %v959 = vsub.s32 %v900, %v958
      %v960 = vrot.slane %v879, %v959
      %v961 = vlaneseq
      %v962 = vshrl.u32 %v961, 7
      %v963 = vsub.s32 %v905, %v962
      %v964 = vrot.slane %v880, %v963
      %v965 = vsel %vm910, %v964, %v960
      %v966 = vlaneseq
      %v967 = vshrl.u32 %v966, 7
      %v968 = vsub.s32 %v900, %v967
      %v969 = vrot.slane %v881, %v968
      %v970 = vlaneseq
      %v971 = vshrl.u32 %v970, 7
      %v972 = vsub.s32 %v905, %v971
      %v973 = vrot.slane %v882, %v972
      %v974 = vsel %vm910, %v973, %v969
      %vm975 = vcmask 1041409
      %v976 = vsel %vm975, %v920, %v911
      %vm977 = vcmask 1042434
      %v978 = vsel %vm977, %v929, %v976
      %vm979 = vcmask 1043459
      %v980 = vsel %vm979, %v938, %v978
      %vm981 = vcmask 1044484
      %v982 = vsel %vm981, %v947, %v980
      %vm983 = vcmask 1045509
      %v984 = vsel %vm983, %v956, %v982
      %vm985 = vcmask 1046534
      %v986 = vsel %vm985, %v965, %v984
      %vm987 = vcmask 1047559
      %v988 = vsel %vm987, %v974, %v986
      %vm990 = vcmask 130048
      %v991 = vsel %vm990, %v988, -inf
      %992 = vmax.xlane.f32.xlu0 %v991
      %v993 = vpop.xlane.xlu0 %992
      %v995 = vlaneseq
      %v996 = vshrl.u32 %v995, 7
      %v997 = vsub.s32 0, %v996
      %v998 = vrot.slane %v993, %v997
      %v999 = vlaneseq
      %v1000 = vshrl.u32 %v999, 7
      %v1001 = vsub.s32 1, %v1000
      %v1002 = vrot.slane %v993, %v1001
      %v1003 = vlaneseq
      %v1004 = vshrl.u32 %v1003, 7
      %v1005 = vsub.s32 2, %v1004
      %v1006 = vrot.slane %v993, %v1005
      %v1007 = vlaneseq
      %v1008 = vshrl.u32 %v1007, 7
      %v1009 = vsub.s32 3, %v1008
      %v1010 = vrot.slane %v993, %v1009
      %v1011 = vlaneseq
      %v1012 = vshrl.u32 %v1011, 7
      %v1013 = vsub.s32 4, %v1012
      %v1014 = vrot.slane %v993, %v1013
      %v1015 = vlaneseq
      %v1016 = vshrl.u32 %v1015, 7
      %v1017 = vsub.s32 5, %v1016
      %v1018 = vrot.slane %v993, %v1017
      %v1019 = vlaneseq
      %v1020 = vshrl.u32 %v1019, 7
      %v1021 = vsub.s32 6, %v1020
      %v1022 = vrot.slane %v993, %v1021
      %v1023 = vlaneseq
      %v1024 = vshrl.u32 %v1023, 7
      %v1025 = vsub.s32 7, %v1024
      %v1026 = vrot.slane %v993, %v1025
      %v1035 = vsub.f32 %v867, %v998
      %v1036 = vsub.f32 %v868, %v998
      %v1037 = vsub.f32 %v869, %v1002
      %v1038 = vsub.f32 %v870, %v1002
      %v1039 = vsub.f32 %v871, %v1006
      %v1040 = vsub.f32 %v872, %v1006
      %v1041 = vsub.f32 %v873, %v1010
      %v1042 = vsub.f32 %v874, %v1010
      %v1043 = vsub.f32 %v875, %v1014
      %v1044 = vsub.f32 %v876, %v1014
      %v1045 = vsub.f32 %v877, %v1018
      %v1046 = vsub.f32 %v878, %v1018
      %v1047 = vsub.f32 %v879, %v1022
      %v1048 = vsub.f32 %v880, %v1022
      %v1049 = vsub.f32 %v881, %v1026
      %v1050 = vsub.f32 %v882, %v1026
      %v1051 = vmul.f32 %v1035, 1.442695
      %v1052 = vpow.pop %v1051
      %v1053 = vmul.f32 %v1036, 1.442695
      %v1054 = vpow.pop %v1053
      %v1055 = vmul.f32 %v1037, 1.442695
      %v1056 = vpow.pop %v1055
      %v1057 = vmul.f32 %v1038, 1.442695
      %v1058 = vpow.pop %v1057
      %v1059 = vmul.f32 %v1039, 1.442695
      %v1060 = vpow.pop %v1059
      %v1061 = vmul.f32 %v1040, 1.442695
      %v1062 = vpow.pop %v1061
      %v1063 = vmul.f32 %v1041, 1.442695
      %v1064 = vpow.pop %v1063
      %v1065 = vmul.f32 %v1042, 1.442695
      %v1066 = vpow.pop %v1065
      %v1067 = vmul.f32 %v1043, 1.442695
      %v1068 = vpow.pop %v1067
      %v1069 = vmul.f32 %v1044, 1.442695
      %v1070 = vpow.pop %v1069
      %v1071 = vmul.f32 %v1045, 1.442695
      %v1072 = vpow.pop %v1071
      %v1073 = vmul.f32 %v1046, 1.442695
      %v1074 = vpow.pop %v1073
      %v1075 = vmul.f32 %v1047, 1.442695
      %v1076 = vpow.pop %v1075
      %v1077 = vmul.f32 %v1048, 1.442695
      %v1078 = vpow.pop %v1077
      %v1079 = vmul.f32 %v1049, 1.442695
      %v1080 = vpow.pop %v1079
      %v1081 = vmul.f32 %v1050, 1.442695
      %v1082 = vpow.pop %v1081
      %1099 = vset.pattern.permute.xlu0 0
      %1100 = vperm.xlu0 %1099, %v1052
      %v1101 = vpop.permute.xlu0 %1100
      %1102 = vset.pattern.permute.xlu0 0
      %1103 = vperm.xlu0 %1102, %v1054
      %v1104 = vpop.permute.xlu0 %1103
      %1105 = vset.pattern.permute.xlu0 0
      %1106 = vperm.xlu0 %1105, %v1056
      %v1107 = vpop.permute.xlu0 %1106
      %1108 = vset.pattern.permute.xlu0 0
      %1109 = vperm.xlu0 %1108, %v1058
      %v1110 = vpop.permute.xlu0 %1109
      %1111 = vset.pattern.permute.xlu0 0
      %1112 = vperm.xlu0 %1111, %v1060
      %v1113 = vpop.permute.xlu0 %1112
      %1114 = vset.pattern.permute.xlu0 0
      %1115 = vperm.xlu0 %1114, %v1062
      %v1116 = vpop.permute.xlu0 %1115
      %1117 = vset.pattern.permute.xlu0 0
      %1118 = vperm.xlu0 %1117, %v1064
      %v1119 = vpop.permute.xlu0 %1118
      %1120 = vset.pattern.permute.xlu0 0
      %1121 = vperm.xlu0 %1120, %v1066
      %v1122 = vpop.permute.xlu0 %1121
      %1123 = vset.pattern.permute.xlu0 0
      %1124 = vperm.xlu0 %1123, %v1068
      %v1125 = vpop.permute.xlu0 %1124
      %1126 = vset.pattern.permute.xlu0 0
      %1127 = vperm.xlu0 %1126, %v1070
      %v1128 = vpop.permute.xlu0 %1127
      %1129 = vset.pattern.permute.xlu0 0
      %1130 = vperm.xlu0 %1129, %v1072
      %v1131 = vpop.permute.xlu0 %1130
      %1132 = vset.pattern.permute.xlu0 0
      %1133 = vperm.xlu0 %1132, %v1074
      %v1134 = vpop.permute.xlu0 %1133
      %1135 = vset.pattern.permute.xlu0 0
      %1136 = vperm.xlu0 %1135, %v1076
      %v1137 = vpop.permute.xlu0 %1136
      %1138 = vset.pattern.permute.xlu0 0
      %1139 = vperm.xlu0 %1138, %v1078
      %v1140 = vpop.permute.xlu0 %1139
      %1141 = vset.pattern.permute.xlu0 0
      %1142 = vperm.xlu0 %1141, %v1080
      %v1143 = vpop.permute.xlu0 %1142
      %1144 = vset.pattern.permute.xlu0 0
      %1145 = vperm.xlu0 %1144, %v1082
      %v1146 = vpop.permute.xlu0 %1145
      %v1147 = vlaneseq
      %v1148 = vshrl.u32 %v1147, 7
      %v1149 = vsub.s32 %v900, %v1148
      %v1150 = vrot.slane %v1101, %v1149
      %v1151 = vlaneseq
      %v1152 = vshrl.u32 %v1151, 7
      %v1153 = vsub.s32 %v905, %v1152
      %v1154 = vrot.slane %v1104, %v1153
      %v1155 = vsel %vm910, %v1154, %v1150
      %v1156 = vlaneseq
      %v1157 = vshrl.u32 %v1156, 7
      %v1158 = vsub.s32 %v900, %v1157
      %v1159 = vrot.slane %v1107, %v1158
      %v1160 = vlaneseq
      %v1161 = vshrl.u32 %v1160, 7
      %v1162 = vsub.s32 %v905, %v1161
      %v1163 = vrot.slane %v1110, %v1162
      %v1164 = vsel %vm910, %v1163, %v1159
      %v1165 = vlaneseq
      %v1166 = vshrl.u32 %v1165, 7
      %v1167 = vsub.s32 %v900, %v1166
      %v1168 = vrot.slane %v1113, %v1167
      %v1169 = vlaneseq
      %v1170 = vshrl.u32 %v1169, 7
      %v1171 = vsub.s32 %v905, %v1170
      %v1172 = vrot.slane %v1116, %v1171
      %v1173 = vsel %vm910, %v1172, %v1168
      %v1174 = vlaneseq
      %v1175 = vshrl.u32 %v1174, 7
      %v1176 = vsub.s32 %v900, %v1175
      %v1177 = vrot.slane %v1119, %v1176
      %v1178 = vlaneseq
      %v1179 = vshrl.u32 %v1178, 7
      %v1180 = vsub.s32 %v905, %v1179
      %v1181 = vrot.slane %v1122, %v1180
      %v1182 = vsel %vm910, %v1181, %v1177
      %v1183 = vlaneseq
      %v1184 = vshrl.u32 %v1183, 7
      %v1185 = vsub.s32 %v900, %v1184
      %v1186 = vrot.slane %v1125, %v1185
      %v1187 = vlaneseq
      %v1188 = vshrl.u32 %v1187, 7
      %v1189 = vsub.s32 %v905, %v1188
      %v1190 = vrot.slane %v1128, %v1189
      %v1191 = vsel %vm910, %v1190, %v1186
      %v1192 = vlaneseq
      %v1193 = vshrl.u32 %v1192, 7
      %v1194 = vsub.s32 %v900, %v1193
      %v1195 = vrot.slane %v1131, %v1194
      %v1196 = vlaneseq
      %v1197 = vshrl.u32 %v1196, 7
      %v1198 = vsub.s32 %v905, %v1197
      %v1199 = vrot.slane %v1134, %v1198
      %v1200 = vsel %vm910, %v1199, %v1195
      %v1201 = vlaneseq
      %v1202 = vshrl.u32 %v1201, 7
      %v1203 = vsub.s32 %v900, %v1202
      %v1204 = vrot.slane %v1137, %v1203
      %v1205 = vlaneseq
      %v1206 = vshrl.u32 %v1205, 7
      %v1207 = vsub.s32 %v905, %v1206
      %v1208 = vrot.slane %v1140, %v1207
      %v1209 = vsel %vm910, %v1208, %v1204
      %v1210 = vlaneseq
      %v1211 = vshrl.u32 %v1210, 7
      %v1212 = vsub.s32 %v900, %v1211
      %v1213 = vrot.slane %v1143, %v1212
      %v1214 = vlaneseq
      %v1215 = vshrl.u32 %v1214, 7
      %v1216 = vsub.s32 %v905, %v1215
      %v1217 = vrot.slane %v1146, %v1216
      %v1218 = vsel %vm910, %v1217, %v1213
      %v1219 = vsel %vm975, %v1164, %v1155
      %v1220 = vsel %vm977, %v1173, %v1219
      %v1221 = vsel %vm979, %v1182, %v1220
      %v1222 = vsel %vm981, %v1191, %v1221
      %v1223 = vsel %vm983, %v1200, %v1222
      %v1224 = vsel %vm985, %v1209, %v1223
      %v1225 = vsel %vm987, %v1218, %v1224
      %v1227 = vsel %vm990, %v1225, 0.0
      %1228 = vadd.xlane.f32.xlu0 %v1227
      %v1229 = vpop.xlane.xlu0 %1228
      %v1231 = vlaneseq
      %v1232 = vshrl.u32 %v1231, 7
      %v1233 = vsub.s32 0, %v1232
      %v1234 = vrot.slane %v1229, %v1233
      %v1235 = vlaneseq
      %v1236 = vshrl.u32 %v1235, 7
      %v1237 = vsub.s32 1, %v1236
      %v1238 = vrot.slane %v1229, %v1237
      %v1239 = vlaneseq
      %v1240 = vshrl.u32 %v1239, 7
      %v1241 = vsub.s32 2, %v1240
      %v1242 = vrot.slane %v1229, %v1241
      %v1243 = vlaneseq
      %v1244 = vshrl.u32 %v1243, 7
      %v1245 = vsub.s32 3, %v1244
      %v1246 = vrot.slane %v1229, %v1245
      %v1247 = vlaneseq
      %v1248 = vshrl.u32 %v1247, 7
      %v1249 = vsub.s32 4, %v1248
      %v1250 = vrot.slane %v1229, %v1249
      %v1251 = vlaneseq
      %v1252 = vshrl.u32 %v1251, 7
      %v1253 = vsub.s32 5, %v1252
      %v1254 = vrot.slane %v1229, %v1253
      %v1255 = vlaneseq
      %v1256 = vshrl.u32 %v1255, 7
      %v1257 = vsub.s32 6, %v1256
      %v1258 = vrot.slane %v1229, %v1257
      %v1259 = vlaneseq
      %v1260 = vshrl.u32 %v1259, 7
      %v1261 = vsub.s32 7, %v1260
      %v1262 = vrot.slane %v1229, %v1261
      %v1271 = vrcp.pop %v1234
      %v1272 = vmul.f32 %v1052, %v1271
      %v1273 = vmul.f32 %v1054, %v1271
      %v1274 = vrcp.pop %v1238
      %v1275 = vmul.f32 %v1056, %v1274
      %v1276 = vmul.f32 %v1058, %v1274
      %v1277 = vrcp.pop %v1242
      %v1278 = vmul.f32 %v1060, %v1277
      %v1279 = vmul.f32 %v1062, %v1277
      %v1280 = vrcp.pop %v1246
      %v1281 = vmul.f32 %v1064, %v1280
      %v1282 = vmul.f32 %v1066, %v1280
      %v1283 = vrcp.pop %v1250
      %v1284 = vmul.f32 %v1068, %v1283
      %v1285 = vmul.f32 %v1070, %v1283
      %v1286 = vrcp.pop %v1254
      %v1287 = vmul.f32 %v1072, %v1286
      %v1288 = vmul.f32 %v1074, %v1286
      %v1289 = vrcp.pop %v1258
      %v1290 = vmul.f32 %v1076, %v1289
      %v1291 = vmul.f32 %v1078, %v1289
      %v1292 = vrcp.pop %v1262
      %v1293 = vmul.f32 %v1080, %v1292
      %v1294 = vmul.f32 %v1082, %v1292
      %v1295 = vpack.c.bf16 %v1273, %v1272
      %v1296 = vpack.c.bf16 %v1276, %v1275
      %v1297 = vpack.c.bf16 %v1279, %v1278
      %v1298 = vpack.c.bf16 %v1282, %v1281
      %v1299 = vpack.c.bf16 %v1285, %v1284
      %v1300 = vpack.c.bf16 %v1288, %v1287
      %v1301 = vpack.c.bf16 %v1291, %v1290
      %v1302 = vpack.c.bf16 %v1294, %v1293
      %v1304 = vunpack.c.l.b16 %v1295
      %v1305 = vunpack.c.h.b16 %v1295
      %1306 = vset.pattern.permute.xlu0 0
      %1307 = vperm.xlu0 %1306, %v1304
      %v1308 = vpop.permute.xlu0 %1307
      %1309 = vset.pattern.permute.xlu0 0
      %1310 = vperm.xlu0 %1309, %v1305
      %v1311 = vpop.permute.xlu0 %1310
      %v1312 = vlaneseq
      %v1313 = vshrl.u32 %v1312, 7
      %v1314 = vsub.s32 %v900, %v1313
      %v1315 = vrot.slane %v1308, %v1314
      %v1316 = vlaneseq
      %v1317 = vshrl.u32 %v1316, 7
      %v1318 = vsub.s32 %v905, %v1317
      %v1319 = vrot.slane %v1311, %v1318
      %v1320 = vsel %vm910, %v1319, %v1315
      %v1321 = vpack.c.b16 %v1320, %v1320
      %v1324 = vunpack.c.l.b16 %v521
      %v1325 = vunpack.c.l.b16 %v522
      %v1326 = vpack.c.b16 %v1325, %v1324
      %v1329 = vsel %vm990, %v1321, 0
      %1331 = vmatprep.subr.bf16.mxu0 0
      %1332 = vmatpush1.bf16.msra.mxu0 %v1326
      %1333 = vmatprep.subr.bf16.mxu0 0
      %1334 = vmatpush1.bf16.msra.mxu0 0
      %1335 = vmatprep.subr.bf16.mxu0 0
      %1336 = vmatpush1.bf16.msra.mxu0 0
      %1337 = vmatprep.subr.bf16.mxu0 0
      %1338 = vmatpush1.bf16.msra.mxu0 0
      %1339 = vmatprep.subr.bf16.mxu0 0
      %1340 = vmatpush1.bf16.msra.mxu0 0
      %1341 = vmatprep.subr.bf16.mxu0 0
      %1342 = vmatpush1.bf16.msra.mxu0 0
      %1343 = vmatprep.subr.bf16.mxu0 0
      %1344 = vmatpush1.bf16.msra.mxu0 0
      %1345 = vmatprep.subr.bf16.mxu0 0
      %1346 = vmatpush1.bf16.msra.mxu0 0
      %1347 = vmatprep.subr.bf16.mxu0 0
      %1348 = vmatpush1.bf16.msra.mxu0 0
      %1349 = vmatprep.subr.bf16.mxu0 0
      %1350 = vmatpush1.bf16.msra.mxu0 0
      %1351 = vmatprep.subr.bf16.mxu0 0
      %1352 = vmatpush1.bf16.msra.mxu0 0
      %1353 = vmatprep.subr.bf16.mxu0 0
      %1354 = vmatpush1.bf16.msra.mxu0 0
      %1355 = vmatprep.subr.bf16.mxu0 0
      %1356 = vmatpush1.bf16.msra.mxu0 0
      %1357 = vmatprep.subr.bf16.mxu0 0
      %1358 = vmatpush1.bf16.msra.mxu0 0
      %1359 = vmatprep.subr.bf16.mxu0 0
      %1360 = vmatpush1.bf16.msra.mxu0 0
      %1361 = vmatprep.subr.bf16.mxu0 0
      %1362 = vmatpush1.bf16.msra.mxu0 0
      %1363 = vmatprep.mubr.bf16.mxu0 0
      %1364 = vmatmul.mubr.bf16.gmra.mrb[0].mxu0 %v1329
      %v1365 = vpop.f32.mrb[0].mxu0
      %v1366 = vadd.f32 0.0, %v1365
      %v1367 = vpop.f32.mrb[0].mxu0
      %v1368 = vpop.f32.mrb[0].mxu0
      %v1369 = vpop.f32.mrb[0].mxu0
      %1370 = vdwg.mxu0
      %v1372 = vunpack.c.l.b16 %v1296
      %v1373 = vunpack.c.h.b16 %v1296
      %1374 = vset.pattern.permute.xlu0 0
      %1375 = vperm.xlu0 %1374, %v1372
      %v1376 = vpop.permute.xlu0 %1375
      %1377 = vset.pattern.permute.xlu0 0
      %1378 = vperm.xlu0 %1377, %v1373
      %v1379 = vpop.permute.xlu0 %1378
      %v1380 = vlaneseq
      %v1381 = vshrl.u32 %v1380, 7
      %v1382 = vsub.s32 %v900, %v1381
      %v1383 = vrot.slane %v1376, %v1382
      %v1384 = vlaneseq
      %v1385 = vshrl.u32 %v1384, 7
      %v1386 = vsub.s32 %v905, %v1385
      %v1387 = vrot.slane %v1379, %v1386
      %v1388 = vsel %vm910, %v1387, %v1383
      %v1389 = vpack.c.b16 %v1388, %v1388
      %v1392 = vunpack.c.l.b16 %v523
      %v1393 = vunpack.c.l.b16 %v524
      %v1394 = vpack.c.b16 %v1393, %v1392
      %v1397 = vsel %vm990, %v1389, 0
      %1399 = vmatprep.subr.bf16.mxu0 0
      %1400 = vmatpush1.bf16.msra.mxu0 %v1394
      %1401 = vmatprep.subr.bf16.mxu0 0
      %1402 = vmatpush1.bf16.msra.mxu0 0
      %1403 = vmatprep.subr.bf16.mxu0 0
      %1404 = vmatpush1.bf16.msra.mxu0 0
      %1405 = vmatprep.subr.bf16.mxu0 0
      %1406 = vmatpush1.bf16.msra.mxu0 0
      %1407 = vmatprep.subr.bf16.mxu0 0
      %1408 = vmatpush1.bf16.msra.mxu0 0
      %1409 = vmatprep.subr.bf16.mxu0 0
      %1410 = vmatpush1.bf16.msra.mxu0 0
      %1411 = vmatprep.subr.bf16.mxu0 0
      %1412 = vmatpush1.bf16.msra.mxu0 0
      %1413 = vmatprep.subr.bf16.mxu0 0
      %1414 = vmatpush1.bf16.msra.mxu0 0
      %1415 = vmatprep.subr.bf16.mxu0 0
      %1416 = vmatpush1.bf16.msra.mxu0 0
      %1417 = vmatprep.subr.bf16.mxu0 0
      %1418 = vmatpush1.bf16.msra.mxu0 0
      %1419 = vmatprep.subr.bf16.mxu0 0
      %1420 = vmatpush1.bf16.msra.mxu0 0
      %1421 = vmatprep.subr.bf16.mxu0 0
      %1422 = vmatpush1.bf16.msra.mxu0 0
      %1423 = vmatprep.subr.bf16.mxu0 0
      %1424 = vmatpush1.bf16.msra.mxu0 0
      %1425 = vmatprep.subr.bf16.mxu0 0
      %1426 = vmatpush1.bf16.msra.mxu0 0
      %1427 = vmatprep.subr.bf16.mxu0 0
      %1428 = vmatpush1.bf16.msra.mxu0 0
      %1429 = vmatprep.subr.bf16.mxu0 0
      %1430 = vmatpush1.bf16.msra.mxu0 0
      %1431 = vmatprep.mubr.bf16.mxu0 0
      %1432 = vmatmul.mubr.bf16.gmra.mrb[0].mxu0 %v1397
      %v1433 = vpop.f32.mrb[0].mxu0
      %v1434 = vadd.f32 0.0, %v1433
      %v1435 = vpop.f32.mrb[0].mxu0
      %v1436 = vpop.f32.mrb[0].mxu0
      %v1437 = vpop.f32.mrb[0].mxu0
      %1438 = vdwg.mxu0
      %v1440 = vunpack.c.l.b16 %v1297
      %v1441 = vunpack.c.h.b16 %v1297
      %1442 = vset.pattern.permute.xlu0 0
      %1443 = vperm.xlu0 %1442, %v1440
      %v1444 = vpop.permute.xlu0 %1443
      %1445 = vset.pattern.permute.xlu0 0
      %1446 = vperm.xlu0 %1445, %v1441
      %v1447 = vpop.permute.xlu0 %1446
      %v1448 = vlaneseq
      %v1449 = vshrl.u32 %v1448, 7
      %v1450 = vsub.s32 %v900, %v1449
      %v1451 = vrot.slane %v1444, %v1450
      %v1452 = vlaneseq
      %v1453 = vshrl.u32 %v1452, 7
      %v1454 = vsub.s32 %v905, %v1453
      %v1455 = vrot.slane %v1447, %v1454
      %v1456 = vsel %vm910, %v1455, %v1451
      %v1457 = vpack.c.b16 %v1456, %v1456
      %v1460 = vunpack.c.l.b16 %v525
      %v1461 = vunpack.c.l.b16 %v526
      %v1462 = vpack.c.b16 %v1461, %v1460
      %v1465 = vsel %vm990, %v1457, 0
      %1467 = vmatprep.subr.bf16.mxu0 0
      %1468 = vmatpush1.bf16.msra.mxu0 %v1462
      %1469 = vmatprep.subr.bf16.mxu0 0
      %1470 = vmatpush1.bf16.msra.mxu0 0
      %1471 = vmatprep.subr.bf16.mxu0 0
      %1472 = vmatpush1.bf16.msra.mxu0 0
      %1473 = vmatprep.subr.bf16.mxu0 0
      %1474 = vmatpush1.bf16.msra.mxu0 0
      %1475 = vmatprep.subr.bf16.mxu0 0
      %1476 = vmatpush1.bf16.msra.mxu0 0
      %1477 = vmatprep.subr.bf16.mxu0 0
      %1478 = vmatpush1.bf16.msra.mxu0 0
      %1479 = vmatprep.subr.bf16.mxu0 0
      %1480 = vmatpush1.bf16.msra.mxu0 0
      %1481 = vmatprep.subr.bf16.mxu0 0
      %1482 = vmatpush1.bf16.msra.mxu0 0
      %1483 = vmatprep.subr.bf16.mxu0 0
      %1484 = vmatpush1.bf16.msra.mxu0 0
      %1485 = vmatprep.subr.bf16.mxu0 0
      %1486 = vmatpush1.bf16.msra.mxu0 0
      %1487 = vmatprep.subr.bf16.mxu0 0
      %1488 = vmatpush1.bf16.msra.mxu0 0
      %1489 = vmatprep.subr.bf16.mxu0 0
      %1490 = vmatpush1.bf16.msra.mxu0 0
      %1491 = vmatprep.subr.bf16.mxu0 0
      %1492 = vmatpush1.bf16.msra.mxu0 0
      %1493 = vmatprep.subr.bf16.mxu0 0
      %1494 = vmatpush1.bf16.msra.mxu0 0
      %1495 = vmatprep.subr.bf16.mxu0 0
      %1496 = vmatpush1.bf16.msra.mxu0 0
      %1497 = vmatprep.subr.bf16.mxu0 0
      %1498 = vmatpush1.bf16.msra.mxu0 0
      %1499 = vmatprep.mubr.bf16.mxu0 0
      %1500 = vmatmul.mubr.bf16.gmra.mrb[0].mxu0 %v1465
      %v1501 = vpop.f32.mrb[0].mxu0
      %v1502 = vadd.f32 0.0, %v1501
      %v1503 = vpop.f32.mrb[0].mxu0
      %v1504 = vpop.f32.mrb[0].mxu0
      %v1505 = vpop.f32.mrb[0].mxu0
      %1506 = vdwg.mxu0
      %v1508 = vunpack.c.l.b16 %v1298
      %v1509 = vunpack.c.h.b16 %v1298
      %1510 = vset.pattern.permute.xlu0 0
      %1511 = vperm.xlu0 %1510, %v1508
      %v1512 = vpop.permute.xlu0 %1511
      %1513 = vset.pattern.permute.xlu0 0
      %1514 = vperm.xlu0 %1513, %v1509
      %v1515 = vpop.permute.xlu0 %1514
      %v1516 = vlaneseq
      %v1517 = vshrl.u32 %v1516, 7
      %v1518 = vsub.s32 %v900, %v1517
      %v1519 = vrot.slane %v1512, %v1518
      %v1520 = vlaneseq
      %v1521 = vshrl.u32 %v1520, 7
      %v1522 = vsub.s32 %v905, %v1521
      %v1523 = vrot.slane %v1515, %v1522
      %v1524 = vsel %vm910, %v1523, %v1519
      %v1525 = vpack.c.b16 %v1524, %v1524
      %v1528 = vunpack.c.l.b16 %v527
      %v1529 = vunpack.c.l.b16 %v528
      %v1530 = vpack.c.b16 %v1529, %v1528
      %v1533 = vsel %vm990, %v1525, 0
      %1535 = vmatprep.subr.bf16.mxu0 0
      %1536 = vmatpush1.bf16.msra.mxu0 %v1530
      %1537 = vmatprep.subr.bf16.mxu0 0
      %1538 = vmatpush1.bf16.msra.mxu0 0
      %1539 = vmatprep.subr.bf16.mxu0 0
      %1540 = vmatpush1.bf16.msra.mxu0 0
      %1541 = vmatprep.subr.bf16.mxu0 0
      %1542 = vmatpush1.bf16.msra.mxu0 0
      %1543 = vmatprep.subr.bf16.mxu0 0
      %1544 = vmatpush1.bf16.msra.mxu0 0
      %1545 = vmatprep.subr.bf16.mxu0 0
      %1546 = vmatpush1.bf16.msra.mxu0 0
      %1547 = vmatprep.subr.bf16.mxu0 0
      %1548 = vmatpush1.bf16.msra.mxu0 0
      %1549 = vmatprep.subr.bf16.mxu0 0
      %1550 = vmatpush1.bf16.msra.mxu0 0
      %1551 = vmatprep.subr.bf16.mxu0 0
      %1552 = vmatpush1.bf16.msra.mxu0 0
      %1553 = vmatprep.subr.bf16.mxu0 0
      %1554 = vmatpush1.bf16.msra.mxu0 0
      %1555 = vmatprep.subr.bf16.mxu0 0
      %1556 = vmatpush1.bf16.msra.mxu0 0
      %1557 = vmatprep.subr.bf16.mxu0 0
      %1558 = vmatpush1.bf16.msra.mxu0 0
      %1559 = vmatprep.subr.bf16.mxu0 0
      %1560 = vmatpush1.bf16.msra.mxu0 0
      %1561 = vmatprep.subr.bf16.mxu0 0
      %1562 = vmatpush1.bf16.msra.mxu0 0
      %1563 = vmatprep.subr.bf16.mxu0 0
      %1564 = vmatpush1.bf16.msra.mxu0 0
      %1565 = vmatprep.subr.bf16.mxu0 0
      %1566 = vmatpush1.bf16.msra.mxu0 0
      %1567 = vmatprep.mubr.bf16.mxu0 0
      %1568 = vmatmul.mubr.bf16.gmra.mrb[0].mxu0 %v1533
      %v1569 = vpop.f32.mrb[0].mxu0
      %v1570 = vadd.f32 0.0, %v1569
      %v1571 = vpop.f32.mrb[0].mxu0
      %v1572 = vpop.f32.mrb[0].mxu0
      %v1573 = vpop.f32.mrb[0].mxu0
      %1574 = vdwg.mxu0
      %v1576 = vunpack.c.l.b16 %v1299
      %v1577 = vunpack.c.h.b16 %v1299
      %1578 = vset.pattern.permute.xlu0 0
      %1579 = vperm.xlu0 %1578, %v1576
      %v1580 = vpop.permute.xlu0 %1579
      %1581 = vset.pattern.permute.xlu0 0
      %1582 = vperm.xlu0 %1581, %v1577
      %v1583 = vpop.permute.xlu0 %1582
      %v1584 = vlaneseq
      %v1585 = vshrl.u32 %v1584, 7
      %v1586 = vsub.s32 %v900, %v1585
      %v1587 = vrot.slane %v1580, %v1586
      %v1588 = vlaneseq
      %v1589 = vshrl.u32 %v1588, 7
      %v1590 = vsub.s32 %v905, %v1589
      %v1591 = vrot.slane %v1583, %v1590
      %v1592 = vsel %vm910, %v1591, %v1587
      %v1593 = vpack.c.b16 %v1592, %v1592
      %v1596 = vunpack.c.l.b16 %v529
      %v1597 = vunpack.c.l.b16 %v530
      %v1598 = vpack.c.b16 %v1597, %v1596
      %v1601 = vsel %vm990, %v1593, 0
      %1603 = vmatprep.subr.bf16.mxu0 0
      %1604 = vmatpush1.bf16.msra.mxu0 %v1598
      %1605 = vmatprep.subr.bf16.mxu0 0
      %1606 = vmatpush1.bf16.msra.mxu0 0
      %1607 = vmatprep.subr.bf16.mxu0 0
      %1608 = vmatpush1.bf16.msra.mxu0 0
      %1609 = vmatprep.subr.bf16.mxu0 0
      %1610 = vmatpush1.bf16.msra.mxu0 0
      %1611 = vmatprep.subr.bf16.mxu0 0
      %1612 = vmatpush1.bf16.msra.mxu0 0
      %1613 = vmatprep.subr.bf16.mxu0 0
      %1614 = vmatpush1.bf16.msra.mxu0 0
      %1615 = vmatprep.subr.bf16.mxu0 0
      %1616 = vmatpush1.bf16.msra.mxu0 0
      %1617 = vmatprep.subr.bf16.mxu0 0
      %1618 = vmatpush1.bf16.msra.mxu0 0
      %1619 = vmatprep.subr.bf16.mxu0 0
      %1620 = vmatpush1.bf16.msra.mxu0 0
      %1621 = vmatprep.subr.bf16.mxu0 0
      %1622 = vmatpush1.bf16.msra.mxu0 0
      %1623 = vmatprep.subr.bf16.mxu0 0
      %1624 = vmatpush1.bf16.msra.mxu0 0
      %1625 = vmatprep.subr.bf16.mxu0 0
      %1626 = vmatpush1.bf16.msra.mxu0 0
      %1627 = vmatprep.subr.bf16.mxu0 0
      %1628 = vmatpush1.bf16.msra.mxu0 0
      %1629 = vmatprep.subr.bf16.mxu0 0
      %1630 = vmatpush1.bf16.msra.mxu0 0
      %1631 = vmatprep.subr.bf16.mxu0 0
      %1632 = vmatpush1.bf16.msra.mxu0 0
      %1633 = vmatprep.subr.bf16.mxu0 0
      %1634 = vmatpush1.bf16.msra.mxu0 0
      %1635 = vmatprep.mubr.bf16.mxu0 0
      %1636 = vmatmul.mubr.bf16.gmra.mrb[0].mxu0 %v1601
      %v1637 = vpop.f32.mrb[0].mxu0
      %v1638 = vadd.f32 0.0, %v1637
      %v1639 = vpop.f32.mrb[0].mxu0
      %v1640 = vpop.f32.mrb[0].mxu0
      %v1641 = vpop.f32.mrb[0].mxu0
      %1642 = vdwg.mxu0
      %v1644 = vunpack.c.l.b16 %v1300
      %v1645 = vunpack.c.h.b16 %v1300
      %1646 = vset.pattern.permute.xlu0 0
      %1647 = vperm.xlu0 %1646, %v1644
      %v1648 = vpop.permute.xlu0 %1647
      %1649 = vset.pattern.permute.xlu0 0
      %1650 = vperm.xlu0 %1649, %v1645
      %v1651 = vpop.permute.xlu0 %1650
      %v1652 = vlaneseq
      %v1653 = vshrl.u32 %v1652, 7
      %v1654 = vsub.s32 %v900, %v1653
      %v1655 = vrot.slane %v1648, %v1654
      %v1656 = vlaneseq
      %v1657 = vshrl.u32 %v1656, 7
      %v1658 = vsub.s32 %v905, %v1657
      %v1659 = vrot.slane %v1651, %v1658
      %v1660 = vsel %vm910, %v1659, %v1655
      %v1661 = vpack.c.b16 %v1660, %v1660
      %v1664 = vunpack.c.l.b16 %v531
      %v1665 = vunpack.c.l.b16 %v532
      %v1666 = vpack.c.b16 %v1665, %v1664
      %v1669 = vsel %vm990, %v1661, 0
      %1671 = vmatprep.subr.bf16.mxu0 0
      %1672 = vmatpush1.bf16.msra.mxu0 %v1666
      %1673 = vmatprep.subr.bf16.mxu0 0
      %1674 = vmatpush1.bf16.msra.mxu0 0
      %1675 = vmatprep.subr.bf16.mxu0 0
      %1676 = vmatpush1.bf16.msra.mxu0 0
      %1677 = vmatprep.subr.bf16.mxu0 0
      %1678 = vmatpush1.bf16.msra.mxu0 0
      %1679 = vmatprep.subr.bf16.mxu0 0
      %1680 = vmatpush1.bf16.msra.mxu0 0
      %1681 = vmatprep.subr.bf16.mxu0 0
      %1682 = vmatpush1.bf16.msra.mxu0 0
      %1683 = vmatprep.subr.bf16.mxu0 0
      %1684 = vmatpush1.bf16.msra.mxu0 0
      %1685 = vmatprep.subr.bf16.mxu0 0
      %1686 = vmatpush1.bf16.msra.mxu0 0
      %1687 = vmatprep.subr.bf16.mxu0 0
      %1688 = vmatpush1.bf16.msra.mxu0 0
      %1689 = vmatprep.subr.bf16.mxu0 0
      %1690 = vmatpush1.bf16.msra.mxu0 0
      %1691 = vmatprep.subr.bf16.mxu0 0
      %1692 = vmatpush1.bf16.msra.mxu0 0
      %1693 = vmatprep.subr.bf16.mxu0 0
      %1694 = vmatpush1.bf16.msra.mxu0 0
      %1695 = vmatprep.subr.bf16.mxu0 0
      %1696 = vmatpush1.bf16.msra.mxu0 0
      %1697 = vmatprep.subr.bf16.mxu0 0
      %1698 = vmatpush1.bf16.msra.mxu0 0
      %1699 = vmatprep.subr.bf16.mxu0 0
      %1700 = vmatpush1.bf16.msra.mxu0 0
      %1701 = vmatprep.subr.bf16.mxu0 0
      %1702 = vmatpush1.bf16.msra.mxu0 0
      %1703 = vmatprep.mubr.bf16.mxu0 0
      %1704 = vmatmul.mubr.bf16.gmra.mrb[0].mxu0 %v1669
      %v1705 = vpop.f32.mrb[0].mxu0
      %v1706 = vadd.f32 0.0, %v1705
      %v1707 = vpop.f32.mrb[0].mxu0
      %v1708 = vpop.f32.mrb[0].mxu0
      %v1709 = vpop.f32.mrb[0].mxu0
      %1710 = vdwg.mxu0
      %v1712 = vunpack.c.l.b16 %v1301
      %v1713 = vunpack.c.h.b16 %v1301
      %1714 = vset.pattern.permute.xlu0 0
      %1715 = vperm.xlu0 %1714, %v1712
      %v1716 = vpop.permute.xlu0 %1715
      %1717 = vset.pattern.permute.xlu0 0
      %1718 = vperm.xlu0 %1717, %v1713
      %v1719 = vpop.permute.xlu0 %1718
      %v1720 = vlaneseq
      %v1721 = vshrl.u32 %v1720, 7
      %v1722 = vsub.s32 %v900, %v1721
      %v1723 = vrot.slane %v1716, %v1722
      %v1724 = vlaneseq
      %v1725 = vshrl.u32 %v1724, 7
      %v1726 = vsub.s32 %v905, %v1725
      %v1727 = vrot.slane %v1719, %v1726
      %v1728 = vsel %vm910, %v1727, %v1723
      %v1729 = vpack.c.b16 %v1728, %v1728
      %v1732 = vunpack.c.l.b16 %v533
      %v1733 = vunpack.c.l.b16 %v534
      %v1734 = vpack.c.b16 %v1733, %v1732
      %v1737 = vsel %vm990, %v1729, 0
      %1739 = vmatprep.subr.bf16.mxu0 0
      %1740 = vmatpush1.bf16.msra.mxu0 %v1734
      %1741 = vmatprep.subr.bf16.mxu0 0
      %1742 = vmatpush1.bf16.msra.mxu0 0
      %1743 = vmatprep.subr.bf16.mxu0 0
      %1744 = vmatpush1.bf16.msra.mxu0 0
      %1745 = vmatprep.subr.bf16.mxu0 0
      %1746 = vmatpush1.bf16.msra.mxu0 0
      %1747 = vmatprep.subr.bf16.mxu0 0
      %1748 = vmatpush1.bf16.msra.mxu0 0
      %1749 = vmatprep.subr.bf16.mxu0 0
      %1750 = vmatpush1.bf16.msra.mxu0 0
      %1751 = vmatprep.subr.bf16.mxu0 0
      %1752 = vmatpush1.bf16.msra.mxu0 0
      %1753 = vmatprep.subr.bf16.mxu0 0
      %1754 = vmatpush1.bf16.msra.mxu0 0
      %1755 = vmatprep.subr.bf16.mxu0 0
      %1756 = vmatpush1.bf16.msra.mxu0 0
      %1757 = vmatprep.subr.bf16.mxu0 0
      %1758 = vmatpush1.bf16.msra.mxu0 0
      %1759 = vmatprep.subr.bf16.mxu0 0
      %1760 = vmatpush1.bf16.msra.mxu0 0
      %1761 = vmatprep.subr.bf16.mxu0 0
      %1762 = vmatpush1.bf16.msra.mxu0 0
      %1763 = vmatprep.subr.bf16.mxu0 0
      %1764 = vmatpush1.bf16.msra.mxu0 0
      %1765 = vmatprep.subr.bf16.mxu0 0
      %1766 = vmatpush1.bf16.msra.mxu0 0
      %1767 = vmatprep.subr.bf16.mxu0 0
      %1768 = vmatpush1.bf16.msra.mxu0 0
      %1769 = vmatprep.subr.bf16.mxu0 0
      %1770 = vmatpush1.bf16.msra.mxu0 0
      %1771 = vmatprep.mubr.bf16.mxu0 0
      %1772 = vmatmul.mubr.bf16.gmra.mrb[0].mxu0 %v1737
      %v1773 = vpop.f32.mrb[0].mxu0
      %v1774 = vadd.f32 0.0, %v1773
      %v1775 = vpop.f32.mrb[0].mxu0
      %v1776 = vpop.f32.mrb[0].mxu0
      %v1777 = vpop.f32.mrb[0].mxu0
      %1778 = vdwg.mxu0
      %v1780 = vunpack.c.l.b16 %v1302
      %v1781 = vunpack.c.h.b16 %v1302
      %1782 = vset.pattern.permute.xlu0 0
      %1783 = vperm.xlu0 %1782, %v1780
      %v1784 = vpop.permute.xlu0 %1783
      %1785 = vset.pattern.permute.xlu0 0
      %1786 = vperm.xlu0 %1785, %v1781
      %v1787 = vpop.permute.xlu0 %1786
      %v1788 = vlaneseq
      %v1789 = vshrl.u32 %v1788, 7
      %v1790 = vsub.s32 %v900, %v1789
      %v1791 = vrot.slane %v1784, %v1790
      %v1792 = vlaneseq
      %v1793 = vshrl.u32 %v1792, 7
      %v1794 = vsub.s32 %v905, %v1793
      %v1795 = vrot.slane %v1787, %v1794
      %v1796 = vsel %vm910, %v1795, %v1791
      %v1797 = vpack.c.b16 %v1796, %v1796
      %v1800 = vunpack.c.l.b16 %v535
      %v1801 = vunpack.c.l.b16 %v536
      %v1802 = vpack.c.b16 %v1801, %v1800
      %v1805 = vsel %vm990, %v1797, 0
      %1807 = vmatprep.subr.bf16.mxu0 0
      %1808 = vmatpush1.bf16.msra.mxu0 %v1802
      %1809 = vmatprep.subr.bf16.mxu0 0
      %1810 = vmatpush1.bf16.msra.mxu0 0
      %1811 = vmatprep.subr.bf16.mxu0 0
      %1812 = vmatpush1.bf16.msra.mxu0 0
      %1813 = vmatprep.subr.bf16.mxu0 0
      %1814 = vmatpush1.bf16.msra.mxu0 0
      %1815 = vmatprep.subr.bf16.mxu0 0
      %1816 = vmatpush1.bf16.msra.mxu0 0
      %1817 = vmatprep.subr.bf16.mxu0 0
      %1818 = vmatpush1.bf16.msra.mxu0 0
      %1819 = vmatprep.subr.bf16.mxu0 0
      %1820 = vmatpush1.bf16.msra.mxu0 0
      %1821 = vmatprep.subr.bf16.mxu0 0
      %1822 = vmatpush1.bf16.msra.mxu0 0
      %1823 = vmatprep.subr.bf16.mxu0 0
      %1824 = vmatpush1.bf16.msra.mxu0 0
      %1825 = vmatprep.subr.bf16.mxu0 0
      %1826 = vmatpush1.bf16.msra.mxu0 0
      %1827 = vmatprep.subr.bf16.mxu0 0
      %1828 = vmatpush1.bf16.msra.mxu0 0
      %1829 = vmatprep.subr.bf16.mxu0 0
      %1830 = vmatpush1.bf16.msra.mxu0 0
      %1831 = vmatprep.subr.bf16.mxu0 0
      %1832 = vmatpush1.bf16.msra.mxu0 0
      %1833 = vmatprep.subr.bf16.mxu0 0
      %1834 = vmatpush1.bf16.msra.mxu0 0
      %1835 = vmatprep.subr.bf16.mxu0 0
      %1836 = vmatpush1.bf16.msra.mxu0 0
      %1837 = vmatprep.subr.bf16.mxu0 0
      %1838 = vmatpush1.bf16.msra.mxu0 0
      %1839 = vmatprep.mubr.bf16.mxu0 0
      %1840 = vmatmul.mubr.bf16.gmra.mrb[0].mxu0 %v1805
      %v1841 = vpop.f32.mrb[0].mxu0
      %v1842 = vadd.f32 0.0, %v1841
      %v1843 = vpop.f32.mrb[0].mxu0
      %v1844 = vpop.f32.mrb[0].mxu0
      %v1845 = vpop.f32.mrb[0].mxu0
      %1846 = vdwg.mxu0
      %v1847 = vpack.c.bf16 %v1366, %v1366
      %v1848 = vpack.c.bf16 %v1434, %v1434
      %v1849 = vpack.c.bf16 %v1502, %v1502
      %v1850 = vpack.c.bf16 %v1570, %v1570
      %v1851 = vpack.c.bf16 %v1638, %v1638
      %v1852 = vpack.c.bf16 %v1706, %v1706
      %v1853 = vpack.c.bf16 %v1774, %v1774
      %v1854 = vpack.c.bf16 %v1842, %v1842
      %v1863 = vunpack.c.l.b16 %v1847
      %v1864 = vunpack.c.l.b16 %v1848
      %v1865 = vunpack.c.l.b16 %v1849
      %v1866 = vunpack.c.l.b16 %v1850
      %v1867 = vunpack.c.l.b16 %v1851
      %v1868 = vunpack.c.l.b16 %v1852
      %v1869 = vunpack.c.l.b16 %v1853
      %v1870 = vunpack.c.l.b16 %v1854
      %v1871 = vrot.slane %v1864, 7
      %v1872 = vsel %vm975, %v1871, %v1863
      %v1873 = vrot.slane %v1865, 6
      %v1874 = vsel %vm977, %v1873, %v1872
      %v1875 = vrot.slane %v1866, 5
      %v1876 = vsel %vm979, %v1875, %v1874
      %v1877 = vrot.slane %v1867, 4
      %v1878 = vsel %vm981, %v1877, %v1876
      %v1879 = vrot.slane %v1868, 3
      %v1880 = vsel %vm983, %v1879, %v1878
      %v1881 = vrot.slane %v1869, 2
      %v1882 = vsel %vm985, %v1881, %v1880
      %v1883 = vrot.slane %v1870, 1
      %v1884 = vsel %vm987, %v1883, %v1882
      %v1885 = vpack.c.b16 %v1884, %v1884
      %v1887 = vld [vmem:[%s8] sm:$0xff]
      %v1888 = vld [vmem:[%s8 + $0x8] sm:$0xff]
      %v1889 = vld [vmem:[%s8 + $0x10] sm:$0xff]
      %v1890 = vld [vmem:[%s8 + $0x18] sm:$0xff]
      %v1891 = vld [vmem:[%s8 + $0x20] sm:$0xff]
      %v1892 = vld [vmem:[%s8 + $0x28] sm:$0xff]
      %v1893 = vld [vmem:[%s8 + $0x30] sm:$0xff]
      %v1894 = vld [vmem:[%s8 + $0x38] sm:$0xff]
      %v1895 = vld [vmem:[%s8 + $0x40] sm:$0xff]
      %v1896 = vld [vmem:[%s8 + $0x48] sm:$0xff]
      %v1897 = vld [vmem:[%s8 + $0x50] sm:$0xff]
      %v1898 = vld [vmem:[%s8 + $0x58] sm:$0xff]
      %v1899 = vld [vmem:[%s8 + $0x60] sm:$0xff]
      %v1900 = vld [vmem:[%s8 + $0x68] sm:$0xff]
      %v1901 = vld [vmem:[%s8 + $0x70] sm:$0xff]
      %v1902 = vld [vmem:[%s8 + $0x78] sm:$0xff]
      %v1903 = vld [vmem:[%s8 + $0x80] sm:$0xff]
      %v1904 = vld [vmem:[%s8 + $0x88] sm:$0xff]
      %v1905 = vld [vmem:[%s8 + $0x90] sm:$0xff]
      %v1906 = vld [vmem:[%s8 + $0x98] sm:$0xff]
      %v1907 = vld [vmem:[%s8 + $0xa0] sm:$0xff]
      %v1908 = vld [vmem:[%s8 + $0xa8] sm:$0xff]
      %v1909 = vld [vmem:[%s8 + $0xb0] sm:$0xff]
      %v1910 = vld [vmem:[%s8 + $0xb8] sm:$0xff]
      %v1911 = vld [vmem:[%s8 + $0xc0] sm:$0xff]
      %v1912 = vld [vmem:[%s8 + $0xc8] sm:$0xff]
      %v1913 = vld [vmem:[%s8 + $0xd0] sm:$0xff]
      %v1914 = vld [vmem:[%s8 + $0xd8] sm:$0xff]
      %v1915 = vld [vmem:[%s8 + $0xe0] sm:$0xff]
      %v1916 = vld [vmem:[%s8 + $0xe8] sm:$0xff]
      %v1917 = vld [vmem:[%s8 + $0xf0] sm:$0xff]
      %v1918 = vld [vmem:[%s8 + $0xf8] sm:$0xff]
      %v1919 = vld [vmem:[%s8 + $0x100] sm:$0xff]
      %v1920 = vld [vmem:[%s8 + $0x108] sm:$0xff]
      %v1921 = vld [vmem:[%s8 + $0x110] sm:$0xff]
      %v1922 = vld [vmem:[%s8 + $0x118] sm:$0xff]
      %v1923 = vld [vmem:[%s8 + $0x120] sm:$0xff]
      %v1924 = vld [vmem:[%s8 + $0x128] sm:$0xff]
      %v1925 = vld [vmem:[%s8 + $0x130] sm:$0xff]
      %v1926 = vld [vmem:[%s8 + $0x138] sm:$0xff]
      %v1927 = vld [vmem:[%s8 + $0x140] sm:$0xff]
      %v1928 = vld [vmem:[%s8 + $0x148] sm:$0xff]
      %v1929 = vld [vmem:[%s8 + $0x150] sm:$0xff]
      %v1930 = vld [vmem:[%s8 + $0x158] sm:$0xff]
      %v1931 = vld [vmem:[%s8 + $0x160] sm:$0xff]
      %v1932 = vld [vmem:[%s8 + $0x168] sm:$0xff]
      %v1933 = vld [vmem:[%s8 + $0x170] sm:$0xff]
      %v1934 = vld [vmem:[%s8 + $0x178] sm:$0xff]
      %v1935 = vld [vmem:[%s8 + $0x180] sm:$0xff]
      %v1936 = vld [vmem:[%s8 + $0x188] sm:$0xff]
      %v1937 = vld [vmem:[%s8 + $0x190] sm:$0xff]
      %v1938 = vld [vmem:[%s8 + $0x198] sm:$0xff]
      %v1939 = vld [vmem:[%s8 + $0x1a0] sm:$0xff]
      %v1940 = vld [vmem:[%s8 + $0x1a8] sm:$0xff]
      %v1941 = vld [vmem:[%s8 + $0x1b0] sm:$0xff]
      %v1942 = vld [vmem:[%s8 + $0x1b8] sm:$0xff]
      %v1943 = vld [vmem:[%s8 + $0x1c0] sm:$0xff]
      %v1944 = vld [vmem:[%s8 + $0x1c8] sm:$0xff]
      %v1945 = vld [vmem:[%s8 + $0x1d0] sm:$0xff]
      %v1946 = vld [vmem:[%s8 + $0x1d8] sm:$0xff]
      %v1947 = vld [vmem:[%s8 + $0x1e0] sm:$0xff]
      %v1948 = vld [vmem:[%s8 + $0x1e8] sm:$0xff]
      %v1949 = vld [vmem:[%s8 + $0x1f0] sm:$0xff]
      %v1950 = vld [vmem:[%s8 + $0x1f8] sm:$0xff]
      %v1951 = vld [vmem:[%s8 + $0x200] sm:$0xff]
      %v1952 = vld [vmem:[%s8 + $0x208] sm:$0xff]
      %v1953 = vld [vmem:[%s8 + $0x210] sm:$0xff]
      %v1954 = vld [vmem:[%s8 + $0x218] sm:$0xff]
      %v1955 = vld [vmem:[%s8 + $0x220] sm:$0xff]
      %v1956 = vld [vmem:[%s8 + $0x228] sm:$0xff]
      %v1957 = vld [vmem:[%s8 + $0x230] sm:$0xff]
      %v1958 = vld [vmem:[%s8 + $0x238] sm:$0xff]
      %v1959 = vld [vmem:[%s8 + $0x240] sm:$0xff]
      %v1960 = vld [vmem:[%s8 + $0x248] sm:$0xff]
      %v1961 = vld [vmem:[%s8 + $0x250] sm:$0xff]
      %v1962 = vld [vmem:[%s8 + $0x258] sm:$0xff]
      %v1963 = vld [vmem:[%s8 + $0x260] sm:$0xff]
      %v1964 = vld [vmem:[%s8 + $0x268] sm:$0xff]
      %v1965 = vld [vmem:[%s8 + $0x270] sm:$0xff]
      %v1966 = vld [vmem:[%s8 + $0x278] sm:$0xff]
      %v1967 = vld [vmem:[%s8 + $0x280] sm:$0xff]
      %v1968 = vld [vmem:[%s8 + $0x288] sm:$0xff]
      %v1969 = vld [vmem:[%s8 + $0x290] sm:$0xff]
      %v1970 = vld [vmem:[%s8 + $0x298] sm:$0xff]
      %v1971 = vld [vmem:[%s8 + $0x2a0] sm:$0xff]
      %v1972 = vld [vmem:[%s8 + $0x2a8] sm:$0xff]
      %v1973 = vld [vmem:[%s8 + $0x2b0] sm:$0xff]
      %v1974 = vld [vmem:[%s8 + $0x2b8] sm:$0xff]
      %v1975 = vld [vmem:[%s8 + $0x2c0] sm:$0xff]
      %v1976 = vld [vmem:[%s8 + $0x2c8] sm:$0xff]
      %v1977 = vld [vmem:[%s8 + $0x2d0] sm:$0xff]
      %v1978 = vld [vmem:[%s8 + $0x2d8] sm:$0xff]
      %v1979 = vld [vmem:[%s8 + $0x2e0] sm:$0xff]
      %v1980 = vld [vmem:[%s8 + $0x2e8] sm:$0xff]
      %v1981 = vld [vmem:[%s8 + $0x2f0] sm:$0xff]
      %v1982 = vld [vmem:[%s8 + $0x2f8] sm:$0xff]
      %v1983 = vld [vmem:[%s9] sm:$0xf]
      %v1985 = vlaneseq
      %v1986 = vshrl.u32 %v1985, 7
      %v1987 = vsub.s32 0, %v1986
      %v1988 = vrot.slane %v1983, %v1987
      %v1989 = vlaneseq
      %v1990 = vshrl.u32 %v1989, 7
      %v1991 = vsub.s32 1, %v1990
      %v1992 = vrot.slane %v1983, %v1991
      %v1993 = vlaneseq
      %v1994 = vshrl.u32 %v1993, 7
      %v1995 = vsub.s32 2, %v1994
      %v1996 = vrot.slane %v1983, %v1995
      %v1997 = vlaneseq
      %v1998 = vshrl.u32 %v1997, 7
      %v1999 = vsub.s32 3, %v1998
      %v2000 = vrot.slane %v1983, %v1999
      %v2101 = vunpack.c.l.b16 %v1887
      %v2102 = vunpack.c.h.b16 %v1887
      %v2103 = vunpack.c.l.b16 %v1888
      %v2104 = vunpack.c.h.b16 %v1888
      %v2105 = vunpack.c.l.b16 %v1889
      %v2106 = vunpack.c.h.b16 %v1889
      %v2107 = vunpack.c.l.b16 %v1890
      %v2108 = vunpack.c.h.b16 %v1890
      %v2109 = vunpack.c.l.b16 %v1891
      %v2110 = vunpack.c.h.b16 %v1891
      %v2111 = vunpack.c.l.b16 %v1892
      %v2112 = vunpack.c.h.b16 %v1892
      %v2113 = vunpack.c.l.b16 %v1893
      %v2114 = vunpack.c.h.b16 %v1893
      %v2115 = vunpack.c.l.b16 %v1894
      %v2116 = vunpack.c.h.b16 %v1894
      %v2117 = vunpack.c.l.b16 %v1895
      %v2118 = vunpack.c.h.b16 %v1895
      %v2119 = vunpack.c.l.b16 %v1896
      %v2120 = vunpack.c.h.b16 %v1896
      %v2121 = vunpack.c.l.b16 %v1897
      %v2122 = vunpack.c.h.b16 %v1897
      %v2123 = vunpack.c.l.b16 %v1898
      %v2124 = vunpack.c.h.b16 %v1898
      %v2125 = vunpack.c.l.b16 %v1899
      %v2126 = vunpack.c.h.b16 %v1899
      %v2127 = vunpack.c.l.b16 %v1900
      %v2128 = vunpack.c.h.b16 %v1900
      %v2129 = vunpack.c.l.b16 %v1901
      %v2130 = vunpack.c.h.b16 %v1901
      %v2131 = vunpack.c.l.b16 %v1902
      %v2132 = vunpack.c.h.b16 %v1902
      %v2133 = vunpack.c.l.b16 %v1903
      %v2134 = vunpack.c.h.b16 %v1903
      %v2135 = vunpack.c.l.b16 %v1904
      %v2136 = vunpack.c.h.b16 %v1904
      %v2137 = vunpack.c.l.b16 %v1905
      %v2138 = vunpack.c.h.b16 %v1905
      %v2139 = vunpack.c.l.b16 %v1906
      %v2140 = vunpack.c.h.b16 %v1906
      %v2141 = vunpack.c.l.b16 %v1907
      %v2142 = vunpack.c.h.b16 %v1907
      %v2143 = vunpack.c.l.b16 %v1908
      %v2144 = vunpack.c.h.b16 %v1908
      %v2145 = vunpack.c.l.b16 %v1909
      %v2146 = vunpack.c.h.b16 %v1909
      %v2147 = vunpack.c.l.b16 %v1910
      %v2148 = vunpack.c.h.b16 %v1910
      %v2149 = vunpack.c.l.b16 %v1911
      %v2150 = vunpack.c.h.b16 %v1911
      %v2151 = vunpack.c.l.b16 %v1912
      %v2152 = vunpack.c.h.b16 %v1912
      %v2153 = vunpack.c.l.b16 %v1913
      %v2154 = vunpack.c.h.b16 %v1913
      %v2155 = vunpack.c.l.b16 %v1914
      %v2156 = vunpack.c.h.b16 %v1914
      %v2157 = vunpack.c.l.b16 %v1915
      %v2158 = vunpack.c.h.b16 %v1915
      %v2159 = vunpack.c.l.b16 %v1916
      %v2160 = vunpack.c.h.b16 %v1916
      %v2161 = vunpack.c.l.b16 %v1917
      %v2162 = vunpack.c.h.b16 %v1917
      %v2163 = vunpack.c.l.b16 %v1918
      %v2164 = vunpack.c.h.b16 %v1918
      %v2165 = vunpack.c.l.b16 %v1919
      %v2166 = vunpack.c.h.b16 %v1919
      %v2167 = vunpack.c.l.b16 %v1920
      %v2168 = vunpack.c.h.b16 %v1920
      %v2169 = vunpack.c.l.b16 %v1921
      %v2170 = vunpack.c.h.b16 %v1921
      %v2171 = vunpack.c.l.b16 %v1922
      %v2172 = vunpack.c.h.b16 %v1922
      %v2173 = vunpack.c.l.b16 %v1923
      %v2174 = vunpack.c.h.b16 %v1923
      %v2175 = vunpack.c.l.b16 %v1924
      %v2176 = vunpack.c.h.b16 %v1924
      %v2177 = vunpack.c.l.b16 %v1925
      %v2178 = vunpack.c.h.b16 %v1925
      %v2179 = vunpack.c.l.b16 %v1926
      %v2180 = vunpack.c.h.b16 %v1926
      %v2181 = vunpack.c.l.b16 %v1927
      %v2182 = vunpack.c.h.b16 %v1927
      %v2183 = vunpack.c.l.b16 %v1928
      %v2184 = vunpack.c.h.b16 %v1928
      %v2185 = vunpack.c.l.b16 %v1929
      %v2186 = vunpack.c.h.b16 %v1929
      %v2187 = vunpack.c.l.b16 %v1930
      %v2188 = vunpack.c.h.b16 %v1930
      %v2189 = vunpack.c.l.b16 %v1931
      %v2190 = vunpack.c.h.b16 %v1931
      %v2191 = vunpack.c.l.b16 %v1932
      %v2192 = vunpack.c.h.b16 %v1932
      %v2193 = vunpack.c.l.b16 %v1933
      %v2194 = vunpack.c.h.b16 %v1933
      %v2195 = vunpack.c.l.b16 %v1934
      %v2196 = vunpack.c.h.b16 %v1934
      %v2197 = vunpack.c.l.b16 %v1935
      %v2198 = vunpack.c.h.b16 %v1935
      %v2199 = vunpack.c.l.b16 %v1936
      %v2200 = vunpack.c.h.b16 %v1936
      %v2201 = vunpack.c.l.b16 %v1937
      %v2202 = vunpack.c.h.b16 %v1937
      %v2203 = vunpack.c.l.b16 %v1938
      %v2204 = vunpack.c.h.b16 %v1938
      %v2205 = vunpack.c.l.b16 %v1939
      %v2206 = vunpack.c.h.b16 %v1939
      %v2207 = vunpack.c.l.b16 %v1940
      %v2208 = vunpack.c.h.b16 %v1940
      %v2209 = vunpack.c.l.b16 %v1941
      %v2210 = vunpack.c.h.b16 %v1941
      %v2211 = vunpack.c.l.b16 %v1942
      %v2212 = vunpack.c.h.b16 %v1942
      %v2213 = vunpack.c.l.b16 %v1943
      %v2214 = vunpack.c.h.b16 %v1943
      %v2215 = vunpack.c.l.b16 %v1944
      %v2216 = vunpack.c.h.b16 %v1944
      %v2217 = vunpack.c.l.b16 %v1945
      %v2218 = vunpack.c.h.b16 %v1945
      %v2219 = vunpack.c.l.b16 %v1946
      %v2220 = vunpack.c.h.b16 %v1946
      %v2221 = vunpack.c.l.b16 %v1947
      %v2222 = vunpack.c.h.b16 %v1947
      %v2223 = vunpack.c.l.b16 %v1948
      %v2224 = vunpack.c.h.b16 %v1948
      %v2225 = vunpack.c.l.b16 %v1949
      %v2226 = vunpack.c.h.b16 %v1949
      %v2227 = vunpack.c.l.b16 %v1950
      %v2228 = vunpack.c.h.b16 %v1950
      %v2229 = vunpack.c.l.b16 %v1951
      %v2230 = vunpack.c.h.b16 %v1951
      %v2231 = vunpack.c.l.b16 %v1952
      %v2232 = vunpack.c.h.b16 %v1952
      %v2233 = vunpack.c.l.b16 %v1953
      %v2234 = vunpack.c.h.b16 %v1953
      %v2235 = vunpack.c.l.b16 %v1954
      %v2236 = vunpack.c.h.b16 %v1954
      %v2237 = vunpack.c.l.b16 %v1955
      %v2238 = vunpack.c.h.b16 %v1955
      %v2239 = vunpack.c.l.b16 %v1956
      %v2240 = vunpack.c.h.b16 %v1956
      %v2241 = vunpack.c.l.b16 %v1957
      %v2242 = vunpack.c.h.b16 %v1957
      %v2243 = vunpack.c.l.b16 %v1958
      %v2244 = vunpack.c.h.b16 %v1958
      %v2245 = vunpack.c.l.b16 %v1959
      %v2246 = vunpack.c.h.b16 %v1959
      %v2247 = vunpack.c.l.b16 %v1960
      %v2248 = vunpack.c.h.b16 %v1960
      %v2249 = vunpack.c.l.b16 %v1961
      %v2250 = vunpack.c.h.b16 %v1961
      %v2251 = vunpack.c.l.b16 %v1962
      %v2252 = vunpack.c.h.b16 %v1962
      %v2253 = vunpack.c.l.b16 %v1963
      %v2254 = vunpack.c.h.b16 %v1963
      %v2255 = vunpack.c.l.b16 %v1964
      %v2256 = vunpack.c.h.b16 %v1964
      %v2257 = vunpack.c.l.b16 %v1965
      %v2258 = vunpack.c.h.b16 %v1965
      %v2259 = vunpack.c.l.b16 %v1966
      %v2260 = vunpack.c.h.b16 %v1966
      %v2261 = vunpack.c.l.b16 %v1967
      %v2262 = vunpack.c.h.b16 %v1967
      %v2263 = vunpack.c.l.b16 %v1968
      %v2264 = vunpack.c.h.b16 %v1968
      %v2265 = vunpack.c.l.b16 %v1969
      %v2266 = vunpack.c.h.b16 %v1969
      %v2267 = vunpack.c.l.b16 %v1970
      %v2268 = vunpack.c.h.b16 %v1970
      %v2269 = vunpack.c.l.b16 %v1971
      %v2270 = vunpack.c.h.b16 %v1971
      %v2271 = vunpack.c.l.b16 %v1972
      %v2272 = vunpack.c.h.b16 %v1972
      %v2273 = vunpack.c.l.b16 %v1973
      %v2274 = vunpack.c.h.b16 %v1973
      %v2275 = vunpack.c.l.b16 %v1974
      %v2276 = vunpack.c.h.b16 %v1974
      %v2277 = vunpack.c.l.b16 %v1975
      %v2278 = vunpack.c.h.b16 %v1975
      %v2279 = vunpack.c.l.b16 %v1976
      %v2280 = vunpack.c.h.b16 %v1976
      %v2281 = vunpack.c.l.b16 %v1977
      %v2282 = vunpack.c.h.b16 %v1977
      %v2283 = vunpack.c.l.b16 %v1978
      %v2284 = vunpack.c.h.b16 %v1978
      %v2285 = vunpack.c.l.b16 %v1979
      %v2286 = vunpack.c.h.b16 %v1979
      %v2287 = vunpack.c.l.b16 %v1980
      %v2288 = vunpack.c.h.b16 %v1980
      %v2289 = vunpack.c.l.b16 %v1981
      %v2290 = vunpack.c.h.b16 %v1981
      %v2291 = vunpack.c.l.b16 %v1982
      %v2292 = vunpack.c.h.b16 %v1982
      %v2293 = vpack.c.b16 %v2105, %v2101
      %v2294 = vpack.c.b16 %v2106, %v2102
      %v2295 = vpack.c.b16 %v2107, %v2103
      %v2296 = vpack.c.b16 %v2108, %v2104
      %v2297 = vpack.c.b16 %v2113, %v2109
      %v2298 = vpack.c.b16 %v2114, %v2110
      %v2299 = vpack.c.b16 %v2115, %v2111
      %v2300 = vpack.c.b16 %v2116, %v2112
      %v2301 = vpack.c.b16 %v2121, %v2117
      %v2302 = vpack.c.b16 %v2122, %v2118
      %v2303 = vpack.c.b16 %v2123, %v2119
      %v2304 = vpack.c.b16 %v2124, %v2120
      %v2305 = vpack.c.b16 %v2129, %v2125
      %v2306 = vpack.c.b16 %v2130, %v2126
      %v2307 = vpack.c.b16 %v2131, %v2127
      %v2308 = vpack.c.b16 %v2132, %v2128
      %v2309 = vpack.c.b16 %v2137, %v2133
      %v2310 = vpack.c.b16 %v2138, %v2134
      %v2311 = vpack.c.b16 %v2139, %v2135
      %v2312 = vpack.c.b16 %v2140, %v2136
      %v2313 = vpack.c.b16 %v2145, %v2141
      %v2314 = vpack.c.b16 %v2146, %v2142
      %v2315 = vpack.c.b16 %v2147, %v2143
      %v2316 = vpack.c.b16 %v2148, %v2144
      %v2317 = vpack.c.b16 %v2153, %v2149
      %v2318 = vpack.c.b16 %v2154, %v2150
      %v2319 = vpack.c.b16 %v2155, %v2151
      %v2320 = vpack.c.b16 %v2156, %v2152
      %v2321 = vpack.c.b16 %v2161, %v2157
      %v2322 = vpack.c.b16 %v2162, %v2158
      %v2323 = vpack.c.b16 %v2163, %v2159
      %v2324 = vpack.c.b16 %v2164, %v2160
      %v2325 = vpack.c.b16 %v2169, %v2165
      %v2326 = vpack.c.b16 %v2170, %v2166
      %v2327 = vpack.c.b16 %v2171, %v2167
      %v2328 = vpack.c.b16 %v2172, %v2168
      %v2329 = vpack.c.b16 %v2177, %v2173
      %v2330 = vpack.c.b16 %v2178, %v2174
      %v2331 = vpack.c.b16 %v2179, %v2175
      %v2332 = vpack.c.b16 %v2180, %v2176
      %v2333 = vpack.c.b16 %v2185, %v2181
      %v2334 = vpack.c.b16 %v2186, %v2182
      %v2335 = vpack.c.b16 %v2187, %v2183
      %v2336 = vpack.c.b16 %v2188, %v2184
      %v2337 = vpack.c.b16 %v2193, %v2189
      %v2338 = vpack.c.b16 %v2194, %v2190
      %v2339 = vpack.c.b16 %v2195, %v2191
      %v2340 = vpack.c.b16 %v2196, %v2192
      %v2341 = vpack.c.b16 %v2201, %v2197
      %v2342 = vpack.c.b16 %v2202, %v2198
      %v2343 = vpack.c.b16 %v2203, %v2199
      %v2344 = vpack.c.b16 %v2204, %v2200
      %v2345 = vpack.c.b16 %v2209, %v2205
      %v2346 = vpack.c.b16 %v2210, %v2206
      %v2347 = vpack.c.b16 %v2211, %v2207
      %v2348 = vpack.c.b16 %v2212, %v2208
      %v2349 = vpack.c.b16 %v2217, %v2213
      %v2350 = vpack.c.b16 %v2218, %v2214
      %v2351 = vpack.c.b16 %v2219, %v2215
      %v2352 = vpack.c.b16 %v2220, %v2216
      %v2353 = vpack.c.b16 %v2225, %v2221
      %v2354 = vpack.c.b16 %v2226, %v2222
      %v2355 = vpack.c.b16 %v2227, %v2223
      %v2356 = vpack.c.b16 %v2228, %v2224
      %v2357 = vpack.c.b16 %v2233, %v2229
      %v2358 = vpack.c.b16 %v2234, %v2230
      %v2359 = vpack.c.b16 %v2235, %v2231
      %v2360 = vpack.c.b16 %v2236, %v2232
      %v2361 = vpack.c.b16 %v2241, %v2237
      %v2362 = vpack.c.b16 %v2242, %v2238
      %v2363 = vpack.c.b16 %v2243, %v2239
      %v2364 = vpack.c.b16 %v2244, %v2240
      %v2365 = vpack.c.b16 %v2249, %v2245
      %v2366 = vpack.c.b16 %v2250, %v2246
      %v2367 = vpack.c.b16 %v2251, %v2247
      %v2368 = vpack.c.b16 %v2252, %v2248
      %v2369 = vpack.c.b16 %v2257, %v2253
      %v2370 = vpack.c.b16 %v2258, %v2254
      %v2371 = vpack.c.b16 %v2259, %v2255
      %v2372 = vpack.c.b16 %v2260, %v2256
      %v2373 = vpack.c.b16 %v2265, %v2261
      %v2374 = vpack.c.b16 %v2266, %v2262
      %v2375 = vpack.c.b16 %v2267, %v2263
      %v2376 = vpack.c.b16 %v2268, %v2264
      %v2377 = vpack.c.b16 %v2273, %v2269
      %v2378 = vpack.c.b16 %v2274, %v2270
      %v2379 = vpack.c.b16 %v2275, %v2271
      %v2380 = vpack.c.b16 %v2276, %v2272
      %v2381 = vpack.c.b16 %v2281, %v2277
      %v2382 = vpack.c.b16 %v2282, %v2278
      %v2383 = vpack.c.b16 %v2283, %v2279
      %v2384 = vpack.c.b16 %v2284, %v2280
      %v2385 = vpack.c.b16 %v2289, %v2285
      %v2386 = vpack.c.b16 %v2290, %v2286
      %v2387 = vpack.c.b16 %v2291, %v2287
      %v2388 = vpack.c.b16 %v2292, %v2288
      %2485 = vmatprep.subr.bf16.mxu0 %v2294
      %2486 = vmatpush1.bf16.msra.mxu0 %v2293
      %2487 = vmatprep.subr.bf16.mxu0 %v2298
      %2488 = vmatpush1.bf16.msra.mxu0 %v2297
      %2489 = vmatprep.subr.bf16.mxu0 %v2302
      %2490 = vmatpush1.bf16.msra.mxu0 %v2301
      %2491 = vmatprep.subr.bf16.mxu0 %v2306
      %2492 = vmatpush1.bf16.msra.mxu0 %v2305
      %2493 = vmatprep.subr.bf16.mxu0 %v2310
      %2494 = vmatpush1.bf16.msra.mxu0 %v2309
      %2495 = vmatprep.subr.bf16.mxu0 %v2314
      %2496 = vmatpush1.bf16.msra.mxu0 %v2313
      %2497 = vmatprep.subr.bf16.mxu0 %v2318
      %2498 = vmatpush1.bf16.msra.mxu0 %v2317
      %2499 = vmatprep.subr.bf16.mxu0 %v2322
      %2500 = vmatpush1.bf16.msra.mxu0 %v2321
      %2501 = vmatprep.subr.bf16.mxu0 %v2326
      %2502 = vmatpush1.bf16.msra.mxu0 %v2325
      %2503 = vmatprep.subr.bf16.mxu0 %v2330
      %2504 = vmatpush1.bf16.msra.mxu0 %v2329
      %2505 = vmatprep.subr.bf16.mxu0 %v2334
      %2506 = vmatpush1.bf16.msra.mxu0 %v2333
      %2507 = vmatprep.subr.bf16.mxu0 %v2338
      %2508 = vmatpush1.bf16.msra.mxu0 %v2337
      %2509 = vmatprep.subr.bf16.mxu0 %v2342
      %2510 = vmatpush1.bf16.msra.mxu0 %v2341
      %2511 = vmatprep.subr.bf16.mxu0 %v2346
      %2512 = vmatpush1.bf16.msra.mxu0 %v2345
      %2513 = vmatprep.subr.bf16.mxu0 %v2350
      %2514 = vmatpush1.bf16.msra.mxu0 %v2349
      %2515 = vmatprep.subr.bf16.mxu0 %v2354
      %2516 = vmatpush1.bf16.msra.mxu0 %v2353
      %2517 = vmatprep.mubr.bf16.mxu0 %v519
      %2518 = vmatmul.mubr.bf16.gmra.mrb[0].mxu0 %v520
      %v2519 = vpop.f32.mrb[0].mxu0
      %v2520 = vadd.f32 %v1988, %v2519
      %v2521 = vpop.f32.mrb[0].mxu0
      %v2522 = vadd.f32 %v1992, %v2521
      %v2523 = vpop.f32.mrb[0].mxu0
      %v2524 = vpop.f32.mrb[0].mxu0
      %2525 = vdwg.mxu0
      %2526 = vmatprep.subr.bf16.mxu0 %v2358
      %2527 = vmatpush1.bf16.msra.mxu0 %v2357
      %2528 = vmatprep.subr.bf16.mxu0 %v2362
      %2529 = vmatpush1.bf16.msra.mxu0 %v2361
      %2530 = vmatprep.subr.bf16.mxu0 %v2366
      %2531 = vmatpush1.bf16.msra.mxu0 %v2365
      %2532 = vmatprep.subr.bf16.mxu0 %v2370
      %2533 = vmatpush1.bf16.msra.mxu0 %v2369
      %2534 = vmatprep.subr.bf16.mxu0 %v2374
      %2535 = vmatpush1.bf16.msra.mxu0 %v2373
      %2536 = vmatprep.subr.bf16.mxu0 %v2378
      %2537 = vmatpush1.bf16.msra.mxu0 %v2377
      %2538 = vmatprep.subr.bf16.mxu0 %v2382
      %2539 = vmatpush1.bf16.msra.mxu0 %v2381
      %2540 = vmatprep.subr.bf16.mxu0 %v2386
      %2541 = vmatpush1.bf16.msra.mxu0 %v2385
      %2542 = vmatprep.subr.bf16.mxu0 0
      %2543 = vmatpush1.bf16.msra.mxu0 0
      %2544 = vmatprep.subr.bf16.mxu0 0
      %2545 = vmatpush1.bf16.msra.mxu0 0
      %2546 = vmatprep.subr.bf16.mxu0 0
      %2547 = vmatpush1.bf16.msra.mxu0 0
      %2548 = vmatprep.subr.bf16.mxu0 0
      %2549 = vmatpush1.bf16.msra.mxu0 0
      %2550 = vmatprep.subr.bf16.mxu0 0
      %2551 = vmatpush1.bf16.msra.mxu0 0
      %2552 = vmatprep.subr.bf16.mxu0 0
      %2553 = vmatpush1.bf16.msra.mxu0 0
      %2554 = vmatprep.subr.bf16.mxu0 0
      %2555 = vmatpush1.bf16.msra.mxu0 0
      %2556 = vmatprep.subr.bf16.mxu0 0
      %2557 = vmatpush1.bf16.msra.mxu0 0
      %2558 = vmatprep.mubr.bf16.mxu0 0
      %2559 = vmatmul.mubr.bf16.gmra.mrb[0].mxu0 %v1885
      %v2560 = vpop.f32.mrb[0].mxu0
      %v2561 = vadd.f32 %v2520, %v2560
      %v2562 = vpop.f32.mrb[0].mxu0
      %v2563 = vadd.f32 %v2522, %v2562
      %v2564 = vpop.f32.mrb[0].mxu0
      %v2565 = vpop.f32.mrb[0].mxu0
      %2566 = vdwg.mxu0
      %2567 = vmatprep.subr.bf16.mxu0 %v2296
      %2568 = vmatpush1.bf16.msra.mxu0 %v2295
      %2569 = vmatprep.subr.bf16.mxu0 %v2300
      %2570 = vmatpush1.bf16.msra.mxu0 %v2299
      %2571 = vmatprep.subr.bf16.mxu0 %v2304
      %2572 = vmatpush1.bf16.msra.mxu0 %v2303
      %2573 = vmatprep.subr.bf16.mxu0 %v2308
      %2574 = vmatpush1.bf16.msra.mxu0 %v2307
      %2575 = vmatprep.subr.bf16.mxu0 %v2312
      %2576 = vmatpush1.bf16.msra.mxu0 %v2311
      %2577 = vmatprep.subr.bf16.mxu0 %v2316
      %2578 = vmatpush1.bf16.msra.mxu0 %v2315
      %2579 = vmatprep.subr.bf16.mxu0 %v2320
      %2580 = vmatpush1.bf16.msra.mxu0 %v2319
      %2581 = vmatprep.subr.bf16.mxu0 %v2324
      %2582 = vmatpush1.bf16.msra.mxu0 %v2323
      %2583 = vmatprep.subr.bf16.mxu0 %v2328
      %2584 = vmatpush1.bf16.msra.mxu0 %v2327
      %2585 = vmatprep.subr.bf16.mxu0 %v2332
      %2586 = vmatpush1.bf16.msra.mxu0 %v2331
      %2587 = vmatprep.subr.bf16.mxu0 %v2336
      %2588 = vmatpush1.bf16.msra.mxu0 %v2335
      %2589 = vmatprep.subr.bf16.mxu0 %v2340
      %2590 = vmatpush1.bf16.msra.mxu0 %v2339
      %2591 = vmatprep.subr.bf16.mxu0 %v2344
      %2592 = vmatpush1.bf16.msra.mxu0 %v2343
      %2593 = vmatprep.subr.bf16.mxu0 %v2348
      %2594 = vmatpush1.bf16.msra.mxu0 %v2347
      %2595 = vmatprep.subr.bf16.mxu0 %v2352
      %2596 = vmatpush1.bf16.msra.mxu0 %v2351
      %2597 = vmatprep.subr.bf16.mxu0 %v2356
      %2598 = vmatpush1.bf16.msra.mxu0 %v2355
      %2599 = vmatprep.mubr.bf16.mxu0 %v519
      %2600 = vmatmul.mubr.bf16.gmra.mrb[0].mxu0 %v520
      %v2601 = vpop.f32.mrb[0].mxu0
      %v2602 = vadd.f32 %v1996, %v2601
      %v2603 = vpop.f32.mrb[0].mxu0
      %v2604 = vadd.f32 %v2000, %v2603
      %v2605 = vpop.f32.mrb[0].mxu0
      %v2606 = vpop.f32.mrb[0].mxu0
      %2607 = vdwg.mxu0
      %2608 = vmatprep.subr.bf16.mxu0 %v2360
      %2609 = vmatpush1.bf16.msra.mxu0 %v2359
      %2610 = vmatprep.subr.bf16.mxu0 %v2364
      %2611 = vmatpush1.bf16.msra.mxu0 %v2363
      %2612 = vmatprep.subr.bf16.mxu0 %v2368
      %2613 = vmatpush1.bf16.msra.mxu0 %v2367
      %2614 = vmatprep.subr.bf16.mxu0 %v2372
      %2615 = vmatpush1.bf16.msra.mxu0 %v2371
      %2616 = vmatprep.subr.bf16.mxu0 %v2376
      %2617 = vmatpush1.bf16.msra.mxu0 %v2375
      %2618 = vmatprep.subr.bf16.mxu0 %v2380
      %2619 = vmatpush1.bf16.msra.mxu0 %v2379
      %2620 = vmatprep.subr.bf16.mxu0 %v2384
      %2621 = vmatpush1.bf16.msra.mxu0 %v2383
      %2622 = vmatprep.subr.bf16.mxu0 %v2388
      %2623 = vmatpush1.bf16.msra.mxu0 %v2387
      %2624 = vmatprep.subr.bf16.mxu0 0
      %2625 = vmatpush1.bf16.msra.mxu0 0
      %2626 = vmatprep.subr.bf16.mxu0 0
      %2627 = vmatpush1.bf16.msra.mxu0 0
      %2628 = vmatprep.subr.bf16.mxu0 0
      %2629 = vmatpush1.bf16.msra.mxu0 0
      %2630 = vmatprep.subr.bf16.mxu0 0
      %2631 = vmatpush1.bf16.msra.mxu0 0
      %2632 = vmatprep.subr.bf16.mxu0 0
      %2633 = vmatpush1.bf16.msra.mxu0 0
      %2634 = vmatprep.subr.bf16.mxu0 0
      %2635 = vmatpush1.bf16.msra.mxu0 0
      %2636 = vmatprep.subr.bf16.mxu0 0
      %2637 = vmatpush1.bf16.msra.mxu0 0
      %2638 = vmatprep.subr.bf16.mxu0 0
      %2639 = vmatpush1.bf16.msra.mxu0 0
      %2640 = vmatprep.mubr.bf16.mxu0 0
      %2641 = vmatmul.mubr.bf16.gmra.mrb[0].mxu0 %v1885
      %v2642 = vpop.f32.mrb[0].mxu0
      %v2643 = vadd.f32 %v2602, %v2642
      %v2644 = vpop.f32.mrb[0].mxu0
      %v2645 = vadd.f32 %v2604, %v2644
      %v2646 = vpop.f32.mrb[0].mxu0
      %v2647 = vpop.f32.mrb[0].mxu0
      %2648 = vdwg.mxu0
      %v2649 = vxor.u32 %v2561, 2147483648
      %v2650 = vmul.f32 %v2649, 1.442695
      %v2651 = vpow.pop %v2650
      %v2652 = vadd.f32 %v2651, 1.0
      %v2653 = vrcp.pop %v2652
      %v2654 = vmul.f32 1.0, %v2653
      %v2655 = vxor.u32 %v2563, 2147483648
      %v2656 = vmul.f32 %v2655, 1.442695
      %v2657 = vpow.pop %v2656
      %v2658 = vadd.f32 %v2657, 1.0
      %v2659 = vrcp.pop %v2658
      %v2660 = vmul.f32 1.0, %v2659
      %v2661 = vxor.u32 %v2643, 2147483648
      %v2662 = vmul.f32 %v2661, 1.442695
      %v2663 = vpow.pop %v2662
      %v2664 = vadd.f32 %v2663, 1.0
      %v2665 = vrcp.pop %v2664
      %v2666 = vmul.f32 1.0, %v2665
      %v2667 = vtanh.pop %v2645
      %v2668 = vmul.f32 %v2660, %v518
      %v2669 = vmul.f32 %v2654, %v2667
      %v2670 = vadd.f32 %v2668, %v2669
      %v2671 = vtanh.pop %v2670
      %v2672 = vmul.f32 %v2666, %v2671
      %2673 = vst [vmem:[#allocation2] sm:$0xff] %v2672
      %2674 = vst [vmem:[#allocation3] sm:$0xff] %v2670
      %v2675 = vpack.c.bf16 %v2672, %v2672
      %v2676 = vld [vmem:[%s10] sm:$0xf]
      %v2677 = vld [vmem:[%s10 + $0x4] sm:$0xf]
      %v2678 = vld [vmem:[%s10 + $0x8] sm:$0xf]
      %v2679 = vld [vmem:[%s10 + $0xc] sm:$0xf]
      %v2680 = vld [vmem:[%s10 + $0x10] sm:$0xf]
      %v2681 = vld [vmem:[%s10 + $0x14] sm:$0xf]
      %v2682 = vld [vmem:[%s10 + $0x18] sm:$0xf]
      %v2683 = vld [vmem:[%s10 + $0x1c] sm:$0xf]
      %v2684 = vld [vmem:[%s10 + $0x20] sm:$0xf]
      %v2685 = vld [vmem:[%s10 + $0x24] sm:$0xf]
      %v2686 = vld [vmem:[%s10 + $0x28] sm:$0xf]
      %v2687 = vld [vmem:[%s10 + $0x2c] sm:$0xf]
      %v2688 = vld [vmem:[%s10 + $0x30] sm:$0xf]
      %v2689 = vld [vmem:[%s10 + $0x34] sm:$0xf]
      %v2690 = vld [vmem:[%s10 + $0x38] sm:$0xf]
      %v2691 = vld [vmem:[%s10 + $0x3c] sm:$0xf]
      %v2692 = vld [vmem:[%s11] sm:$0x1]
      %v2694 = vlaneseq
      %v2695 = vshrl.u32 %v2694, 7
      %v2696 = vsub.s32 0, %v2695
      %v2697 = vrot.slane %v2692, %v2696
      %v2715 = vunpack.c.l.b16 %v2676
      %v2716 = vunpack.c.l.b16 %v2677
      %v2717 = vunpack.c.l.b16 %v2678
      %v2718 = vunpack.c.l.b16 %v2679
      %v2719 = vunpack.c.l.b16 %v2680
      %v2720 = vunpack.c.l.b16 %v2681
      %v2721 = vunpack.c.l.b16 %v2682
      %v2722 = vunpack.c.l.b16 %v2683
      %v2723 = vunpack.c.l.b16 %v2684
      %v2724 = vunpack.c.l.b16 %v2685
      %v2725 = vunpack.c.l.b16 %v2686
      %v2726 = vunpack.c.l.b16 %v2687
      %v2727 = vunpack.c.l.b16 %v2688
      %v2728 = vunpack.c.l.b16 %v2689
      %v2729 = vunpack.c.l.b16 %v2690
      %v2730 = vunpack.c.l.b16 %v2691
      %v2731 = vpack.c.b16 %v2716, %v2715
      %v2732 = vpack.c.b16 %v2718, %v2717
      %v2733 = vpack.c.b16 %v2720, %v2719
      %v2734 = vpack.c.b16 %v2722, %v2721
      %v2735 = vpack.c.b16 %v2724, %v2723
      %v2736 = vpack.c.b16 %v2726, %v2725
      %v2737 = vpack.c.b16 %v2728, %v2727
      %v2738 = vpack.c.b16 %v2730, %v2729
      %2747 = vmatprep.subr.bf16.mxu0 0
      %2748 = vmatpush1.bf16.msra.mxu0 %v2731
      %2749 = vmatprep.subr.bf16.mxu0 0
      %2750 = vmatpush1.bf16.msra.mxu0 %v2732
      %2751 = vmatprep.subr.bf16.mxu0 0
      %2752 = vmatpush1.bf16.msra.mxu0 %v2733
      %2753 = vmatprep.subr.bf16.mxu0 0
      %2754 = vmatpush1.bf16.msra.mxu0 %v2734
      %2755 = vmatprep.subr.bf16.mxu0 0
      %2756 = vmatpush1.bf16.msra.mxu0 %v2735
      %2757 = vmatprep.subr.bf16.mxu0 0
      %2758 = vmatpush1.bf16.msra.mxu0 %v2736
      %2759 = vmatprep.subr.bf16.mxu0 0
      %2760 = vmatpush1.bf16.msra.mxu0 %v2737
      %2761 = vmatprep.subr.bf16.mxu0 0
      %2762 = vmatpush1.bf16.msra.mxu0 %v2738
      %2763 = vmatprep.subr.bf16.mxu0 0
      %2764 = vmatpush1.bf16.msra.mxu0 0
      %2765 = vmatprep.subr.bf16.mxu0 0
      %2766 = vmatpush1.bf16.msra.mxu0 0
      %2767 = vmatprep.subr.bf16.mxu0 0
      %2768 = vmatpush1.bf16.msra.mxu0 0
      %2769 = vmatprep.subr.bf16.mxu0 0
      %2770 = vmatpush1.bf16.msra.mxu0 0
      %2771 = vmatprep.subr.bf16.mxu0 0
      %2772 = vmatpush1.bf16.msra.mxu0 0
      %2773 = vmatprep.subr.bf16.mxu0 0
      %2774 = vmatpush1.bf16.msra.mxu0 0
      %2775 = vmatprep.subr.bf16.mxu0 0
      %2776 = vmatpush1.bf16.msra.mxu0 0
      %2777 = vmatprep.subr.bf16.mxu0 0
      %2778 = vmatpush1.bf16.msra.mxu0 0
      %2779 = vmatprep.mubr.bf16.mxu0 0
      %2780 = vmatmul.mubr.bf16.gmra.mrb[0].mxu0 %v2675
      %v2781 = vpop.f32.mrb[0].mxu0
      %v2782 = vadd.f32 %v2697, %v2781
      %v2783 = vpop.f32.mrb[0].mxu0
      %v2784 = vpop.f32.mrb[0].mxu0
      %v2785 = vpop.f32.mrb[0].mxu0
      %2786 = vdwg.mxu0
      %2787 = vmax.xlane.f32.xlu0 %v2782
      %v2788 = vpop.xlane.xlu0 %2787
      %v2789 = vsub.f32 %v2782, %v2788
      %v2790 = vmul.f32 %v2789, 1.442695
      %v2791 = vpow.pop %v2790
      %2792 = vadd.xlane.f32.xlu0 %v2791
      %v2793 = vpop.xlane.xlu0 %2792
      %v2794 = vlog2.pop %v2793
      %v2795 = vmul.f32 %v2794, 0.6931472
      %v2796 = vadd.f32 %v2795, %v2788
      %v2797 = vsub.f32 %v2782, %v2796
      %2798 = vst [vmem:[%s508] sm:$0xff] %v2797
      %p2799 = scmp.lt.s32.totalorder %s30, 6
      %s2800 = scalar_select %p2799, %s30, 6
      %p2801 = scmp.lt.s32.totalorder %s29, 0
      %s2802 = scalar_select %p2801, %s29, 0
      %s2803 = sadd.s32 %s2802, %s2800
      %s2804 = smul.addr %s2803, 8
      %s2805 = scalar_lea.vmem %s12, %s2804
      // Predicated region
      $region73: #{_forward_impl.1} parent=67 // pred_check
        %p2806 = pneg %p331
      $region74: #{_forward_impl.1} parent=67 // pred_check_branch
        %2808 = sbr.rel (%p2806) target = $region76
      $region75: #{_forward_impl.1} parent=67 // pred_region
        _
      $region76: #{_forward_impl.1} parent=67 // pred_fallthru
        _
    $region68: #{_forward_impl.1} parent=5 // pred_fallthru
      _
    %p2809 = scmp.le.s32.totalorder 2, %s20
    // Predicated region
    $region77: #{_forward_impl.1} parent=5 // pred_check
      %p2810 = pneg %p2809
    $region78: #{_forward_impl.1} parent=5 // pred_check_branch
      %2812 = sbr.rel (%p2810) target = $region80
    $region79: #{_forward_impl.1} parent=5 // pred_region
      %s2813 = ssub.s32 %s20, 2
      // Predicated region
      $region81: #{_forward_impl.1} parent=79 // pred_check
        %p2814 = pneg %p337
      $region82: #{_forward_impl.1} parent=79 // pred_check_branch
        %2816 = sbr.rel (%p2814) target = $region84
      $region83: #{_forward_impl.1} parent=79 // pred_region
        %p2817 = scmp.lt.s32.totalorder %s32, 6
        %s2818 = scalar_select %p2817, %s32, 6
        %p2819 = scmp.lt.s32.totalorder %s31, 0
        %s2820 = scalar_select %p2819, %s31, 0
        %s2821 = sadd.s32 %s2820, %s2818
        %s2822 = smul.addr %s2821, 8
        %s2823 = scalar_lea.vmem %s12, %s2822
      $region84: #{_forward_impl.1} parent=79 // pred_fallthru
        _
    $region80: #{_forward_impl.1} parent=5 // pred_fallthru
      _
  $region6: #{_forward_impl.1} parent=0 // loop_footer
    %s24 = sadd.s32 1, %s20
  $region7: #{_forward_impl.1} parent=0 // loop_footer_branch
    %19 = sbr.rel target = $region3
  $region8: #{_forward_impl.1} parent=0 // loop_exit
    _

// kernel: _forward_impl.1
$region0: #{_forward_impl.1}
  #allocation0 [shape = 'u32[]', space=smem, size = 0x4, offset = 0x4, fixed_abs, tag = 'smem constant byte address 0x4 - core index']
  #allocation1 [shape = 'u32[144,128]{1,0:T(1,128)}', space=vmem, size = 0x12000, scoped, tag = 'internal scratch']
  #allocation2 [shape = 'f32[8,128]{1,0:T(8,128)}', space=vmem, size = 0x1000, scoped, tag = 'scratch operand']
  #allocation3 [shape = 'f32[8,128]{1,0:T(8,128)}', space=vmem, size = 0x1000, scoped, tag = 'scratch operand']
  #allocation4 [shape = 'f32[1,1]{1,0:T(1,128)S(1)}', space=vmem, size = 0x200, scoped, tag = 'scoped memory for _forward_impl.1']
  %s0 = inlined_call_operand.vmem [shape: bf16[7,8,128], index: 0, kind: input, shape index: {}]
  %s1 = inlined_call_operand.vmem [shape: f32[8,128], index: 1, kind: input, shape index: {}]
  %s2 = inlined_call_operand.vmem [shape: bf16[8,16,128], index: 2, kind: input, shape index: {}]
  %s3 = inlined_call_operand.vmem [shape: bf16[8,16,128], index: 3, kind: input, shape index: {}]
  %s4 = inlined_call_operand.vmem [shape: bf16[128,128], index: 4, kind: input, shape index: {}]
  %s5 = inlined_call_operand.vmem [shape: f32[1,128], index: 5, kind: input, shape index: {}]
  %s6 = inlined_call_operand.vmem [shape: f32[1,128], index: 6, kind: input, shape index: {}]
  %s7 = inlined_call_operand.<no memory space> [shape: f32[1,1], index: 7, kind: input, shape index: {}]
  %s8 = inlined_call_operand.vmem [shape: bf16[384,512], index: 8, kind: input, shape index: {}]
  %s9 = inlined_call_operand.vmem [shape: f32[1,512], index: 9, kind: input, shape index: {}]
  %s10 = inlined_call_operand.vmem [shape: bf16[128,128], index: 10, kind: input, shape index: {}]
  %s11 = inlined_call_operand.vmem [shape: f32[1,128], index: 11, kind: input, shape index: {}]
  %s12 = inlined_call_operand.vmem [shape: f32[7,8,128], index: 12, kind: output, shape index: {}]
  %s13 = sld [smem:[#allocation0]]
  $region85: #{_forward_impl.1} parent=0
    _
  %s15 = ssub.s32 1, %s13
  %s16 = scalar_select 0, %s15, %s13
  %v17 = vstv %s7
  %18 = vst [vmem:[#allocation4] sm:$0x1] %v17
  loop: start=0, step=1, limit=9
  $region2: #{_forward_impl.1} parent=0 // loop_pre_header
    _
  $region3: #{_forward_impl.1} parent=0 // loop_header
    %s20 = sphi 0, %s24
    %p21 = scmp.ge.s32.totalorder %s20, 9
    %s27 = sphi 0, %s39
    %s28 = sphi 0, %s35
    %s29 = sphi 0, %s27
    %s30 = sphi 0, %s28
    %s31 = sphi 0, %s29
    %s32 = sphi 0, %s30
    %s44 = sphi 0, %s46
    %s47 = sphi 0, %s44
    %s48 = sphi 0, %s47
    %s64 = sphi 0, %s48
    %s70 = sphi 0, %s72
    %s73 = sphi 0, %s70
    %s74 = sphi 0, %s73
    %s90 = sphi 0, %s74
    %s96 = sphi 0, %s98
    %s99 = sphi 0, %s96
    %s100 = sphi 0, %s99
    %s116 = sphi 0, %s100
    %s122 = sphi 0, %s124
    %s125 = sphi 0, %s122
    %s126 = sphi 0, %s125
    %s142 = sphi 0, %s126
    %s146 = sphi 0, %s146
    %s148 = sphi 0, %s146
    %s149 = sphi 0, %s148
    %s163 = sphi 0, %s149
    %s167 = sphi 0, %s167
    %s169 = sphi 0, %s167
    %s170 = sphi 0, %s169
    %s184 = sphi 0, %s170
    %s188 = sphi 0, %s188
    %s190 = sphi 0, %s188
    %s191 = sphi 0, %s190
    %s205 = sphi 0, %s191
    %s209 = sphi 0, %s209
    %s211 = sphi 0, %s209
    %s212 = sphi 0, %s211
    %s226 = sphi 0, %s212
    %s230 = sphi 0, %s230
    %s232 = sphi 0, %s230
    %s233 = sphi 0, %s232
    %s247 = sphi 0, %s233
    %s251 = sphi 0, %s251
    %s253 = sphi 0, %s251
    %s254 = sphi 0, %s253
    %s268 = sphi 0, %s254
    %s272 = sphi 0, %s272
    %s274 = sphi 0, %s272
    %s275 = sphi 0, %s274
    %s289 = sphi 0, %s275
    %s293 = sphi 0, %s293
    %s295 = sphi 0, %s293
    %s296 = sphi 0, %s295
    %s310 = sphi 0, %s296
    %s318 = sphi 0, %s320
    %s321 = sphi 0, %s318
    %s322 = sphi 0, %s321
    %s338 = sphi 0, %s322
  $region4: #{_forward_impl.1} parent=0 // loop_header_branch
    %23 = sbr.rel (%p21) target = $region8
  $region5: #{_forward_impl.1} parent=0 // loop_body
    %s25 = ssub.s32 %s20, 1
    %s26 = ssub.s32 %s20, 2
    %s33 = sadd.s32 1, %s28
    %p34 = scmp.ge.s32.totalorder %s33, 7
    %s35 = scalar_select %p34, 0, %s33
    %s36 = sadd.s32 1, %s27
    %s37 = scalar_select %p34, %s36, %s27
    %p38 = scmp.ge.s32.totalorder %s37, 1
    %s39 = scalar_select %p38, 0, %s37
    %s40 = ssub.s32 %s28, %s35
    %s41 = ssub.s32 %s27, %s39
    %s42 = sor.u32 %s40, %s41
    %p43 = scmp.eq.s32.totalorder %s42, 0
    %s45 = sadd.s32 %s44, 1
    %s46 = scalar_select %p43, %s44, %s45
    %p49 = pneg %p43
    %p50 = scmp.eq.s32.totalorder %s20, 6
    %p51 = por %p49, %p50
    %p52 = scmp.ne.s32.totalorder %s44, %s47
    %p53 = scmp.eq.s32.totalorder %s20, 0
    %p54 = por %p52, %p53
    %p55 = scmp.ne.s32.totalorder %s44, %s47
    %p56 = scmp.eq.s32.totalorder %s25, 6
    %p57 = por %p55, %p56
    %p58 = scmp.ne.s32.totalorder %s47, %s48
    %p59 = scmp.eq.s32.totalorder %s25, 0
    %p60 = por %p58, %p59
    %p61 = scmp.ne.s32.totalorder %s47, %s48
    %p62 = scmp.eq.s32.totalorder %s26, 6
    %p63 = por %p61, %p62
    %p65 = scmp.ne.s32.totalorder %s48, %s64
    %p66 = scmp.eq.s32.totalorder %s26, 0
    %p67 = por %p65, %p66
    %s68 = ssub.s32 %s27, %s39
    %p69 = scmp.eq.s32.totalorder %s68, 0
    %s71 = sadd.s32 %s70, 1
    %s72 = scalar_select %p69, %s70, %s71
    %p75 = pneg %p69
    %p76 = scmp.eq.s32.totalorder %s20, 6
    %p77 = por %p75, %p76
    %p78 = scmp.ne.s32.totalorder %s70, %s73
    %p79 = scmp.eq.s32.totalorder %s20, 0
    %p80 = por %p78, %p79
    %p81 = scmp.ne.s32.totalorder %s70, %s73
    %p82 = scmp.eq.s32.totalorder %s25, 6
    %p83 = por %p81, %p82
    %p84 = scmp.ne.s32.totalorder %s73, %s74
    %p85 = scmp.eq.s32.totalorder %s25, 0
    %p86 = por %p84, %p85
    %p87 = scmp.ne.s32.totalorder %s73, %s74
    %p88 = scmp.eq.s32.totalorder %s26, 6
    %p89 = por %p87, %p88
    %p91 = scmp.ne.s32.totalorder %s74, %s90
    %p92 = scmp.eq.s32.totalorder %s26, 0
    %p93 = por %p91, %p92
    %s94 = ssub.s32 %s27, %s39
    %p95 = scmp.eq.s32.totalorder %s94, 0
    %s97 = sadd.s32 %s96, 1
    %s98 = scalar_select %p95, %s96, %s97
    %p101 = pneg %p95
    %p102 = scmp.eq.s32.totalorder %s20, 6
    %p103 = por %p101, %p102
    %p104 = scmp.ne.s32.totalorder %s96, %s99
    %p105 = scmp.eq.s32.totalorder %s20, 0
    %p106 = por %p104, %p105
    %p107 = scmp.ne.s32.totalorder %s96, %s99
    %p108 = scmp.eq.s32.totalorder %s25, 6
    %p109 = por %p107, %p108
    %p110 = scmp.ne.s32.totalorder %s99, %s100
    %p111 = scmp.eq.s32.totalorder %s25, 0
    %p112 = por %p110, %p111
    %p113 = scmp.ne.s32.totalorder %s99, %s100
    %p114 = scmp.eq.s32.totalorder %s26, 6
    %p115 = por %p113, %p114
    %p117 = scmp.ne.s32.totalorder %s100, %s116
    %p118 = scmp.eq.s32.totalorder %s26, 0
    %p119 = por %p117, %p118
    %s120 = ssub.s32 %s27, %s39
    %p121 = scmp.eq.s32.totalorder %s120, 0
    %s123 = sadd.s32 %s122, 1
    %s124 = scalar_select %p121, %s122, %s123
    %p127 = pneg %p121
    %p128 = scmp.eq.s32.totalorder %s20, 6
    %p129 = por %p127, %p128
    %p130 = scmp.ne.s32.totalorder %s122, %s125
    %p131 = scmp.eq.s32.totalorder %s20, 0
    %p132 = por %p130, %p131
    %p133 = scmp.ne.s32.totalorder %s122, %s125
    %p134 = scmp.eq.s32.totalorder %s25, 6
    %p135 = por %p133, %p134
    %p136 = scmp.ne.s32.totalorder %s125, %s126
    %p137 = scmp.eq.s32.totalorder %s25, 0
    %p138 = por %p136, %p137
    %p139 = scmp.ne.s32.totalorder %s125, %s126
    %p140 = scmp.eq.s32.totalorder %s26, 6
    %p141 = por %p139, %p140
    %p143 = scmp.ne.s32.totalorder %s126, %s142
    %p144 = scmp.eq.s32.totalorder %s26, 0
    %p145 = por %p143, %p144
    %s147 = sadd.s32 %s146, 1
    %p150 = scmp.eq.s32.totalorder %s20, 6
    %p151 = scmp.ne.s32.totalorder %s146, %s148
    %p152 = scmp.eq.s32.totalorder %s20, 0
    %p153 = por %p151, %p152
    %p154 = scmp.ne.s32.totalorder %s146, %s148
    %p155 = scmp.eq.s32.totalorder %s25, 6
    %p156 = por %p154, %p155
    %p157 = scmp.ne.s32.totalorder %s148, %s149
    %p158 = scmp.eq.s32.totalorder %s25, 0
    %p159 = por %p157, %p158
    %p160 = scmp.ne.s32.totalorder %s148, %s149
    %p161 = scmp.eq.s32.totalorder %s26, 6
    %p162 = por %p160, %p161
    %p164 = scmp.ne.s32.totalorder %s149, %s163
    %p165 = scmp.eq.s32.totalorder %s26, 0
    %p166 = por %p164, %p165
    %s168 = sadd.s32 %s167, 1
    %p171 = scmp.eq.s32.totalorder %s20, 6
    %p172 = scmp.ne.s32.totalorder %s167, %s169
    %p173 = scmp.eq.s32.totalorder %s20, 0
    %p174 = por %p172, %p173
    %p175 = scmp.ne.s32.totalorder %s167, %s169
    %p176 = scmp.eq.s32.totalorder %s25, 6
    %p177 = por %p175, %p176
    %p178 = scmp.ne.s32.totalorder %s169, %s170
    %p179 = scmp.eq.s32.totalorder %s25, 0
    %p180 = por %p178, %p179
    %p181 = scmp.ne.s32.totalorder %s169, %s170
    %p182 = scmp.eq.s32.totalorder %s26, 6
    %p183 = por %p181, %p182
    %p185 = scmp.ne.s32.totalorder %s170, %s184
    %p186 = scmp.eq.s32.totalorder %s26, 0
    %p187 = por %p185, %p186
    %s189 = sadd.s32 %s188, 1
    %p192 = scmp.eq.s32.totalorder %s20, 6
    %p193 = scmp.ne.s32.totalorder %s188, %s190
    %p194 = scmp.eq.s32.totalorder %s20, 0
    %p195 = por %p193, %p194
    %p196 = scmp.ne.s32.totalorder %s188, %s190
    %p197 = scmp.eq.s32.totalorder %s25, 6
    %p198 = por %p196, %p197
    %p199 = scmp.ne.s32.totalorder %s190, %s191
    %p200 = scmp.eq.s32.totalorder %s25, 0
    %p201 = por %p199, %p200
    %p202 = scmp.ne.s32.totalorder %s190, %s191
    %p203 = scmp.eq.s32.totalorder %s26, 6
    %p204 = por %p202, %p203
    %p206 = scmp.ne.s32.totalorder %s191, %s205
    %p207 = scmp.eq.s32.totalorder %s26, 0
    %p208 = por %p206, %p207
    %s210 = sadd.s32 %s209, 1
    %p213 = scmp.eq.s32.totalorder %s20, 6
    %p214 = scmp.ne.s32.totalorder %s209, %s211
    %p215 = scmp.eq.s32.totalorder %s20, 0
    %p216 = por %p214, %p215
    %p217 = scmp.ne.s32.totalorder %s209, %s211
    %p218 = scmp.eq.s32.totalorder %s25, 6
    %p219 = por %p217, %p218
    %p220 = scmp.ne.s32.totalorder %s211, %s212
    %p221 = scmp.eq.s32.totalorder %s25, 0
    %p222 = por %p220, %p221
    %p223 = scmp.ne.s32.totalorder %s211, %s212
    %p224 = scmp.eq.s32.totalorder %s26, 6
    %p225 = por %p223, %p224
    %p227 = scmp.ne.s32.totalorder %s212, %s226
    %p228 = scmp.eq.s32.totalorder %s26, 0
    %p229 = por %p227, %p228
    %s231 = sadd.s32 %s230, 1
    %p234 = scmp.eq.s32.totalorder %s20, 6
    %p235 = scmp.ne.s32.totalorder %s230, %s232
    %p236 = scmp.eq.s32.totalorder %s20, 0
    %p237 = por %p235, %p236
    %p238 = scmp.ne.s32.totalorder %s230, %s232
    %p239 = scmp.eq.s32.totalorder %s25, 6
    %p240 = por %p238, %p239
    %p241 = scmp.ne.s32.totalorder %s232, %s233
    %p242 = scmp.eq.s32.totalorder %s25, 0
    %p243 = por %p241, %p242
    %p244 = scmp.ne.s32.totalorder %s232, %s233
    %p245 = scmp.eq.s32.totalorder %s26, 6
    %p246 = por %p244, %p245
    %p248 = scmp.ne.s32.totalorder %s233, %s247
    %p249 = scmp.eq.s32.totalorder %s26, 0
    %p250 = por %p248, %p249
    %s252 = sadd.s32 %s251, 1
    %p255 = scmp.eq.s32.totalorder %s20, 6
    %p256 = scmp.ne.s32.totalorder %s251, %s253
    %p257 = scmp.eq.s32.totalorder %s20, 0
    %p258 = por %p256, %p257
    %p259 = scmp.ne.s32.totalorder %s251, %s253
    %p260 = scmp.eq.s32.totalorder %s25, 6
    %p261 = por %p259, %p260
    %p262 = scmp.ne.s32.totalorder %s253, %s254
    %p263 = scmp.eq.s32.totalorder %s25, 0
    %p264 = por %p262, %p263
    %p265 = scmp.ne.s32.totalorder %s253, %s254
    %p266 = scmp.eq.s32.totalorder %s26, 6
    %p267 = por %p265, %p266
    %p269 = scmp.ne.s32.totalorder %s254, %s268
    %p270 = scmp.eq.s32.totalorder %s26, 0
    %p271 = por %p269, %p270
    %s273 = sadd.s32 %s272, 1
    %p276 = scmp.eq.s32.totalorder %s20, 6
    %p277 = scmp.ne.s32.totalorder %s272, %s274
    %p278 = scmp.eq.s32.totalorder %s20, 0
    %p279 = por %p277, %p278
    %p280 = scmp.ne.s32.totalorder %s272, %s274
    %p281 = scmp.eq.s32.totalorder %s25, 6
    %p282 = por %p280, %p281
    %p283 = scmp.ne.s32.totalorder %s274, %s275
    %p284 = scmp.eq.s32.totalorder %s25, 0
    %p285 = por %p283, %p284
    %p286 = scmp.ne.s32.totalorder %s274, %s275
    %p287 = scmp.eq.s32.totalorder %s26, 6
    %p288 = por %p286, %p287
    %p290 = scmp.ne.s32.totalorder %s275, %s289
    %p291 = scmp.eq.s32.totalorder %s26, 0
    %p292 = por %p290, %p291
    %s294 = sadd.s32 %s293, 1
    %p297 = scmp.eq.s32.totalorder %s20, 6
    %p298 = scmp.ne.s32.totalorder %s293, %s295
    %p299 = scmp.eq.s32.totalorder %s20, 0
    %p300 = por %p298, %p299
    %p301 = scmp.ne.s32.totalorder %s293, %s295
    %p302 = scmp.eq.s32.totalorder %s25, 6
    %p303 = por %p301, %p302
    %p304 = scmp.ne.s32.totalorder %s295, %s296
    %p305 = scmp.eq.s32.totalorder %s25, 0
    %p306 = por %p304, %p305
    %p307 = scmp.ne.s32.totalorder %s295, %s296
    %p308 = scmp.eq.s32.totalorder %s26, 6
    %p309 = por %p307, %p308
    %p311 = scmp.ne.s32.totalorder %s296, %s310
    %p312 = scmp.eq.s32.totalorder %s26, 0
    %p313 = por %p311, %p312
    %s314 = ssub.s32 %s28, %s35
    %s315 = ssub.s32 %s27, %s39
    %s316 = sor.u32 %s314, %s315
    %p317 = scmp.eq.s32.totalorder %s316, 0
    %s319 = sadd.s32 %s318, 1
    %s320 = scalar_select %p317, %s318, %s319
    %p323 = pneg %p317
    %p324 = scmp.eq.s32.totalorder %s20, 6
    %p325 = por %p323, %p324
    %p326 = scmp.ne.s32.totalorder %s318, %s321
    %p327 = scmp.eq.s32.totalorder %s20, 0
    %p328 = por %p326, %p327
    %p329 = scmp.ne.s32.totalorder %s318, %s321
    %p330 = scmp.eq.s32.totalorder %s25, 6
    %p331 = por %p329, %p330
    %p332 = scmp.ne.s32.totalorder %s321, %s322
    %p333 = scmp.eq.s32.totalorder %s25, 0
    %p334 = por %p332, %p333
    %p335 = scmp.ne.s32.totalorder %s321, %s322
    %p336 = scmp.eq.s32.totalorder %s26, 6
    %p337 = por %p335, %p336
    %p339 = scmp.ne.s32.totalorder %s322, %s338
    %p340 = scmp.eq.s32.totalorder %s26, 0
    %p341 = por %p339, %p340
    %p342 = scmp.le.s32.totalorder 1, %s20
    %p343 = scmp.lt.s32.totalorder %s20, 8
    %p344 = pnand %p342, %p343
    %p345 = pneg %p344
    // Predicated region
    $region9: #{_forward_impl.1} parent=5 // pred_check
      _
    $region10: #{_forward_impl.1} parent=5 // pred_check_branch
      %347 = sbr.rel (%p344) target = $region12
    $region11: #{_forward_impl.1} parent=5 // pred_region
      %s348 = ssub.s32 %s20, 1
      // Predicated region
      $region13: #{_forward_impl.1} parent=11 // pred_check
        %p349 = pneg %p86
      $region14: #{_forward_impl.1} parent=11 // pred_check_branch
        %351 = sbr.rel (%p349) target = $region16
      $region15: #{_forward_impl.1} parent=11 // pred_region
        %p352 = scmp.lt.s32.totalorder %s29, 0
        %s353 = scalar_select %p352, %s29, 0
        %s354 = smul.addr %s353, 8
        %s355 = scalar_lea.vmem %s1, %s354
      $region16: #{_forward_impl.1} parent=11 // pred_fallthru
        _
      // Predicated region
      $region17: #{_forward_impl.1} parent=11 // pred_check
        %p356 = pneg %p112
      $region18: #{_forward_impl.1} parent=11 // pred_check_branch
        %358 = sbr.rel (%p356) target = $region20
      $region19: #{_forward_impl.1} parent=11 // pred_region
        %s359 = smul.u32 8, %s29
        %p360 = scmp.lt.s32.totalorder %s359, 7
        %s361 = scalar_select %p360, %s359, 7
        %s362 = smul.addr %s361, 2
        %s363 = smul.addr %s362, 4
        %s364 = scalar_lea.vmem %s2, %s363
        %s365 = smul.u32 8, %s29
      $region20: #{_forward_impl.1} parent=11 // pred_fallthru
        _
      // Predicated region
      $region21: #{_forward_impl.1} parent=11 // pred_check
        %p366 = pneg %p138
      $region22: #{_forward_impl.1} parent=11 // pred_check_branch
        %368 = sbr.rel (%p366) target = $region24
      $region23: #{_forward_impl.1} parent=11 // pred_region
        %s369 = smul.u32 8, %s29
        %p370 = scmp.lt.s32.totalorder %s369, 7
        %s371 = scalar_select %p370, %s369, 7
        %s372 = smul.addr %s371, 2
        %s373 = smul.addr %s372, 4
        %s374 = scalar_lea.vmem %s3, %s373
        %s375 = smul.u32 8, %s29
      $region24: #{_forward_impl.1} parent=11 // pred_fallthru
        _
      // Predicated region
      $region25: #{_forward_impl.1} parent=11 // pred_check
        %p376 = pneg %p159
      $region26: #{_forward_impl.1} parent=11 // pred_check_branch
        %378 = sbr.rel (%p376) target = $region28
      $region27: #{_forward_impl.1} parent=11 // pred_region
        _
      $region28: #{_forward_impl.1} parent=11 // pred_fallthru
        _
      // Predicated region
      $region29: #{_forward_impl.1} parent=11 // pred_check
        %p379 = pneg %p180
      $region30: #{_forward_impl.1} parent=11 // pred_check_branch
        %381 = sbr.rel (%p379) target = $region32
      $region31: #{_forward_impl.1} parent=11 // pred_region
        _
      $region32: #{_forward_impl.1} parent=11 // pred_fallthru
        _
      // Predicated region
      $region33: #{_forward_impl.1} parent=11 // pred_check
        %p382 = pneg %p201
      $region34: #{_forward_impl.1} parent=11 // pred_check_branch
        %384 = sbr.rel (%p382) target = $region36
      $region35: #{_forward_impl.1} parent=11 // pred_region
        _
      $region36: #{_forward_impl.1} parent=11 // pred_fallthru
        _
      // Predicated region
      $region37: #{_forward_impl.1} parent=11 // pred_check
        %p385 = pneg %p222
      $region38: #{_forward_impl.1} parent=11 // pred_check_branch
        %387 = sbr.rel (%p385) target = $region40
      $region39: #{_forward_impl.1} parent=11 // pred_region
        _
      $region40: #{_forward_impl.1} parent=11 // pred_fallthru
        _
      // Predicated region
      $region41: #{_forward_impl.1} parent=11 // pred_check
        %p388 = pneg %p243
      $region42: #{_forward_impl.1} parent=11 // pred_check_branch
        %390 = sbr.rel (%p388) target = $region44
      $region43: #{_forward_impl.1} parent=11 // pred_region
        _
      $region44: #{_forward_impl.1} parent=11 // pred_fallthru
        _
      // Predicated region
      $region45: #{_forward_impl.1} parent=11 // pred_check
        %p391 = pneg %p264
      $region46: #{_forward_impl.1} parent=11 // pred_check_branch
        %393 = sbr.rel (%p391) target = $region48
      $region47: #{_forward_impl.1} parent=11 // pred_region
        _
      $region48: #{_forward_impl.1} parent=11 // pred_fallthru
        _
      // Predicated region
      $region49: #{_forward_impl.1} parent=11 // pred_check
        %p394 = pneg %p285
      $region50: #{_forward_impl.1} parent=11 // pred_check_branch
        %396 = sbr.rel (%p394) target = $region52
      $region51: #{_forward_impl.1} parent=11 // pred_region
        _
      $region52: #{_forward_impl.1} parent=11 // pred_fallthru
        _
      // Predicated region
      $region53: #{_forward_impl.1} parent=11 // pred_check
        %p397 = pneg %p306
      $region54: #{_forward_impl.1} parent=11 // pred_check_branch
        %399 = sbr.rel (%p397) target = $region56
      $region55: #{_forward_impl.1} parent=11 // pred_region
        _
      $region56: #{_forward_impl.1} parent=11 // pred_fallthru
        _
    $region12: #{_forward_impl.1} parent=5 // pred_fallthru
      _
    %p400 = scmp.lt.s32.totalorder %s20, 7
    // Predicated region
    $region57: #{_forward_impl.1} parent=5 // pred_check
      %p401 = pneg %p400
    $region58: #{_forward_impl.1} parent=5 // pred_check_branch
      %403 = sbr.rel (%p401) target = $region60
    $region59: #{_forward_impl.1} parent=5 // pred_region
      // Predicated region
      $region61: #{_forward_impl.1} parent=59 // pred_check
        %p404 = pneg %p54
      $region62: #{_forward_impl.1} parent=59 // pred_check_branch
        %406 = sbr.rel (%p404) target = $region64
      $region63: #{_forward_impl.1} parent=59 // pred_region
        %p407 = scmp.lt.s32.totalorder %s28, 6
        %s408 = scalar_select %p407, %s28, 6
        %p409 = scmp.lt.s32.totalorder %s27, 0
        %s410 = scalar_select %p409, %s27, 0
        %s411 = sadd.s32 %s410, %s408
        %s412 = smul.addr %s411, 4
        %s413 = scalar_lea.vmem %s0, %s412
      $region64: #{_forward_impl.1} parent=59 // pred_fallthru
        _
    $region60: #{_forward_impl.1} parent=5 // pred_fallthru
      _
    %p414 = scmp.le.s32.totalorder 1, %s20
    %p415 = scmp.lt.s32.totalorder %s20, 8
    %p416 = pnand %p414, %p415
    %p417 = pneg %p416
    // Predicated region
    $region65: #{_forward_impl.1} parent=5 // pred_check
      _
    $region66: #{_forward_impl.1} parent=5 // pred_check_branch
      %419 = sbr.rel (%p416) target = $region68
    $region67: #{_forward_impl.1} parent=5 // pred_region
      %s420 = ssub.s32 %s20, 1
      %p421 = scmp.lt.s32.totalorder %s30, 6
      %s422 = scalar_select %p421, %s30, 6
      %p423 = scmp.lt.s32.totalorder %s29, 0
      %s424 = scalar_select %p423, %s29, 0
      %s425 = sadd.s32 %s424, %s422
      %s426 = smul.addr %s425, 4
      %s427 = scalar_lea.vmem %s0, %s426
      %p428 = pneg %p60
      %p429 = pneg %p57
      %p430 = scmp.lt.s32.totalorder %s29, 0
      %s431 = scalar_select %p430, %s29, 0
      %s432 = smul.addr %s431, 8
      %s433 = scalar_lea.vmem %s1, %s432
      %p434 = pneg %p86
      %p435 = pneg %p83
      %s436 = smul.u32 8, %s29
      %p437 = scmp.lt.s32.totalorder %s436, 7
      %s438 = scalar_select %p437, %s436, 7
      %s439 = smul.addr %s438, 2
      %s440 = smul.addr %s439, 4
      %s441 = scalar_lea.vmem %s2, %s440
      %p442 = pneg %p112
      %p443 = pneg %p109
      %s444 = smul.u32 8, %s29
      %p445 = scmp.lt.s32.totalorder %s444, 7
      %s446 = scalar_select %p445, %s444, 7
      %s447 = smul.addr %s446, 2
      %s448 = smul.addr %s447, 4
      %s449 = scalar_lea.vmem %s3, %s448
      %p450 = pneg %p138
      %p451 = pneg %p135
      %p452 = pneg %p159
      %p453 = pneg %p156
      %p454 = pneg %p180
      %p455 = pneg %p177
      %p456 = pneg %p201
      %p457 = pneg %p198
      %p458 = pneg %p222
      %p459 = pneg %p219
      %p460 = pneg %p243
      %p461 = pneg %p240
      %p462 = pneg %p264
      %p463 = pneg %p261
      %p464 = pneg %p285
      %p465 = pneg %p282
      %p466 = pneg %p306
      %p467 = pneg %p303
      %p468 = pneg %p334
      %p469 = pneg %p331
      %p470 = scmp.lt.s32.totalorder %s30, 6
      %s471 = scalar_select %p470, %s30, 6
      %p472 = scmp.lt.s32.totalorder %s29, 0
      %s473 = scalar_select %p472, %s29, 0
      %s474 = sadd.s32 %s473, %s471
      %s475 = smul.addr %s474, 8
      %s476 = scalar_lea.vmem %s12, %s475
      %p477 = scmp.lt.s32.totalorder %s30, 6
      %s478 = scalar_select %p477, %s30, 6
      %p479 = scmp.lt.s32.totalorder %s29, 0
      %s480 = scalar_select %p479, %s29, 0
      %s481 = sadd.s32 %s480, %s478
      %s482 = smul.addr %s481, 4
      %s483 = scalar_lea.vmem %s0, %s482
      %p484 = scmp.lt.s32.totalorder %s29, 0
      %s485 = scalar_select %p484, %s29, 0
      %s486 = smul.addr %s485, 8
      %s487 = scalar_lea.vmem %s1, %s486
      %s488 = smul.u32 8, %s29
      %p489 = scmp.lt.s32.totalorder %s488, 7
      %s490 = scalar_select %p489, %s488, 7
      %s491 = smul.addr %s490, 2
      %s492 = smul.addr %s491, 4
      %s493 = scalar_lea.vmem %s2, %s492
      %s494 = smul.u32 8, %s29
      %s495 = smul.u32 8, %s29
      %p496 = scmp.lt.s32.totalorder %s495, 7
      %s497 = scalar_select %p496, %s495, 7
      %s498 = smul.addr %s497, 2
      %s499 = smul.addr %s498, 4
      %s500 = scalar_lea.vmem %s3, %s499
      %s501 = smul.u32 8, %s29
      %p502 = scmp.lt.s32.totalorder %s30, 6
      %s503 = scalar_select %p502, %s30, 6
      %p504 = scmp.lt.s32.totalorder %s29, 0
      %s505 = scalar_select %p504, %s29, 0
      %s506 = sadd.s32 %s505, %s503
      %s507 = smul.addr %s506, 8
      %s508 = scalar_lea.vmem %s12, %s507
      %p510 = scmp.eq.s32.totalorder %s30, 0
      // Predicated region
      $region69: #{_forward_impl.1} parent=67 // pred_check
        %p511 = pneg %p510
      $region70: #{_forward_impl.1} parent=67 // pred_check_branch
        %513 = sbr.rel (%p511) target = $region72
      $region71: #{_forward_impl.1} parent=67 // pred_region
        %v514 = vld [vmem:[%s487] sm:$0xff]
        %515 = vst [vmem:[#allocation2] sm:$0xff] %v514
        %516 = vst [vmem:[#allocation3] sm:$0xff] %v514
      $region72: #{_forward_impl.1} parent=67 // pred_fallthru
        _
      %v517 = vld [vmem:[#allocation2] sm:$0xff]
      %v518 = vld [vmem:[#allocation3] sm:$0xff]
      %v519 = vpack.c.bf16 %v517, %v517
      %v520 = vld [vmem:[%s483] sm:$0xf]
      %v521 = vld [vmem:[%s493] sm:$0xf]
      %v522 = vld [vmem:[%s493 + $0x4] sm:$0xf]
      %v523 = vld [vmem:[%s493 + $0x8] sm:$0xf]
      %v524 = vld [vmem:[%s493 + $0xc] sm:$0xf]
      %v525 = vld [vmem:[%s493 + $0x10] sm:$0xf]
      %v526 = vld [vmem:[%s493 + $0x14] sm:$0xf]
      %v527 = vld [vmem:[%s493 + $0x18] sm:$0xf]
      %v528 = vld [vmem:[%s493 + $0x1c] sm:$0xf]
      %v529 = vld [vmem:[%s493 + $0x20] sm:$0xf]
      %v530 = vld [vmem:[%s493 + $0x24] sm:$0xf]
      %v531 = vld [vmem:[%s493 + $0x28] sm:$0xf]
      %v532 = vld [vmem:[%s493 + $0x2c] sm:$0xf]
      %v533 = vld [vmem:[%s493 + $0x30] sm:$0xf]
      %v534 = vld [vmem:[%s493 + $0x34] sm:$0xf]
      %v535 = vld [vmem:[%s493 + $0x38] sm:$0xf]
      %v536 = vld [vmem:[%s493 + $0x3c] sm:$0xf]
      %v537 = vld [vmem:[%s4] sm:$0xf]
      %v538 = vld [vmem:[%s4 + $0x4] sm:$0xf]
      %v539 = vld [vmem:[%s4 + $0x8] sm:$0xf]
      %v540 = vld [vmem:[%s4 + $0xc] sm:$0xf]
      %v541 = vld [vmem:[%s4 + $0x10] sm:$0xf]
      %v542 = vld [vmem:[%s4 + $0x14] sm:$0xf]
      %v543 = vld [vmem:[%s4 + $0x18] sm:$0xf]
      %v544 = vld [vmem:[%s4 + $0x1c] sm:$0xf]
      %v545 = vld [vmem:[%s4 + $0x20] sm:$0xf]
      %v546 = vld [vmem:[%s4 + $0x24] sm:$0xf]
      %v547 = vld [vmem:[%s4 + $0x28] sm:$0xf]
      %v548 = vld [vmem:[%s4 + $0x2c] sm:$0xf]
      %v549 = vld [vmem:[%s4 + $0x30] sm:$0xf]
      %v550 = vld [vmem:[%s4 + $0x34] sm:$0xf]
      %v551 = vld [vmem:[%s4 + $0x38] sm:$0xf]
      %v552 = vld [vmem:[%s4 + $0x3c] sm:$0xf]
      %v553 = vld [vmem:[%s5] sm:$0x1]
      %v555 = vlaneseq
      %v556 = vshrl.u32 %v555, 7
      %v557 = vsub.s32 0, %v556
      %v558 = vrot.slane %v553, %v557
      %v576 = vunpack.c.l.b16 %v537
      %v577 = vunpack.c.l.b16 %v538
      %v578 = vunpack.c.l.b16 %v539
      %v579 = vunpack.c.l.b16 %v540
      %v580 = vunpack.c.l.b16 %v541
      %v581 = vunpack.c.l.b16 %v542
      %v582 = vunpack.c.l.b16 %v543
      %v583 = vunpack.c.l.b16 %v544
      %v584 = vunpack.c.l.b16 %v545
      %v585 = vunpack.c.l.b16 %v546
      %v586 = vunpack.c.l.b16 %v547
      %v587 = vunpack.c.l.b16 %v548
      %v588 = vunpack.c.l.b16 %v549
      %v589 = vunpack.c.l.b16 %v550
      %v590 = vunpack.c.l.b16 %v551
      %v591 = vunpack.c.l.b16 %v552
      %v592 = vpack.c.b16 %v577, %v576
      %v593 = vpack.c.b16 %v579, %v578
      %v594 = vpack.c.b16 %v581, %v580
      %v595 = vpack.c.b16 %v583, %v582
      %v596 = vpack.c.b16 %v585, %v584
      %v597 = vpack.c.b16 %v587, %v586
      %v598 = vpack.c.b16 %v589, %v588
      %v599 = vpack.c.b16 %v591, %v590
      %608 = vmatprep.subr.bf16.mxu0 0
      %609 = vmatpush1.bf16.msra.mxu0 %v592
      %610 = vmatprep.subr.bf16.mxu0 0
      %611 = vmatpush1.bf16.msra.mxu0 %v593
      %612 = vmatprep.subr.bf16.mxu0 0
      %613 = vmatpush1.bf16.msra.mxu0 %v594
      %614 = vmatprep.subr.bf16.mxu0 0
      %615 = vmatpush1.bf16.msra.mxu0 %v595
      %616 = vmatprep.subr.bf16.mxu0 0
      %617 = vmatpush1.bf16.msra.mxu0 %v596
      %618 = vmatprep.subr.bf16.mxu0 0
      %619 = vmatpush1.bf16.msra.mxu0 %v597
      %620 = vmatprep.subr.bf16.mxu0 0
      %621 = vmatpush1.bf16.msra.mxu0 %v598
      %622 = vmatprep.subr.bf16.mxu0 0
      %623 = vmatpush1.bf16.msra.mxu0 %v599
      %624 = vmatprep.subr.bf16.mxu0 0
      %625 = vmatpush1.bf16.msra.mxu0 0
      %626 = vmatprep.subr.bf16.mxu0 0
      %627 = vmatpush1.bf16.msra.mxu0 0
      %628 = vmatprep.subr.bf16.mxu0 0
      %629 = vmatpush1.bf16.msra.mxu0 0
      %630 = vmatprep.subr.bf16.mxu0 0
      %631 = vmatpush1.bf16.msra.mxu0 0
      %632 = vmatprep.subr.bf16.mxu0 0
      %633 = vmatpush1.bf16.msra.mxu0 0
      %634 = vmatprep.subr.bf16.mxu0 0
      %635 = vmatpush1.bf16.msra.mxu0 0
      %636 = vmatprep.subr.bf16.mxu0 0
      %637 = vmatpush1.bf16.msra.mxu0 0
      %638 = vmatprep.subr.bf16.mxu0 0
      %639 = vmatpush1.bf16.msra.mxu0 0
      %640 = vmatprep.mubr.bf16.mxu0 0
      %641 = vmatmul.mubr.bf16.gmra.mrb[0].mxu0 %v519
      %v642 = vpop.f32.mrb[0].mxu0
      %v643 = vadd.f32 %v558, %v642
      %v644 = vpop.f32.mrb[0].mxu0
      %v645 = vpop.f32.mrb[0].mxu0
      %v646 = vpop.f32.mrb[0].mxu0
      %647 = vdwg.mxu0
      %v648 = vld [vmem:[%s500] sm:$0xf]
      %v649 = vld [vmem:[%s500 + $0x4] sm:$0xf]
      %v650 = vld [vmem:[%s500 + $0x8] sm:$0xf]
      %v651 = vld [vmem:[%s500 + $0xc] sm:$0xf]
      %v652 = vld [vmem:[%s500 + $0x10] sm:$0xf]
      %v653 = vld [vmem:[%s500 + $0x14] sm:$0xf]
      %v654 = vld [vmem:[%s500 + $0x18] sm:$0xf]
      %v655 = vld [vmem:[%s500 + $0x1c] sm:$0xf]
      %v656 = vld [vmem:[%s500 + $0x20] sm:$0xf]
      %v657 = vld [vmem:[%s500 + $0x24] sm:$0xf]
      %v658 = vld [vmem:[%s500 + $0x28] sm:$0xf]
      %v659 = vld [vmem:[%s500 + $0x2c] sm:$0xf]
      %v660 = vld [vmem:[%s500 + $0x30] sm:$0xf]
      %v661 = vld [vmem:[%s500 + $0x34] sm:$0xf]
      %v662 = vld [vmem:[%s500 + $0x38] sm:$0xf]
      %v663 = vld [vmem:[%s500 + $0x3c] sm:$0xf]
      %v665 = vcombine.high %v643, %v643
      %v667 = vunpack.c.l.s4 1966171168
      %v668 = vunpack.c.0.s8 %v667
      %v669 = vlaneseq
      %v670 = vshrl.u32 %v669, 7
      %v671 = vsub.s32 %v668, %v670
      %v672 = vrot.slane %v643, %v671
      %v674 = vunpack.c.l.s4 1966171168
      %v675 = vunpack.c.0.s8 %v674
      %v676 = vlaneseq
      %v677 = vshrl.u32 %v676, 7
      %v678 = vsub.s32 %v675, %v677
      %v679 = vrot.slane %v665, %v678
      %v680 = vcombine.high %v672, %v672
      %v681 = vcombine.high %v679, %v679
      %v683 = vunpack.c.l.s4 1966171168
      %v684 = vunpack.c.0.s8 %v683
      %v685 = vlaneseq
      %v686 = vshrl.u32 %v685, 7
      %v687 = vsub.s32 %v684, %v686
      %v688 = vrot.slane %v672, %v687
      %v690 = vunpack.c.l.s4 1966171168
      %v691 = vunpack.c.0.s8 %v690
      %v692 = vlaneseq
      %v693 = vshrl.u32 %v692, 7
      %v694 = vsub.s32 %v691, %v693
      %v695 = vrot.slane %v679, %v694
      %v697 = vunpack.c.l.s4 1966171168
      %v698 = vunpack.c.0.s8 %v697
      %v699 = vlaneseq
      %v700 = vshrl.u32 %v699, 7
      %v701 = vsub.s32 %v698, %v700
      %v702 = vrot.slane %v680, %v701
      %v704 = vunpack.c.l.s4 1966171168
      %v705 = vunpack.c.0.s8 %v704
      %v706 = vlaneseq
      %v707 = vshrl.u32 %v706, 7
      %v708 = vsub.s32 %v705, %v707
      %v709 = vrot.slane %v681, %v708
      %v710 = vcombine.high %v688, %v688
      %v711 = vcombine.high %v695, %v695
      %v712 = vcombine.high %v702, %v702
      %v713 = vcombine.high %v709, %v709
      %v714 = vunpack.c.l.bf16 %v648
      %v715 = vunpack.c.l.bf16 %v649
      %v716 = vunpack.c.l.bf16 %v650
      %v717 = vunpack.c.l.bf16 %v651
      %v718 = vunpack.c.l.bf16 %v652
      %v719 = vunpack.c.l.bf16 %v653
      %v720 = vunpack.c.l.bf16 %v654
      %v721 = vunpack.c.l.bf16 %v655
      %v722 = vunpack.c.l.bf16 %v656
      %v723 = vunpack.c.l.bf16 %v657
      %v724 = vunpack.c.l.bf16 %v658
      %v725 = vunpack.c.l.bf16 %v659
      %v726 = vunpack.c.l.bf16 %v660
      %v727 = vunpack.c.l.bf16 %v661
      %v728 = vunpack.c.l.bf16 %v662
      %v729 = vunpack.c.l.bf16 %v663
      %v730 = vlaneseq
      %v731 = vshrl.u32 %v730, 7
      %v732 = vsub.s32 0, %v731
      %v733 = vrot.slane %v688, %v732
      %v734 = vlaneseq
      %v735 = vshrl.u32 %v734, 7
      %v736 = vsub.s32 0, %v735
      %v737 = vrot.slane %v702, %v736
      %v738 = vlaneseq
      %v739 = vshrl.u32 %v738, 7
      %v740 = vsub.s32 0, %v739
      %v741 = vrot.slane %v710, %v740
      %v742 = vlaneseq
      %v743 = vshrl.u32 %v742, 7
      %v744 = vsub.s32 0, %v743
      %v745 = vrot.slane %v712, %v744
      %v746 = vlaneseq
      %v747 = vshrl.u32 %v746, 7
      %v748 = vsub.s32 0, %v747
      %v749 = vrot.slane %v695, %v748
      %v750 = vlaneseq
      %v751 = vshrl.u32 %v750, 7
      %v752 = vsub.s32 0, %v751
      %v753 = vrot.slane %v709, %v752
      %v754 = vlaneseq
      %v755 = vshrl.u32 %v754, 7
      %v756 = vsub.s32 0, %v755
      %v757 = vrot.slane %v711, %v756
      %v758 = vlaneseq
      %v759 = vshrl.u32 %v758, 7
      %v760 = vsub.s32 0, %v759
      %v761 = vrot.slane %v713, %v760
      %v770 = vadd.f32 %v714, %v733
      %v771 = vadd.f32 %v715, %v733
      %v772 = vadd.f32 %v716, %v737
      %v773 = vadd.f32 %v717, %v737
      %v774 = vadd.f32 %v718, %v741
      %v775 = vadd.f32 %v719, %v741
      %v776 = vadd.f32 %v720, %v745
      %v777 = vadd.f32 %v721, %v745
      %v778 = vadd.f32 %v722, %v749
      %v779 = vadd.f32 %v723, %v749
      %v780 = vadd.f32 %v724, %v753
      %v781 = vadd.f32 %v725, %v753
      %v782 = vadd.f32 %v726, %v757
      %v783 = vadd.f32 %v727, %v757
      %v784 = vadd.f32 %v728, %v761
      %v785 = vadd.f32 %v729, %v761
      %v786 = vtanh.pop %v770
      %v787 = vtanh.pop %v771
      %v788 = vtanh.pop %v772
      %v789 = vtanh.pop %v773
      %v790 = vtanh.pop %v774
      %v791 = vtanh.pop %v775
      %v792 = vtanh.pop %v776
      %v793 = vtanh.pop %v777
      %v794 = vtanh.pop %v778
      %v795 = vtanh.pop %v779
      %v796 = vtanh.pop %v780
      %v797 = vtanh.pop %v781
      %v798 = vtanh.pop %v782
      %v799 = vtanh.pop %v783
      %v800 = vtanh.pop %v784
      %v801 = vtanh.pop %v785
      %v802 = vld [vmem:[%s6] sm:$0x1]
      %v804 = vlaneseq
      %v805 = vshrl.u32 %v804, 7
      %v806 = vsub.s32 0, %v805
      %v807 = vrot.slane %v802, %v806
      %v809 = vmul.f32 %v786, %v807
      %v810 = vmul.f32 %v787, %v807
      %v811 = vmul.f32 %v788, %v807
      %v812 = vmul.f32 %v789, %v807
      %v813 = vmul.f32 %v790, %v807
      %v814 = vmul.f32 %v791, %v807
      %v815 = vmul.f32 %v792, %v807
      %v816 = vmul.f32 %v793, %v807
      %v817 = vmul.f32 %v794, %v807
      %v818 = vmul.f32 %v795, %v807
      %v819 = vmul.f32 %v796, %v807
      %v820 = vmul.f32 %v797, %v807
      %v821 = vmul.f32 %v798, %v807
      %v822 = vmul.f32 %v799, %v807
      %v823 = vmul.f32 %v800, %v807
      %v824 = vmul.f32 %v801, %v807
      %825 = vadd.xlane.f32.xlu0 %v809
      %v826 = vpop.xlane.xlu0 %825
      %827 = vadd.xlane.f32.xlu0 %v810
      %v828 = vpop.xlane.xlu0 %827
      %829 = vadd.xlane.f32.xlu0 %v811
      %v830 = vpop.xlane.xlu0 %829
      %831 = vadd.xlane.f32.xlu0 %v812
      %v832 = vpop.xlane.xlu0 %831
      %833 = vadd.xlane.f32.xlu0 %v813
      %v834 = vpop.xlane.xlu0 %833
      %835 = vadd.xlane.f32.xlu0 %v814
      %v836 = vpop.xlane.xlu0 %835
      %837 = vadd.xlane.f32.xlu0 %v815
      %v838 = vpop.xlane.xlu0 %837
      %839 = vadd.xlane.f32.xlu0 %v816
      %v840 = vpop.xlane.xlu0 %839
      %841 = vadd.xlane.f32.xlu0 %v817
      %v842 = vpop.xlane.xlu0 %841
      %843 = vadd.xlane.f32.xlu0 %v818
      %v844 = vpop.xlane.xlu0 %843
      %845 = vadd.xlane.f32.xlu0 %v819
      %v846 = vpop.xlane.xlu0 %845
      %847 = vadd.xlane.f32.xlu0 %v820
      %v848 = vpop.xlane.xlu0 %847
      %849 = vadd.xlane.f32.xlu0 %v821
      %v850 = vpop.xlane.xlu0 %849
      %851 = vadd.xlane.f32.xlu0 %v822
      %v852 = vpop.xlane.xlu0 %851
      %853 = vadd.xlane.f32.xlu0 %v823
      %v854 = vpop.xlane.xlu0 %853
      %855 = vadd.xlane.f32.xlu0 %v824
      %v856 = vpop.xlane.xlu0 %855
      %v857 = vld [vmem:[#allocation4] sm:$0x1]
      %v859 = vlaneseq
      %v860 = vshrl.u32 %v859, 7
      %v861 = vsub.s32 0, %v860
      %v862 = vrot.slane %v857, %v861
      %863 = vset.pattern.permute.xlu0 0
      %864 = vperm.xlu0 %863, %v862
      %v865 = vpop.permute.xlu0 %864
      %v867 = vadd.f32 %v826, %v865
      %v868 = vadd.f32 %v828, %v865
      %v869 = vadd.f32 %v830, %v865
      %v870 = vadd.f32 %v832, %v865
      %v871 = vadd.f32 %v834, %v865
      %v872 = vadd.f32 %v836, %v865
      %v873 = vadd.f32 %v838, %v865
      %v874 = vadd.f32 %v840, %v865
      %v875 = vadd.f32 %v842, %v865
      %v876 = vadd.f32 %v844, %v865
      %v877 = vadd.f32 %v846, %v865
      %v878 = vadd.f32 %v848, %v865
      %v879 = vadd.f32 %v850, %v865
      %v880 = vadd.f32 %v852, %v865
      %v881 = vadd.f32 %v854, %v865
      %v882 = vadd.f32 %v856, %v865
      %v899 = vlaneseq
      %v900 = vand.u32 %v899, 127
      %v901 = vlaneseq
      %v902 = vshrl.u32 %v901, 7
      %v903 = vsub.s32 %v900, %v902
      %v904 = vrot.slane %v867, %v903
      %v905 = vadd.s32 %v900, 4294967288
      %v906 = vlaneseq
      %v907 = vshrl.u32 %v906, 7
      %v908 = vsub.s32 %v905, %v907
      %v909 = vrot.slane %v868, %v908
      %vm910 = vcmask 130112
      %v911 = vsel %vm910, %v909, %v904
      %v912 = vlaneseq
      %v913 = vshrl.u32 %v912, 7
      %v914 = vsub.s32 %v900, %v913
      %v915 = vrot.slane %v869, %v914
      %v916 = vlaneseq
      %v917 = vshrl.u32 %v916, 7
      %v918 = vsub.s32 %v905, %v917
      %v919 = vrot.slane %v870, %v918
      %v920 = vsel %vm910, %v919, %v915
      %v921 = vlaneseq
      %v922 = vshrl.u32 %v921, 7
      %v923 = vsub.s32 %v900, %v922
      %v924 = vrot.slane %v871, %v923
      %v925 = vlaneseq
      %v926 = vshrl.u32 %v925, 7
      %v927 = vsub.s32 %v905, %v926
      %v928 = vrot.slane %v872, %v927
      %v929 = vsel %vm910, %v928, %v924
      %v930 = vlaneseq
      %v931 = vshrl.u32 %v930, 7
      %v932 = vsub.s32 %v900, %v931
      %v933 = vrot.slane %v873, %v932
      %v934 = vlaneseq
      %v935 = vshrl.u32 %v934, 7
      %v936 = vsub.s32 %v905, %v935
      %v937 = vrot.slane %v874, %v936
      %v938 = vsel %vm910, %v937, %v933
      %v939 = vlaneseq
      %v940 = vshrl.u32 %v939, 7
      %v941 = vsub.s32 %v900, %v940
      %v942 = vrot.slane %v875, %v941
      %v943 = vlaneseq
      %v944 = vshrl.u32 %v943, 7
      %v945 = vsub.s32 %v905, %v944
      %v946 = vrot.slane %v876, %v945
      %v947 = vsel %vm910, %v946, %v942
      %v948 = vlaneseq
      %v949 = vshrl.u32 %v948, 7
      %v950 = vsub.s32 %v900, %v949
      %v951 = vrot.slane %v877, %v950
      %v952 = vlaneseq
      %v953 = vshrl.u32 %v952, 7
      %v954 = vsub.s32 %v905, %v953
      %v955 = vrot.slane %v878, %v954
      %v956 = vsel %vm910, %v955, %v951
      %v957 = vlaneseq
      %v958 = vshrl.u32 %v957, 7
      %v959 = vsub.s32 %v900, %v958
      %v960 = vrot.slane %v879, %v959
      %v961 = vlaneseq
      %v962 = vshrl.u32 %v961, 7
      %v963 = vsub.s32 %v905, %v962
      %v964 = vrot.slane %v880, %v963
      %v965 = vsel %vm910, %v964, %v960
      %v966 = vlaneseq
      %v967 = vshrl.u32 %v966, 7
      %v968 = vsub.s32 %v900, %v967
      %v969 = vrot.slane %v881, %v968
      %v970 = vlaneseq
      %v971 = vshrl.u32 %v970, 7
      %v972 = vsub.s32 %v905, %v971
      %v973 = vrot.slane %v882, %v972
      %v974 = vsel %vm910, %v973, %v969
      %vm975 = vcmask 1041409
      %v976 = vsel %vm975, %v920, %v911
      %vm977 = vcmask 1042434
      %v978 = vsel %vm977, %v929, %v976
      %vm979 = vcmask 1043459
      %v980 = vsel %vm979, %v938, %v978
      %vm981 = vcmask 1044484
      %v982 = vsel %vm981, %v947, %v980
      %vm983 = vcmask 1045509
      %v984 = vsel %vm983, %v956, %v982
      %vm985 = vcmask 1046534
      %v986 = vsel %vm985, %v965, %v984
      %vm987 = vcmask 1047559
      %v988 = vsel %vm987, %v974, %v986
      %vm990 = vcmask 130048
      %v991 = vsel %vm990, %v988, -inf
      %992 = vmax.xlane.f32.xlu0 %v991
      %v993 = vpop.xlane.xlu0 %992
      %v995 = vlaneseq
      %v996 = vshrl.u32 %v995, 7
      %v997 = vsub.s32 0, %v996
      %v998 = vrot.slane %v993, %v997
      %v999 = vlaneseq
      %v1000 = vshrl.u32 %v999, 7
      %v1001 = vsub.s32 1, %v1000
      %v1002 = vrot.slane %v993, %v1001
      %v1003 = vlaneseq
      %v1004 = vshrl.u32 %v1003, 7
      %v1005 = vsub.s32 2, %v1004
      %v1006 = vrot.slane %v993, %v1005
      %v1007 = vlaneseq
      %v1008 = vshrl.u32 %v1007, 7
      %v1009 = vsub.s32 3, %v1008
      %v1010 = vrot.slane %v993, %v1009
      %v1011 = vlaneseq
      %v1012 = vshrl.u32 %v1011, 7
      %v1013 = vsub.s32 4, %v1012
      %v1014 = vrot.slane %v993, %v1013
      %v1015 = vlaneseq
      %v1016 = vshrl.u32 %v1015, 7
      %v1017 = vsub.s32 5, %v1016
      %v1018 = vrot.slane %v993, %v1017
      %v1019 = vlaneseq
      %v1020 = vshrl.u32 %v1019, 7
      %v1021 = vsub.s32 6, %v1020
      %v1022 = vrot.slane %v993, %v1021
      %v1023 = vlaneseq
      %v1024 = vshrl.u32 %v1023, 7
      %v1025 = vsub.s32 7, %v1024
      %v1026 = vrot.slane %v993, %v1025
      %v1035 = vsub.f32 %v867, %v998
      %v1036 = vsub.f32 %v868, %v998
      %v1037 = vsub.f32 %v869, %v1002
      %v1038 = vsub.f32 %v870, %v1002
      %v1039 = vsub.f32 %v871, %v1006
      %v1040 = vsub.f32 %v872, %v1006
      %v1041 = vsub.f32 %v873, %v1010
      %v1042 = vsub.f32 %v874, %v1010
      %v1043 = vsub.f32 %v875, %v1014
      %v1044 = vsub.f32 %v876, %v1014
      %v1045 = vsub.f32 %v877, %v1018
      %v1046 = vsub.f32 %v878, %v1018
      %v1047 = vsub.f32 %v879, %v1022
      %v1048 = vsub.f32 %v880, %v1022
      %v1049 = vsub.f32 %v881, %v1026
      %v1050 = vsub.f32 %v882, %v1026
      %v1051 = vmul.f32 %v1035, 1.442695
      %v1052 = vpow.pop %v1051
      %v1053 = vmul.f32 %v1036, 1.442695
      %v1054 = vpow.pop %v1053
      %v1055 = vmul.f32 %v1037, 1.442695
      %v1056 = vpow.pop %v1055
      %v1057 = vmul.f32 %v1038, 1.442695
      %v1058 = vpow.pop %v1057
      %v1059 = vmul.f32 %v1039, 1.442695
      %v1060 = vpow.pop %v1059
      %v1061 = vmul.f32 %v1040, 1.442695
      %v1062 = vpow.pop %v1061
      %v1063 = vmul.f32 %v1041, 1.442695
      %v1064 = vpow.pop %v1063
      %v1065 = vmul.f32 %v1042, 1.442695
      %v1066 = vpow.pop %v1065
      %v1067 = vmul.f32 %v1043, 1.442695
      %v1068 = vpow.pop %v1067
      %v1069 = vmul.f32 %v1044, 1.442695
      %v1070 = vpow.pop %v1069
      %v1071 = vmul.f32 %v1045, 1.442695
      %v1072 = vpow.pop %v1071
      %v1073 = vmul.f32 %v1046, 1.442695
      %v1074 = vpow.pop %v1073
      %v1075 = vmul.f32 %v1047, 1.442695
      %v1076 = vpow.pop %v1075
      %v1077 = vmul.f32 %v1048, 1.442695
      %v1078 = vpow.pop %v1077
      %v1079 = vmul.f32 %v1049, 1.442695
      %v1080 = vpow.pop %v1079
      %v1081 = vmul.f32 %v1050, 1.442695
      %v1082 = vpow.pop %v1081
      %1099 = vset.pattern.permute.xlu0 0
      %1100 = vperm.xlu0 %1099, %v1052
      %v1101 = vpop.permute.xlu0 %1100
      %1102 = vset.pattern.permute.xlu0 0
      %1103 = vperm.xlu0 %1102, %v1054
      %v1104 = vpop.permute.xlu0 %1103
      %1105 = vset.pattern.permute.xlu0 0
      %1106 = vperm.xlu0 %1105, %v1056
      %v1107 = vpop.permute.xlu0 %1106
      %1108 = vset.pattern.permute.xlu0 0
      %1109 = vperm.xlu0 %1108, %v1058
      %v1110 = vpop.permute.xlu0 %1109
      %1111 = vset.pattern.permute.xlu0 0
      %1112 = vperm.xlu0 %1111, %v1060
      %v1113 = vpop.permute.xlu0 %1112
      %1114 = vset.pattern.permute.xlu0 0
      %1115 = vperm.xlu0 %1114, %v1062
      %v1116 = vpop.permute.xlu0 %1115
      %1117 = vset.pattern.permute.xlu0 0
      %1118 = vperm.xlu0 %1117, %v1064
      %v1119 = vpop.permute.xlu0 %1118
      %1120 = vset.pattern.permute.xlu0 0
      %1121 = vperm.xlu0 %1120, %v1066
      %v1122 = vpop.permute.xlu0 %1121
      %1123 = vset.pattern.permute.xlu0 0
      %1124 = vperm.xlu0 %1123, %v1068
      %v1125 = vpop.permute.xlu0 %1124
      %1126 = vset.pattern.permute.xlu0 0
      %1127 = vperm.xlu0 %1126, %v1070
      %v1128 = vpop.permute.xlu0 %1127
      %1129 = vset.pattern.permute.xlu0 0
      %1130 = vperm.xlu0 %1129, %v1072
      %v1131 = vpop.permute.xlu0 %1130
      %1132 = vset.pattern.permute.xlu0 0
      %1133 = vperm.xlu0 %1132, %v1074
      %v1134 = vpop.permute.xlu0 %1133
      %1135 = vset.pattern.permute.xlu0 0
      %1136 = vperm.xlu0 %1135, %v1076
      %v1137 = vpop.permute.xlu0 %1136
      %1138 = vset.pattern.permute.xlu0 0
      %1139 = vperm.xlu0 %1138, %v1078
      %v1140 = vpop.permute.xlu0 %1139
      %1141 = vset.pattern.permute.xlu0 0
      %1142 = vperm.xlu0 %1141, %v1080
      %v1143 = vpop.permute.xlu0 %1142
      %1144 = vset.pattern.permute.xlu0 0
      %1145 = vperm.xlu0 %1144, %v1082
      %v1146 = vpop.permute.xlu0 %1145
      %v1147 = vlaneseq
      %v1148 = vshrl.u32 %v1147, 7
      %v1149 = vsub.s32 %v900, %v1148
      %v1150 = vrot.slane %v1101, %v1149
      %v1151 = vlaneseq
      %v1152 = vshrl.u32 %v1151, 7
      %v1153 = vsub.s32 %v905, %v1152
      %v1154 = vrot.slane %v1104, %v1153
      %v1155 = vsel %vm910, %v1154, %v1150
      %v1156 = vlaneseq
      %v1157 = vshrl.u32 %v1156, 7
      %v1158 = vsub.s32 %v900, %v1157
      %v1159 = vrot.slane %v1107, %v1158
      %v1160 = vlaneseq
      %v1161 = vshrl.u32 %v1160, 7
      %v1162 = vsub.s32 %v905, %v1161
      %v1163 = vrot.slane %v1110, %v1162
      %v1164 = vsel %vm910, %v1163, %v1159
      %v1165 = vlaneseq
      %v1166 = vshrl.u32 %v1165, 7
      %v1167 = vsub.s32 %v900, %v1166
      %v1168 = vrot.slane %v1113, %v1167
      %v1169 = vlaneseq
      %v1170 = vshrl.u32 %v1169, 7
      %v1171 = vsub.s32 %v905, %v1170
      %v1172 = vrot.slane %v1116, %v1171
      %v1173 = vsel %vm910, %v1172, %v1168
      %v1174 = vlaneseq
      %v1175 = vshrl.u32 %v1174, 7
      %v1176 = vsub.s32 %v900, %v1175
      %v1177 = vrot.slane %v1119, %v1176
      %v1178 = vlaneseq
      %v1179 = vshrl.u32 %v1178, 7
      %v1180 = vsub.s32 %v905, %v1179
      %v1181 = vrot.slane %v1122, %v1180
      %v1182 = vsel %vm910, %v1181, %v1177
      %v1183 = vlaneseq
      %v1184 = vshrl.u32 %v1183, 7
      %v1185 = vsub.s32 %v900, %v1184
      %v1186 = vrot.slane %v1125, %v1185
      %v1187 = vlaneseq
      %v1188 = vshrl.u32 %v1187, 7
      %v1189 = vsub.s32 %v905, %v1188
      %v1190 = vrot.slane %v1128, %v1189
      %v1191 = vsel %vm910, %v1190, %v1186
      %v1192 = vlaneseq
      %v1193 = vshrl.u32 %v1192, 7
      %v1194 = vsub.s32 %v900, %v1193
      %v1195 = vrot.slane %v1131, %v1194
      %v1196 = vlaneseq
      %v1197 = vshrl.u32 %v1196, 7
      %v1198 = vsub.s32 %v905, %v1197
      %v1199 = vrot.slane %v1134, %v1198
      %v1200 = vsel %vm910, %v1199, %v1195
      %v1201 = vlaneseq
      %v1202 = vshrl.u32 %v1201, 7
      %v1203 = vsub.s32 %v900, %v1202
      %v1204 = vrot.slane %v1137, %v1203
      %v1205 = vlaneseq
      %v1206 = vshrl.u32 %v1205, 7
      %v1207 = vsub.s32 %v905, %v1206
      %v1208 = vrot.slane %v1140, %v1207
      %v1209 = vsel %vm910, %v1208, %v1204
      %v1210 = vlaneseq
      %v1211 = vshrl.u32 %v1210, 7
      %v1212 = vsub.s32 %v900, %v1211
      %v1213 = vrot.slane %v1143, %v1212
      %v1214 = vlaneseq
      %v1215 = vshrl.u32 %v1214, 7
      %v1216 = vsub.s32 %v905, %v1215
      %v1217 = vrot.slane %v1146, %v1216
      %v1218 = vsel %vm910, %v1217, %v1213
      %v1219 = vsel %vm975, %v1164, %v1155
      %v1220 = vsel %vm977, %v1173, %v1219
      %v1221 = vsel %vm979, %v1182, %v1220
      %v1222 = vsel %vm981, %v1191, %v1221
      %v1223 = vsel %vm983, %v1200, %v1222
      %v1224 = vsel %vm985, %v1209, %v1223
      %v1225 = vsel %vm987, %v1218, %v1224
      %v1227 = vsel %vm990, %v1225, 0.0
      %1228 = vadd.xlane.f32.xlu0 %v1227
      %v1229 = vpop.xlane.xlu0 %1228
      %v1231 = vlaneseq
      %v1232 = vshrl.u32 %v1231, 7
      %v1233 = vsub.s32 0, %v1232
      %v1234 = vrot.slane %v1229, %v1233
      %v1235 = vlaneseq
      %v1236 = vshrl.u32 %v1235, 7
      %v1237 = vsub.s32 1, %v1236
      %v1238 = vrot.slane %v1229, %v1237
      %v1239 = vlaneseq
      %v1240 = vshrl.u32 %v1239, 7
      %v1241 = vsub.s32 2, %v1240
      %v1242 = vrot.slane %v1229, %v1241
      %v1243 = vlaneseq
      %v1244 = vshrl.u32 %v1243, 7
      %v1245 = vsub.s32 3, %v1244
      %v1246 = vrot.slane %v1229, %v1245
      %v1247 = vlaneseq
      %v1248 = vshrl.u32 %v1247, 7
      %v1249 = vsub.s32 4, %v1248
      %v1250 = vrot.slane %v1229, %v1249
      %v1251 = vlaneseq
      %v1252 = vshrl.u32 %v1251, 7
      %v1253 = vsub.s32 5, %v1252
      %v1254 = vrot.slane %v1229, %v1253
      %v1255 = vlaneseq
      %v1256 = vshrl.u32 %v1255, 7
      %v1257 = vsub.s32 6, %v1256
      %v1258 = vrot.slane %v1229, %v1257
      %v1259 = vlaneseq
      %v1260 = vshrl.u32 %v1259, 7
      %v1261 = vsub.s32 7, %v1260
      %v1262 = vrot.slane %v1229, %v1261
      %v1271 = vrcp.pop %v1234
      %v1272 = vmul.f32 %v1052, %v1271
      %v1273 = vmul.f32 %v1054, %v1271
      %v1274 = vrcp.pop %v1238
      %v1275 = vmul.f32 %v1056, %v1274
      %v1276 = vmul.f32 %v1058, %v1274
      %v1277 = vrcp.pop %v1242
      %v1278 = vmul.f32 %v1060, %v1277
      %v1279 = vmul.f32 %v1062, %v1277
      %v1280 = vrcp.pop %v1246
      %v1281 = vmul.f32 %v1064, %v1280
      %v1282 = vmul.f32 %v1066, %v1280
      %v1283 = vrcp.pop %v1250
      %v1284 = vmul.f32 %v1068, %v1283
      %v1285 = vmul.f32 %v1070, %v1283
      %v1286 = vrcp.pop %v1254
      %v1287 = vmul.f32 %v1072, %v1286
      %v1288 = vmul.f32 %v1074, %v1286
      %v1289 = vrcp.pop %v1258
      %v1290 = vmul.f32 %v1076, %v1289
      %v1291 = vmul.f32 %v1078, %v1289
      %v1292 = vrcp.pop %v1262
      %v1293 = vmul.f32 %v1080, %v1292
      %v1294 = vmul.f32 %v1082, %v1292
      %v1295 = vpack.c.bf16 %v1273, %v1272
      %v1296 = vpack.c.bf16 %v1276, %v1275
      %v1297 = vpack.c.bf16 %v1279, %v1278
      %v1298 = vpack.c.bf16 %v1282, %v1281
      %v1299 = vpack.c.bf16 %v1285, %v1284
      %v1300 = vpack.c.bf16 %v1288, %v1287
      %v1301 = vpack.c.bf16 %v1291, %v1290
      %v1302 = vpack.c.bf16 %v1294, %v1293
      %v1304 = vunpack.c.l.b16 %v1295
      %v1305 = vunpack.c.h.b16 %v1295
      %1306 = vset.pattern.permute.xlu0 0
      %1307 = vperm.xlu0 %1306, %v1304
      %v1308 = vpop.permute.xlu0 %1307
      %1309 = vset.pattern.permute.xlu0 0
      %1310 = vperm.xlu0 %1309, %v1305
      %v1311 = vpop.permute.xlu0 %1310
      %v1312 = vlaneseq
      %v1313 = vshrl.u32 %v1312, 7
      %v1314 = vsub.s32 %v900, %v1313
      %v1315 = vrot.slane %v1308, %v1314
      %v1316 = vlaneseq
      %v1317 = vshrl.u32 %v1316, 7
      %v1318 = vsub.s32 %v905, %v1317
      %v1319 = vrot.slane %v1311, %v1318
      %v1320 = vsel %vm910, %v1319, %v1315
      %v1321 = vpack.c.b16 %v1320, %v1320
      %v1324 = vunpack.c.l.b16 %v521
      %v1325 = vunpack.c.l.b16 %v522
      %v1326 = vpack.c.b16 %v1325, %v1324
      %v1329 = vsel %vm990, %v1321, 0
      %1331 = vmatprep.subr.bf16.mxu0 0
      %1332 = vmatpush1.bf16.msra.mxu0 %v1326
      %1333 = vmatprep.subr.bf16.mxu0 0
      %1334 = vmatpush1.bf16.msra.mxu0 0
      %1335 = vmatprep.subr.bf16.mxu0 0
      %1336 = vmatpush1.bf16.msra.mxu0 0
      %1337 = vmatprep.subr.bf16.mxu0 0
      %1338 = vmatpush1.bf16.msra.mxu0 0
      %1339 = vmatprep.subr.bf16.mxu0 0
      %1340 = vmatpush1.bf16.msra.mxu0 0
      %1341 = vmatprep.subr.bf16.mxu0 0
      %1342 = vmatpush1.bf16.msra.mxu0 0
      %1343 = vmatprep.subr.bf16.mxu0 0
      %1344 = vmatpush1.bf16.msra.mxu0 0
      %1345 = vmatprep.subr.bf16.mxu0 0
      %1346 = vmatpush1.bf16.msra.mxu0 0
      %1347 = vmatprep.subr.bf16.mxu0 0
      %1348 = vmatpush1.bf16.msra.mxu0 0
      %1349 = vmatprep.subr.bf16.mxu0 0
      %1350 = vmatpush1.bf16.msra.mxu0 0
      %1351 = vmatprep.subr.bf16.mxu0 0
      %1352 = vmatpush1.bf16.msra.mxu0 0
      %1353 = vmatprep.subr.bf16.mxu0 0
      %1354 = vmatpush1.bf16.msra.mxu0 0
      %1355 = vmatprep.subr.bf16.mxu0 0
      %1356 = vmatpush1.bf16.msra.mxu0 0
      %1357 = vmatprep.subr.bf16.mxu0 0
      %1358 = vmatpush1.bf16.msra.mxu0 0
      %1359 = vmatprep.subr.bf16.mxu0 0
      %1360 = vmatpush1.bf16.msra.mxu0 0
      %1361 = vmatprep.subr.bf16.mxu0 0
      %1362 = vmatpush1.bf16.msra.mxu0 0
      %1363 = vmatprep.mubr.bf16.mxu0 0
      %1364 = vmatmul.mubr.bf16.gmra.mrb[0].mxu0 %v1329
      %v1365 = vpop.f32.mrb[0].mxu0
      %v1366 = vadd.f32 0.0, %v1365
      %v1367 = vpop.f32.mrb[0].mxu0
      %v1368 = vpop.f32.mrb[0].mxu0
      %v1369 = vpop.f32.mrb[0].mxu0
      %1370 = vdwg.mxu0
      %v1372 = vunpack.c.l.b16 %v1296
      %v1373 = vunpack.c.h.b16 %v1296
      %1374 = vset.pattern.permute.xlu0 0
      %1375 = vperm.xlu0 %1374, %v1372
      %v1376 = vpop.permute.xlu0 %1375
      %1377 = vset.pattern.permute.xlu0 0
      %1378 = vperm.xlu0 %1377, %v1373
      %v1379 = vpop.permute.xlu0 %1378
      %v1380 = vlaneseq
      %v1381 = vshrl.u32 %v1380, 7
      %v1382 = vsub.s32 %v900, %v1381
      %v1383 = vrot.slane %v1376, %v1382
      %v1384 = vlaneseq
      %v1385 = vshrl.u32 %v1384, 7
      %v1386 = vsub.s32 %v905, %v1385
      %v1387 = vrot.slane %v1379, %v1386
      %v1388 = vsel %vm910, %v1387, %v1383
      %v1389 = vpack.c.b16 %v1388, %v1388
      %v1392 = vunpack.c.l.b16 %v523
      %v1393 = vunpack.c.l.b16 %v524
      %v1394 = vpack.c.b16 %v1393, %v1392
      %v1397 = vsel %vm990, %v1389, 0
      %1399 = vmatprep.subr.bf16.mxu0 0
      %1400 = vmatpush1.bf16.msra.mxu0 %v1394
      %1401 = vmatprep.subr.bf16.mxu0 0
      %1402 = vmatpush1.bf16.msra.mxu0 0
      %1403 = vmatprep.subr.bf16.mxu0 0
      %1404 = vmatpush1.bf16.msra.mxu0 0
      %1405 = vmatprep.subr.bf16.mxu0 0
      %1406 = vmatpush1.bf16.msra.mxu0 0
      %1407 = vmatprep.subr.bf16.mxu0 0
      %1408 = vmatpush1.bf16.msra.mxu0 0
      %1409 = vmatprep.subr.bf16.mxu0 0
      %1410 = vmatpush1.bf16.msra.mxu0 0
      %1411 = vmatprep.subr.bf16.mxu0 0
      %1412 = vmatpush1.bf16.msra.mxu0 0
      %1413 = vmatprep.subr.bf16.mxu0 0
      %1414 = vmatpush1.bf16.msra.mxu0 0
      %1415 = vmatprep.subr.bf16.mxu0 0
      %1416 = vmatpush1.bf16.msra.mxu0 0
      %1417 = vmatprep.subr.bf16.mxu0 0
      %1418 = vmatpush1.bf16.msra.mxu0 0
      %1419 = vmatprep.subr.bf16.mxu0 0
      %1420 = vmatpush1.bf16.msra.mxu0 0
      %1421 = vmatprep.subr.bf16.mxu0 0
      %1422 = vmatpush1.bf16.msra.mxu0 0
      %1423 = vmatprep.subr.bf16.mxu0 0
      %1424 = vmatpush1.bf16.msra.mxu0 0
      %1425 = vmatprep.subr.bf16.mxu0 0
      %1426 = vmatpush1.bf16.msra.mxu0 0
      %1427 = vmatprep.subr.bf16.mxu0 0
      %1428 = vmatpush1.bf16.msra.mxu0 0
      %1429 = vmatprep.subr.bf16.mxu0 0
      %1430 = vmatpush1.bf16.msra.mxu0 0
      %1431 = vmatprep.mubr.bf16.mxu0 0
      %1432 = vmatmul.mubr.bf16.gmra.mrb[0].mxu0 %v1397
      %v1433 = vpop.f32.mrb[0].mxu0
      %v1434 = vadd.f32 0.0, %v1433
      %v1435 = vpop.f32.mrb[0].mxu0
      %v1436 = vpop.f32.mrb[0].mxu0
      %v1437 = vpop.f32.mrb[0].mxu0
      %1438 = vdwg.mxu0
      %v1440 = vunpack.c.l.b16 %v1297
      %v1441 = vunpack.c.h.b16 %v1297
      %1442 = vset.pattern.permute.xlu0 0
      %1443 = vperm.xlu0 %1442, %v1440
      %v1444 = vpop.permute.xlu0 %1443
      %1445 = vset.pattern.permute.xlu0 0
      %1446 = vperm.xlu0 %1445, %v1441
      %v1447 = vpop.permute.xlu0 %1446
      %v1448 = vlaneseq
      %v1449 = vshrl.u32 %v1448, 7
      %v1450 = vsub.s32 %v900, %v1449
      %v1451 = vrot.slane %v1444, %v1450
      %v1452 = vlaneseq
      %v1453 = vshrl.u32 %v1452, 7
      %v1454 = vsub.s32 %v905, %v1453
      %v1455 = vrot.slane %v1447, %v1454
      %v1456 = vsel %vm910, %v1455, %v1451
      %v1457 = vpack.c.b16 %v1456, %v1456
      %v1460 = vunpack.c.l.b16 %v525
      %v1461 = vunpack.c.l.b16 %v526
      %v1462 = vpack.c.b16 %v1461, %v1460
      %v1465 = vsel %vm990, %v1457, 0
      %1467 = vmatprep.subr.bf16.mxu0 0
      %1468 = vmatpush1.bf16.msra.mxu0 %v1462
      %1469 = vmatprep.subr.bf16.mxu0 0
      %1470 = vmatpush1.bf16.msra.mxu0 0
      %1471 = vmatprep.subr.bf16.mxu0 0
      %1472 = vmatpush1.bf16.msra.mxu0 0
      %1473 = vmatprep.subr.bf16.mxu0 0
      %1474 = vmatpush1.bf16.msra.mxu0 0
      %1475 = vmatprep.subr.bf16.mxu0 0
      %1476 = vmatpush1.bf16.msra.mxu0 0
      %1477 = vmatprep.subr.bf16.mxu0 0
      %1478 = vmatpush1.bf16.msra.mxu0 0
      %1479 = vmatprep.subr.bf16.mxu0 0
      %1480 = vmatpush1.bf16.msra.mxu0 0
      %1481 = vmatprep.subr.bf16.mxu0 0
      %1482 = vmatpush1.bf16.msra.mxu0 0
      %1483 = vmatprep.subr.bf16.mxu0 0
      %1484 = vmatpush1.bf16.msra.mxu0 0
      %1485 = vmatprep.subr.bf16.mxu0 0
      %1486 = vmatpush1.bf16.msra.mxu0 0
      %1487 = vmatprep.subr.bf16.mxu0 0
      %1488 = vmatpush1.bf16.msra.mxu0 0
      %1489 = vmatprep.subr.bf16.mxu0 0
      %1490 = vmatpush1.bf16.msra.mxu0 0
      %1491 = vmatprep.subr.bf16.mxu0 0
      %1492 = vmatpush1.bf16.msra.mxu0 0
      %1493 = vmatprep.subr.bf16.mxu0 0
      %1494 = vmatpush1.bf16.msra.mxu0 0
      %1495 = vmatprep.subr.bf16.mxu0 0
      %1496 = vmatpush1.bf16.msra.mxu0 0
      %1497 = vmatprep.subr.bf16.mxu0 0
      %1498 = vmatpush1.bf16.msra.mxu0 0
      %1499 = vmatprep.mubr.bf16.mxu0 0
      %1500 = vmatmul.mubr.bf16.gmra.mrb[0].mxu0 %v1465
      %v1501 = vpop.f32.mrb[0].mxu0
      %v1502 = vadd.f32 0.0, %v1501
      %v1503 = vpop.f32.mrb[0].mxu0
      %v1504 = vpop.f32.mrb[0].mxu0
      %v1505 = vpop.f32.mrb[0].mxu0
      %1506 = vdwg.mxu0
      %v1508 = vunpack.c.l.b16 %v1298
      %v1509 = vunpack.c.h.b16 %v1298
      %1510 = vset.pattern.permute.xlu0 0
      %1511 = vperm.xlu0 %1510, %v1508
      %v1512 = vpop.permute.xlu0 %1511
      %1513 = vset.pattern.permute.xlu0 0
      %1514 = vperm.xlu0 %1513, %v1509
      %v1515 = vpop.permute.xlu0 %1514
      %v1516 = vlaneseq
      %v1517 = vshrl.u32 %v1516, 7
      %v1518 = vsub.s32 %v900, %v1517
      %v1519 = vrot.slane %v1512, %v1518
      %v1520 = vlaneseq
      %v1521 = vshrl.u32 %v1520, 7
      %v1522 = vsub.s32 %v905, %v1521
      %v1523 = vrot.slane %v1515, %v1522
      %v1524 = vsel %vm910, %v1523, %v1519
      %v1525 = vpack.c.b16 %v1524, %v1524
      %v1528 = vunpack.c.l.b16 %v527
      %v1529 = vunpack.c.l.b16 %v528
      %v1530 = vpack.c.b16 %v1529, %v1528
      %v1533 = vsel %vm990, %v1525, 0
      %1535 = vmatprep.subr.bf16.mxu0 0
      %1536 = vmatpush1.bf16.msra.mxu0 %v1530
      %1537 = vmatprep.subr.bf16.mxu0 0
      %1538 = vmatpush1.bf16.msra.mxu0 0
      %1539 = vmatprep.subr.bf16.mxu0 0
      %1540 = vmatpush1.bf16.msra.mxu0 0
      %1541 = vmatprep.subr.bf16.mxu0 0
      %1542 = vmatpush1.bf16.msra.mxu0 0
      %1543 = vmatprep.subr.bf16.mxu0 0
      %1544 = vmatpush1.bf16.msra.mxu0 0
      %1545 = vmatprep.subr.bf16.mxu0 0
      %1546 = vmatpush1.bf16.msra.mxu0 0
      %1547 = vmatprep.subr.bf16.mxu0 0
      %1548 = vmatpush1.bf16.msra.mxu0 0
      %1549 = vmatprep.subr.bf16.mxu0 0
      %1550 = vmatpush1.bf16.msra.mxu0 0
      %1551 = vmatprep.subr.bf16.mxu0 0
      %1552 = vmatpush1.bf16.msra.mxu0 0
      %1553 = vmatprep.subr.bf16.mxu0 0
      %1554 = vmatpush1.bf16.msra.mxu0 0
      %1555 = vmatprep.subr.bf16.mxu0 0
      %1556 = vmatpush1.bf16.msra.mxu0 0
      %1557 = vmatprep.subr.bf16.mxu0 0
      %1558 = vmatpush1.bf16.msra.mxu0 0
      %1559 = vmatprep.subr.bf16.mxu0 0
      %1560 = vmatpush1.bf16.msra.mxu0 0
      %1561 = vmatprep.subr.bf16.mxu0 0
      %1562 = vmatpush1.bf16.msra.mxu0 0
      %1563 = vmatprep.subr.bf16.mxu0 0
      %1564 = vmatpush1.bf16.msra.mxu0 0
      %1565 = vmatprep.subr.bf16.mxu0 0
      %1566 = vmatpush1.bf16.msra.mxu0 0
      %1567 = vmatprep.mubr.bf16.mxu0 0
      %1568 = vmatmul.mubr.bf16.gmra.mrb[0].mxu0 %v1533
      %v1569 = vpop.f32.mrb[0].mxu0
      %v1570 = vadd.f32 0.0, %v1569
      %v1571 = vpop.f32.mrb[0].mxu0
      %v1572 = vpop.f32.mrb[0].mxu0
      %v1573 = vpop.f32.mrb[0].mxu0
      %1574 = vdwg.mxu0
      %v1576 = vunpack.c.l.b16 %v1299
      %v1577 = vunpack.c.h.b16 %v1299
      %1578 = vset.pattern.permute.xlu0 0
      %1579 = vperm.xlu0 %1578, %v1576
      %v1580 = vpop.permute.xlu0 %1579
      %1581 = vset.pattern.permute.xlu0 0
      %1582 = vperm.xlu0 %1581, %v1577
      %v1583 = vpop.permute.xlu0 %1582
      %v1584 = vlaneseq
      %v1585 = vshrl.u32 %v1584, 7
      %v1586 = vsub.s32 %v900, %v1585
      %v1587 = vrot.slane %v1580, %v1586
      %v1588 = vlaneseq
      %v1589 = vshrl.u32 %v1588, 7
      %v1590 = vsub.s32 %v905, %v1589
      %v1591 = vrot.slane %v1583, %v1590
      %v1592 = vsel %vm910, %v1591, %v1587
      %v1593 = vpack.c.b16 %v1592, %v1592
      %v1596 = vunpack.c.l.b16 %v529
      %v1597 = vunpack.c.l.b16 %v530
      %v1598 = vpack.c.b16 %v1597, %v1596
      %v1601 = vsel %vm990, %v1593, 0
      %1603 = vmatprep.subr.bf16.mxu0 0
      %1604 = vmatpush1.bf16.msra.mxu0 %v1598
      %1605 = vmatprep.subr.bf16.mxu0 0
      %1606 = vmatpush1.bf16.msra.mxu0 0
      %1607 = vmatprep.subr.bf16.mxu0 0
      %1608 = vmatpush1.bf16.msra.mxu0 0
      %1609 = vmatprep.subr.bf16.mxu0 0
      %1610 = vmatpush1.bf16.msra.mxu0 0
      %1611 = vmatprep.subr.bf16.mxu0 0
      %1612 = vmatpush1.bf16.msra.mxu0 0
      %1613 = vmatprep.subr.bf16.mxu0 0
      %1614 = vmatpush1.bf16.msra.mxu0 0
      %1615 = vmatprep.subr.bf16.mxu0 0
      %1616 = vmatpush1.bf16.msra.mxu0 0
      %1617 = vmatprep.subr.bf16.mxu0 0
      %1618 = vmatpush1.bf16.msra.mxu0 0
      %1619 = vmatprep.subr.bf16.mxu0 0
      %1620 = vmatpush1.bf16.msra.mxu0 0
      %1621 = vmatprep.subr.bf16.mxu0 0
      %1622 = vmatpush1.bf16.msra.mxu0 0
      %1623 = vmatprep.subr.bf16.mxu0 0
      %1624 = vmatpush1.bf16.msra.mxu0 0
      %1625 = vmatprep.subr.bf16.mxu0 0
      %1626 = vmatpush1.bf16.msra.mxu0 0
      %1627 = vmatprep.subr.bf16.mxu0 0
      %1628 = vmatpush1.bf16.msra.mxu0 0
      %1629 = vmatprep.subr.bf16.mxu0 0
      %1630 = vmatpush1.bf16.msra.mxu0 0
      %1631 = vmatprep.subr.bf16.mxu0 0
      %1632 = vmatpush1.bf16.msra.mxu0 0
      %1633 = vmatprep.subr.bf16.mxu0 0
      %1634 = vmatpush1.bf16.msra.mxu0 0
      %1635 = vmatprep.mubr.bf16.mxu0 0
      %1636 = vmatmul.mubr.bf16.gmra.mrb[0].mxu0 %v1601
      %v1637 = vpop.f32.mrb[0].mxu0
      %v1638 = vadd.f32 0.0, %v1637
      %v1639 = vpop.f32.mrb[0].mxu0
      %v1640 = vpop.f32.mrb[0].mxu0
      %v1641 = vpop.f32.mrb[0].mxu0
      %1642 = vdwg.mxu0
      %v1644 = vunpack.c.l.b16 %v1300
      %v1645 = vunpack.c.h.b16 %v1300
      %1646 = vset.pattern.permute.xlu0 0
      %1647 = vperm.xlu0 %1646, %v1644
      %v1648 = vpop.permute.xlu0 %1647
      %1649 = vset.pattern.permute.xlu0 0
      %1650 = vperm.xlu0 %1649, %v1645
      %v1651 = vpop.permute.xlu0 %1650
      %v1652 = vlaneseq
      %v1653 = vshrl.u32 %v1652, 7
      %v1654 = vsub.s32 %v900, %v1653
      %v1655 = vrot.slane %v1648, %v1654
      %v1656 = vlaneseq
      %v1657 = vshrl.u32 %v1656, 7
      %v1658 = vsub.s32 %v905, %v1657
      %v1659 = vrot.slane %v1651, %v1658
      %v1660 = vsel %vm910, %v1659, %v1655
      %v1661 = vpack.c.b16 %v1660, %v1660
      %v1664 = vunpack.c.l.b16 %v531
      %v1665 = vunpack.c.l.b16 %v532
      %v1666 = vpack.c.b16 %v1665, %v1664
      %v1669 = vsel %vm990, %v1661, 0
      %1671 = vmatprep.subr.bf16.mxu0 0
      %1672 = vmatpush1.bf16.msra.mxu0 %v1666
      %1673 = vmatprep.subr.bf16.mxu0 0
      %1674 = vmatpush1.bf16.msra.mxu0 0
      %1675 = vmatprep.subr.bf16.mxu0 0
      %1676 = vmatpush1.bf16.msra.mxu0 0
      %1677 = vmatprep.subr.bf16.mxu0 0
      %1678 = vmatpush1.bf16.msra.mxu0 0
      %1679 = vmatprep.subr.bf16.mxu0 0
      %1680 = vmatpush1.bf16.msra.mxu0 0
      %1681 = vmatprep.subr.bf16.mxu0 0
      %1682 = vmatpush1.bf16.msra.mxu0 0
      %1683 = vmatprep.subr.bf16.mxu0 0
      %1684 = vmatpush1.bf16.msra.mxu0 0
      %1685 = vmatprep.subr.bf16.mxu0 0
      %1686 = vmatpush1.bf16.msra.mxu0 0
      %1687 = vmatprep.subr.bf16.mxu0 0
      %1688 = vmatpush1.bf16.msra.mxu0 0
      %1689 = vmatprep.subr.bf16.mxu0 0
      %1690 = vmatpush1.bf16.msra.mxu0 0
      %1691 = vmatprep.subr.bf16.mxu0 0
      %1692 = vmatpush1.bf16.msra.mxu0 0
      %1693 = vmatprep.subr.bf16.mxu0 0
      %1694 = vmatpush1.bf16.msra.mxu0 0
      %1695 = vmatprep.subr.bf16.mxu0 0
      %1696 = vmatpush1.bf16.msra.mxu0 0
      %1697 = vmatprep.subr.bf16.mxu0 0
      %1698 = vmatpush1.bf16.msra.mxu0 0
      %1699 = vmatprep.subr.bf16.mxu0 0
      %1700 = vmatpush1.bf16.msra.mxu0 0
      %1701 = vmatprep.subr.bf16.mxu0 0
      %1702 = vmatpush1.bf16.msra.mxu0 0
      %1703 = vmatprep.mubr.bf16.mxu0 0
      %1704 = vmatmul.mubr.bf16.gmra.mrb[0].mxu0 %v1669
      %v1705 = vpop.f32.mrb[0].mxu0
      %v1706 = vadd.f32 0.0, %v1705
      %v1707 = vpop.f32.mrb[0].mxu0
      %v1708 = vpop.f32.mrb[0].mxu0
      %v1709 = vpop.f32.mrb[0].mxu0
      %1710 = vdwg.mxu0
      %v1712 = vunpack.c.l.b16 %v1301
      %v1713 = vunpack.c.h.b16 %v1301
      %1714 = vset.pattern.permute.xlu0 0
      %1715 = vperm.xlu0 %1714, %v1712
      %v1716 = vpop.permute.xlu0 %1715
      %1717 = vset.pattern.permute.xlu0 0
      %1718 = vperm.xlu0 %1717, %v1713
      %v1719 = vpop.permute.xlu0 %1718
      %v1720 = vlaneseq
      %v1721 = vshrl.u32 %v1720, 7
      %v1722 = vsub.s32 %v900, %v1721
      %v1723 = vrot.slane %v1716, %v1722
      %v1724 = vlaneseq
      %v1725 = vshrl.u32 %v1724, 7
      %v1726 = vsub.s32 %v905, %v1725
      %v1727 = vrot.slane %v1719, %v1726
      %v1728 = vsel %vm910, %v1727, %v1723
      %v1729 = vpack.c.b16 %v1728, %v1728
      %v1732 = vunpack.c.l.b16 %v533
      %v1733 = vunpack.c.l.b16 %v534
      %v1734 = vpack.c.b16 %v1733, %v1732
      %v1737 = vsel %vm990, %v1729, 0
      %1739 = vmatprep.subr.bf16.mxu0 0
      %1740 = vmatpush1.bf16.msra.mxu0 %v1734
      %1741 = vmatprep.subr.bf16.mxu0 0
      %1742 = vmatpush1.bf16.msra.mxu0 0
      %1743 = vmatprep.subr.bf16.mxu0 0
      %1744 = vmatpush1.bf16.msra.mxu0 0
      %1745 = vmatprep.subr.bf16.mxu0 0
      %1746 = vmatpush1.bf16.msra.mxu0 0
      %1747 = vmatprep.subr.bf16.mxu0 0
      %1748 = vmatpush1.bf16.msra.mxu0 0
      %1749 = vmatprep.subr.bf16.mxu0 0
      %1750 = vmatpush1.bf16.msra.mxu0 0
      %1751 = vmatprep.subr.bf16.mxu0 0
      %1752 = vmatpush1.bf16.msra.mxu0 0
      %1753 = vmatprep.subr.bf16.mxu0 0
      %1754 = vmatpush1.bf16.msra.mxu0 0
      %1755 = vmatprep.subr.bf16.mxu0 0
      %1756 = vmatpush1.bf16.msra.mxu0 0
      %1757 = vmatprep.subr.bf16.mxu0 0
      %1758 = vmatpush1.bf16.msra.mxu0 0
      %1759 = vmatprep.subr.bf16.mxu0 0
      %1760 = vmatpush1.bf16.msra.mxu0 0
      %1761 = vmatprep.subr.bf16.mxu0 0
      %1762 = vmatpush1.bf16.msra.mxu0 0
      %1763 = vmatprep.subr.bf16.mxu0 0
      %1764 = vmatpush1.bf16.msra.mxu0 0
      %1765 = vmatprep.subr.bf16.mxu0 0
      %1766 = vmatpush1.bf16.msra.mxu0 0
      %1767 = vmatprep.subr.bf16.mxu0 0
      %1768 = vmatpush1.bf16.msra.mxu0 0
      %1769 = vmatprep.subr.bf16.mxu0 0
      %1770 = vmatpush1.bf16.msra.mxu0 0
      %1771 = vmatprep.mubr.bf16.mxu0 0
      %1772 = vmatmul.mubr.bf16.gmra.mrb[0].mxu0 %v1737
      %v1773 = vpop.f32.mrb[0].mxu0
      %v1774 = vadd.f32 0.0, %v1773
      %v1775 = vpop.f32.mrb[0].mxu0
      %v1776 = vpop.f32.mrb[0].mxu0
      %v1777 = vpop.f32.mrb[0].mxu0
      %1778 = vdwg.mxu0
      %v1780 = vunpack.c.l.b16 %v1302
      %v1781 = vunpack.c.h.b16 %v1302
      %1782 = vset.pattern.permute.xlu0 0
      %1783 = vperm.xlu0 %1782, %v1780
      %v1784 = vpop.permute.xlu0 %1783
      %1785 = vset.pattern.permute.xlu0 0
      %1786 = vperm.xlu0 %1785, %v1781
      %v1787 = vpop.permute.xlu0 %1786
      %v1788 = vlaneseq
      %v1789 = vshrl.u32 %v1788, 7
      %v1790 = vsub.s32 %v900, %v1789
      %v1791 = vrot.slane %v1784, %v1790
      %v1792 = vlaneseq
      %v1793 = vshrl.u32 %v1792, 7
      %v1794 = vsub.s32 %v905, %v1793
      %v1795 = vrot.slane %v1787, %v1794
      %v1796 = vsel %vm910, %v1795, %v1791
      %v1797 = vpack.c.b16 %v1796, %v1796
      %v1800 = vunpack.c.l.b16 %v535
      %v1801 = vunpack.c.l.b16 %v536
      %v1802 = vpack.c.b16 %v1801, %v1800
      %v1805 = vsel %vm990, %v1797, 0
      %1807 = vmatprep.subr.bf16.mxu0 0
      %1808 = vmatpush1.bf16.msra.mxu0 %v1802
      %1809 = vmatprep.subr.bf16.mxu0 0
      %1810 = vmatpush1.bf16.msra.mxu0 0
      %1811 = vmatprep.subr.bf16.mxu0 0
      %1812 = vmatpush1.bf16.msra.mxu0 0
      %1813 = vmatprep.subr.bf16.mxu0 0
      %1814 = vmatpush1.bf16.msra.mxu0 0
      %1815 = vmatprep.subr.bf16.mxu0 0
      %1816 = vmatpush1.bf16.msra.mxu0 0
      %1817 = vmatprep.subr.bf16.mxu0 0
      %1818 = vmatpush1.bf16.msra.mxu0 0
      %1819 = vmatprep.subr.bf16.mxu0 0
      %1820 = vmatpush1.bf16.msra.mxu0 0
      %1821 = vmatprep.subr.bf16.mxu0 0
      %1822 = vmatpush1.bf16.msra.mxu0 0
      %1823 = vmatprep.subr.bf16.mxu0 0
      %1824 = vmatpush1.bf16.msra.mxu0 0
      %1825 = vmatprep.subr.bf16.mxu0 0
      %1826 = vmatpush1.bf16.msra.mxu0 0
      %1827 = vmatprep.subr.bf16.mxu0 0
      %1828 = vmatpush1.bf16.msra.mxu0 0
      %1829 = vmatprep.subr.bf16.mxu0 0
      %1830 = vmatpush1.bf16.msra.mxu0 0
      %1831 = vmatprep.subr.bf16.mxu0 0
      %1832 = vmatpush1.bf16.msra.mxu0 0
      %1833 = vmatprep.subr.bf16.mxu0 0
      %1834 = vmatpush1.bf16.msra.mxu0 0
      %1835 = vmatprep.subr.bf16.mxu0 0
      %1836 = vmatpush1.bf16.msra.mxu0 0
      %1837 = vmatprep.subr.bf16.mxu0 0
      %1838 = vmatpush1.bf16.msra.mxu0 0
      %1839 = vmatprep.mubr.bf16.mxu0 0
      %1840 = vmatmul.mubr.bf16.gmra.mrb[0].mxu0 %v1805
      %v1841 = vpop.f32.mrb[0].mxu0
      %v1842 = vadd.f32 0.0, %v1841
      %v1843 = vpop.f32.mrb[0].mxu0
      %v1844 = vpop.f32.mrb[0].mxu0
      %v1845 = vpop.f32.mrb[0].mxu0
      %1846 = vdwg.mxu0
      %v1847 = vpack.c.bf16 %v1366, %v1366
      %v1848 = vpack.c.bf16 %v1434, %v1434
      %v1849 = vpack.c.bf16 %v1502, %v1502
      %v1850 = vpack.c.bf16 %v1570, %v1570
      %v1851 = vpack.c.bf16 %v1638, %v1638
      %v1852 = vpack.c.bf16 %v1706, %v1706
      %v1853 = vpack.c.bf16 %v1774, %v1774
      %v1854 = vpack.c.bf16 %v1842, %v1842
      %v1863 = vunpack.c.l.b16 %v1847
      %v1864 = vunpack.c.l.b16 %v1848
      %v1865 = vunpack.c.l.b16 %v1849
      %v1866 = vunpack.c.l.b16 %v1850
      %v1867 = vunpack.c.l.b16 %v1851
      %v1868 = vunpack.c.l.b16 %v1852
      %v1869 = vunpack.c.l.b16 %v1853
      %v1870 = vunpack.c.l.b16 %v1854
      %v1871 = vrot.slane %v1864, 7
      %v1872 = vsel %vm975, %v1871, %v1863
      %v1873 = vrot.slane %v1865, 6
      %v1874 = vsel %vm977, %v1873, %v1872
      %v1875 = vrot.slane %v1866, 5
      %v1876 = vsel %vm979, %v1875, %v1874
      %v1877 = vrot.slane %v1867, 4
      %v1878 = vsel %vm981, %v1877, %v1876
      %v1879 = vrot.slane %v1868, 3
      %v1880 = vsel %vm983, %v1879, %v1878
      %v1881 = vrot.slane %v1869, 2
      %v1882 = vsel %vm985, %v1881, %v1880
      %v1883 = vrot.slane %v1870, 1
      %v1884 = vsel %vm987, %v1883, %v1882
      %v1885 = vpack.c.b16 %v1884, %v1884
      %v1887 = vld [vmem:[%s8] sm:$0xff]
      %v1888 = vld [vmem:[%s8 + $0x8] sm:$0xff]
      %v1889 = vld [vmem:[%s8 + $0x10] sm:$0xff]
      %v1890 = vld [vmem:[%s8 + $0x18] sm:$0xff]
      %v1891 = vld [vmem:[%s8 + $0x20] sm:$0xff]
      %v1892 = vld [vmem:[%s8 + $0x28] sm:$0xff]
      %v1893 = vld [vmem:[%s8 + $0x30] sm:$0xff]
      %v1894 = vld [vmem:[%s8 + $0x38] sm:$0xff]
      %v1895 = vld [vmem:[%s8 + $0x40] sm:$0xff]
      %v1896 = vld [vmem:[%s8 + $0x48] sm:$0xff]
      %v1897 = vld [vmem:[%s8 + $0x50] sm:$0xff]
      %v1898 = vld [vmem:[%s8 + $0x58] sm:$0xff]
      %v1899 = vld [vmem:[%s8 + $0x60] sm:$0xff]
      %v1900 = vld [vmem:[%s8 + $0x68] sm:$0xff]
      %v1901 = vld [vmem:[%s8 + $0x70] sm:$0xff]
      %v1902 = vld [vmem:[%s8 + $0x78] sm:$0xff]
      %v1903 = vld [vmem:[%s8 + $0x80] sm:$0xff]
      %v1904 = vld [vmem:[%s8 + $0x88] sm:$0xff]
      %v1905 = vld [vmem:[%s8 + $0x90] sm:$0xff]
      %v1906 = vld [vmem:[%s8 + $0x98] sm:$0xff]
      %v1907 = vld [vmem:[%s8 + $0xa0] sm:$0xff]
      %v1908 = vld [vmem:[%s8 + $0xa8] sm:$0xff]
      %v1909 = vld [vmem:[%s8 + $0xb0] sm:$0xff]
      %v1910 = vld [vmem:[%s8 + $0xb8] sm:$0xff]
      %v1911 = vld [vmem:[%s8 + $0xc0] sm:$0xff]
      %v1912 = vld [vmem:[%s8 + $0xc8] sm:$0xff]
      %v1913 = vld [vmem:[%s8 + $0xd0] sm:$0xff]
      %v1914 = vld [vmem:[%s8 + $0xd8] sm:$0xff]
      %v1915 = vld [vmem:[%s8 + $0xe0] sm:$0xff]
      %v1916 = vld [vmem:[%s8 + $0xe8] sm:$0xff]
      %v1917 = vld [vmem:[%s8 + $0xf0] sm:$0xff]
      %v1918 = vld [vmem:[%s8 + $0xf8] sm:$0xff]
      %v1919 = vld [vmem:[%s8 + $0x100] sm:$0xff]
      %v1920 = vld [vmem:[%s8 + $0x108] sm:$0xff]
      %v1921 = vld [vmem:[%s8 + $0x110] sm:$0xff]
      %v1922 = vld [vmem:[%s8 + $0x118] sm:$0xff]
      %v1923 = vld [vmem:[%s8 + $0x120] sm:$0xff]
      %v1924 = vld [vmem:[%s8 + $0x128] sm:$0xff]
      %v1925 = vld [vmem:[%s8 + $0x130] sm:$0xff]
      %v1926 = vld [vmem:[%s8 + $0x138] sm:$0xff]
      %v1927 = vld [vmem:[%s8 + $0x140] sm:$0xff]
      %v1928 = vld [vmem:[%s8 + $0x148] sm:$0xff]
      %v1929 = vld [vmem:[%s8 + $0x150] sm:$0xff]
      %v1930 = vld [vmem:[%s8 + $0x158] sm:$0xff]
      %v1931 = vld [vmem:[%s8 + $0x160] sm:$0xff]
      %v1932 = vld [vmem:[%s8 + $0x168] sm:$0xff]
      %v1933 = vld [vmem:[%s8 + $0x170] sm:$0xff]
      %v1934 = vld [vmem:[%s8 + $0x178] sm:$0xff]
      %v1935 = vld [vmem:[%s8 + $0x180] sm:$0xff]
      %v1936 = vld [vmem:[%s8 + $0x188] sm:$0xff]
      %v1937 = vld [vmem:[%s8 + $0x190] sm:$0xff]
      %v1938 = vld [vmem:[%s8 + $0x198] sm:$0xff]
      %v1939 = vld [vmem:[%s8 + $0x1a0] sm:$0xff]
      %v1940 = vld [vmem:[%s8 + $0x1a8] sm:$0xff]
      %v1941 = vld [vmem:[%s8 + $0x1b0] sm:$0xff]
      %v1942 = vld [vmem:[%s8 + $0x1b8] sm:$0xff]
      %v1943 = vld [vmem:[%s8 + $0x1c0] sm:$0xff]
      %v1944 = vld [vmem:[%s8 + $0x1c8] sm:$0xff]
      %v1945 = vld [vmem:[%s8 + $0x1d0] sm:$0xff]
      %v1946 = vld [vmem:[%s8 + $0x1d8] sm:$0xff]
      %v1947 = vld [vmem:[%s8 + $0x1e0] sm:$0xff]
      %v1948 = vld [vmem:[%s8 + $0x1e8] sm:$0xff]
      %v1949 = vld [vmem:[%s8 + $0x1f0] sm:$0xff]
      %v1950 = vld [vmem:[%s8 + $0x1f8] sm:$0xff]
      %v1951 = vld [vmem:[%s8 + $0x200] sm:$0xff]
      %v1952 = vld [vmem:[%s8 + $0x208] sm:$0xff]
      %v1953 = vld [vmem:[%s8 + $0x210] sm:$0xff]
      %v1954 = vld [vmem:[%s8 + $0x218] sm:$0xff]
      %v1955 = vld [vmem:[%s8 + $0x220] sm:$0xff]
      %v1956 = vld [vmem:[%s8 + $0x228] sm:$0xff]
      %v1957 = vld [vmem:[%s8 + $0x230] sm:$0xff]
      %v1958 = vld [vmem:[%s8 + $0x238] sm:$0xff]
      %v1959 = vld [vmem:[%s8 + $0x240] sm:$0xff]
      %v1960 = vld [vmem:[%s8 + $0x248] sm:$0xff]
      %v1961 = vld [vmem:[%s8 + $0x250] sm:$0xff]
      %v1962 = vld [vmem:[%s8 + $0x258] sm:$0xff]
      %v1963 = vld [vmem:[%s8 + $0x260] sm:$0xff]
      %v1964 = vld [vmem:[%s8 + $0x268] sm:$0xff]
      %v1965 = vld [vmem:[%s8 + $0x270] sm:$0xff]
      %v1966 = vld [vmem:[%s8 + $0x278] sm:$0xff]
      %v1967 = vld [vmem:[%s8 + $0x280] sm:$0xff]
      %v1968 = vld [vmem:[%s8 + $0x288] sm:$0xff]
      %v1969 = vld [vmem:[%s8 + $0x290] sm:$0xff]
      %v1970 = vld [vmem:[%s8 + $0x298] sm:$0xff]
      %v1971 = vld [vmem:[%s8 + $0x2a0] sm:$0xff]
      %v1972 = vld [vmem:[%s8 + $0x2a8] sm:$0xff]
      %v1973 = vld [vmem:[%s8 + $0x2b0] sm:$0xff]
      %v1974 = vld [vmem:[%s8 + $0x2b8] sm:$0xff]
      %v1975 = vld [vmem:[%s8 + $0x2c0] sm:$0xff]
      %v1976 = vld [vmem:[%s8 + $0x2c8] sm:$0xff]
      %v1977 = vld [vmem:[%s8 + $0x2d0] sm:$0xff]
      %v1978 = vld [vmem:[%s8 + $0x2d8] sm:$0xff]
      %v1979 = vld [vmem:[%s8 + $0x2e0] sm:$0xff]
      %v1980 = vld [vmem:[%s8 + $0x2e8] sm:$0xff]
      %v1981 = vld [vmem:[%s8 + $0x2f0] sm:$0xff]
      %v1982 = vld [vmem:[%s8 + $0x2f8] sm:$0xff]
      %v1983 = vld [vmem:[%s9] sm:$0xf]
      %v1985 = vlaneseq
      %v1986 = vshrl.u32 %v1985, 7
      %v1987 = vsub.s32 0, %v1986
      %v1988 = vrot.slane %v1983, %v1987
      %v1989 = vlaneseq
      %v1990 = vshrl.u32 %v1989, 7
      %v1991 = vsub.s32 1, %v1990
      %v1992 = vrot.slane %v1983, %v1991
      %v1993 = vlaneseq
      %v1994 = vshrl.u32 %v1993, 7
      %v1995 = vsub.s32 2, %v1994
      %v1996 = vrot.slane %v1983, %v1995
      %v1997 = vlaneseq
      %v1998 = vshrl.u32 %v1997, 7
      %v1999 = vsub.s32 3, %v1998
      %v2000 = vrot.slane %v1983, %v1999
      %v2101 = vunpack.c.l.b16 %v1887
      %v2102 = vunpack.c.h.b16 %v1887
      %v2103 = vunpack.c.l.b16 %v1888
      %v2104 = vunpack.c.h.b16 %v1888
      %v2105 = vunpack.c.l.b16 %v1889
      %v2106 = vunpack.c.h.b16 %v1889
      %v2107 = vunpack.c.l.b16 %v1890
      %v2108 = vunpack.c.h.b16 %v1890
      %v2109 = vunpack.c.l.b16 %v1891
      %v2110 = vunpack.c.h.b16 %v1891
      %v2111 = vunpack.c.l.b16 %v1892
      %v2112 = vunpack.c.h.b16 %v1892
      %v2113 = vunpack.c.l.b16 %v1893
      %v2114 = vunpack.c.h.b16 %v1893
      %v2115 = vunpack.c.l.b16 %v1894
      %v2116 = vunpack.c.h.b16 %v1894
      %v2117 = vunpack.c.l.b16 %v1895
      %v2118 = vunpack.c.h.b16 %v1895
      %v2119 = vunpack.c.l.b16 %v1896
      %v2120 = vunpack.c.h.b16 %v1896
      %v2121 = vunpack.c.l.b16 %v1897
      %v2122 = vunpack.c.h.b16 %v1897
      %v2123 = vunpack.c.l.b16 %v1898
      %v2124 = vunpack.c.h.b16 %v1898
      %v2125 = vunpack.c.l.b16 %v1899
      %v2126 = vunpack.c.h.b16 %v1899
      %v2127 = vunpack.c.l.b16 %v1900
      %v2128 = vunpack.c.h.b16 %v1900
      %v2129 = vunpack.c.l.b16 %v1901
      %v2130 = vunpack.c.h.b16 %v1901
      %v2131 = vunpack.c.l.b16 %v1902
      %v2132 = vunpack.c.h.b16 %v1902
      %v2133 = vunpack.c.l.b16 %v1903
      %v2134 = vunpack.c.h.b16 %v1903
      %v2135 = vunpack.c.l.b16 %v1904
      %v2136 = vunpack.c.h.b16 %v1904
      %v2137 = vunpack.c.l.b16 %v1905
      %v2138 = vunpack.c.h.b16 %v1905
      %v2139 = vunpack.c.l.b16 %v1906
      %v2140 = vunpack.c.h.b16 %v1906
      %v2141 = vunpack.c.l.b16 %v1907
      %v2142 = vunpack.c.h.b16 %v1907
      %v2143 = vunpack.c.l.b16 %v1908
      %v2144 = vunpack.c.h.b16 %v1908
      %v2145 = vunpack.c.l.b16 %v1909
      %v2146 = vunpack.c.h.b16 %v1909
      %v2147 = vunpack.c.l.b16 %v1910
      %v2148 = vunpack.c.h.b16 %v1910
      %v2149 = vunpack.c.l.b16 %v1911
      %v2150 = vunpack.c.h.b16 %v1911
      %v2151 = vunpack.c.l.b16 %v1912
      %v2152 = vunpack.c.h.b16 %v1912
      %v2153 = vunpack.c.l.b16 %v1913
      %v2154 = vunpack.c.h.b16 %v1913
      %v2155 = vunpack.c.l.b16 %v1914
      %v2156 = vunpack.c.h.b16 %v1914
      %v2157 = vunpack.c.l.b16 %v1915
      %v2158 = vunpack.c.h.b16 %v1915
      %v2159 = vunpack.c.l.b16 %v1916
      %v2160 = vunpack.c.h.b16 %v1916
      %v2161 = vunpack.c.l.b16 %v1917
      %v2162 = vunpack.c.h.b16 %v1917
      %v2163 = vunpack.c.l.b16 %v1918
      %v2164 = vunpack.c.h.b16 %v1918
      %v2165 = vunpack.c.l.b16 %v1919
      %v2166 = vunpack.c.h.b16 %v1919
      %v2167 = vunpack.c.l.b16 %v1920
      %v2168 = vunpack.c.h.b16 %v1920
      %v2169 = vunpack.c.l.b16 %v1921
      %v2170 = vunpack.c.h.b16 %v1921
      %v2171 = vunpack.c.l.b16 %v1922
      %v2172 = vunpack.c.h.b16 %v1922
      %v2173 = vunpack.c.l.b16 %v1923
      %v2174 = vunpack.c.h.b16 %v1923
      %v2175 = vunpack.c.l.b16 %v1924
      %v2176 = vunpack.c.h.b16 %v1924
      %v2177 = vunpack.c.l.b16 %v1925
      %v2178 = vunpack.c.h.b16 %v1925
      %v2179 = vunpack.c.l.b16 %v1926
      %v2180 = vunpack.c.h.b16 %v1926
      %v2181 = vunpack.c.l.b16 %v1927
      %v2182 = vunpack.c.h.b16 %v1927
      %v2183 = vunpack.c.l.b16 %v1928
      %v2184 = vunpack.c.h.b16 %v1928
      %v2185 = vunpack.c.l.b16 %v1929
      %v2186 = vunpack.c.h.b16 %v1929
      %v2187 = vunpack.c.l.b16 %v1930
      %v2188 = vunpack.c.h.b16 %v1930
      %v2189 = vunpack.c.l.b16 %v1931
      %v2190 = vunpack.c.h.b16 %v1931
      %v2191 = vunpack.c.l.b16 %v1932
      %v2192 = vunpack.c.h.b16 %v1932
      %v2193 = vunpack.c.l.b16 %v1933
      %v2194 = vunpack.c.h.b16 %v1933
      %v2195 = vunpack.c.l.b16 %v1934
      %v2196 = vunpack.c.h.b16 %v1934
      %v2197 = vunpack.c.l.b16 %v1935
      %v2198 = vunpack.c.h.b16 %v1935
      %v2199 = vunpack.c.l.b16 %v1936
      %v2200 = vunpack.c.h.b16 %v1936
      %v2201 = vunpack.c.l.b16 %v1937
      %v2202 = vunpack.c.h.b16 %v1937
      %v2203 = vunpack.c.l.b16 %v1938
      %v2204 = vunpack.c.h.b16 %v1938
      %v2205 = vunpack.c.l.b16 %v1939
      %v2206 = vunpack.c.h.b16 %v1939
      %v2207 = vunpack.c.l.b16 %v1940
      %v2208 = vunpack.c.h.b16 %v1940
      %v2209 = vunpack.c.l.b16 %v1941
      %v2210 = vunpack.c.h.b16 %v1941
      %v2211 = vunpack.c.l.b16 %v1942
      %v2212 = vunpack.c.h.b16 %v1942
      %v2213 = vunpack.c.l.b16 %v1943
      %v2214 = vunpack.c.h.b16 %v1943
      %v2215 = vunpack.c.l.b16 %v1944
      %v2216 = vunpack.c.h.b16 %v1944
      %v2217 = vunpack.c.l.b16 %v1945
      %v2218 = vunpack.c.h.b16 %v1945
      %v2219 = vunpack.c.l.b16 %v1946
      %v2220 = vunpack.c.h.b16 %v1946
      %v2221 = vunpack.c.l.b16 %v1947
      %v2222 = vunpack.c.h.b16 %v1947
      %v2223 = vunpack.c.l.b16 %v1948
      %v2224 = vunpack.c.h.b16 %v1948
      %v2225 = vunpack.c.l.b16 %v1949
      %v2226 = vunpack.c.h.b16 %v1949
      %v2227 = vunpack.c.l.b16 %v1950
      %v2228 = vunpack.c.h.b16 %v1950
      %v2229 = vunpack.c.l.b16 %v1951
      %v2230 = vunpack.c.h.b16 %v1951
      %v2231 = vunpack.c.l.b16 %v1952
      %v2232 = vunpack.c.h.b16 %v1952
      %v2233 = vunpack.c.l.b16 %v1953
      %v2234 = vunpack.c.h.b16 %v1953
      %v2235 = vunpack.c.l.b16 %v1954
      %v2236 = vunpack.c.h.b16 %v1954
      %v2237 = vunpack.c.l.b16 %v1955
      %v2238 = vunpack.c.h.b16 %v1955
      %v2239 = vunpack.c.l.b16 %v1956
      %v2240 = vunpack.c.h.b16 %v1956
      %v2241 = vunpack.c.l.b16 %v1957
      %v2242 = vunpack.c.h.b16 %v1957
      %v2243 = vunpack.c.l.b16 %v1958
      %v2244 = vunpack.c.h.b16 %v1958
      %v2245 = vunpack.c.l.b16 %v1959
      %v2246 = vunpack.c.h.b16 %v1959
      %v2247 = vunpack.c.l.b16 %v1960
      %v2248 = vunpack.c.h.b16 %v1960
      %v2249 = vunpack.c.l.b16 %v1961
      %v2250 = vunpack.c.h.b16 %v1961
      %v2251 = vunpack.c.l.b16 %v1962
      %v2252 = vunpack.c.h.b16 %v1962
      %v2253 = vunpack.c.l.b16 %v1963
      %v2254 = vunpack.c.h.b16 %v1963
      %v2255 = vunpack.c.l.b16 %v1964
      %v2256 = vunpack.c.h.b16 %v1964
      %v2257 = vunpack.c.l.b16 %v1965
      %v2258 = vunpack.c.h.b16 %v1965
      %v2259 = vunpack.c.l.b16 %v1966
      %v2260 = vunpack.c.h.b16 %v1966
      %v2261 = vunpack.c.l.b16 %v1967
      %v2262 = vunpack.c.h.b16 %v1967
      %v2263 = vunpack.c.l.b16 %v1968
      %v2264 = vunpack.c.h.b16 %v1968
      %v2265 = vunpack.c.l.b16 %v1969
      %v2266 = vunpack.c.h.b16 %v1969
      %v2267 = vunpack.c.l.b16 %v1970
      %v2268 = vunpack.c.h.b16 %v1970
      %v2269 = vunpack.c.l.b16 %v1971
      %v2270 = vunpack.c.h.b16 %v1971
      %v2271 = vunpack.c.l.b16 %v1972
      %v2272 = vunpack.c.h.b16 %v1972
      %v2273 = vunpack.c.l.b16 %v1973
      %v2274 = vunpack.c.h.b16 %v1973
      %v2275 = vunpack.c.l.b16 %v1974
      %v2276 = vunpack.c.h.b16 %v1974
      %v2277 = vunpack.c.l.b16 %v1975
      %v2278 = vunpack.c.h.b16 %v1975
      %v2279 = vunpack.c.l.b16 %v1976
      %v2280 = vunpack.c.h.b16 %v1976
      %v2281 = vunpack.c.l.b16 %v1977
      %v2282 = vunpack.c.h.b16 %v1977
      %v2283 = vunpack.c.l.b16 %v1978
      %v2284 = vunpack.c.h.b16 %v1978
      %v2285 = vunpack.c.l.b16 %v1979
      %v2286 = vunpack.c.h.b16 %v1979
      %v2287 = vunpack.c.l.b16 %v1980
      %v2288 = vunpack.c.h.b16 %v1980
      %v2289 = vunpack.c.l.b16 %v1981
      %v2290 = vunpack.c.h.b16 %v1981
      %v2291 = vunpack.c.l.b16 %v1982
      %v2292 = vunpack.c.h.b16 %v1982
      %v2293 = vpack.c.b16 %v2105, %v2101
      %v2294 = vpack.c.b16 %v2106, %v2102
      %v2295 = vpack.c.b16 %v2107, %v2103
      %v2296 = vpack.c.b16 %v2108, %v2104
      %v2297 = vpack.c.b16 %v2113, %v2109
      %v2298 = vpack.c.b16 %v2114, %v2110
      %v2299 = vpack.c.b16 %v2115, %v2111
      %v2300 = vpack.c.b16 %v2116, %v2112
      %v2301 = vpack.c.b16 %v2121, %v2117
      %v2302 = vpack.c.b16 %v2122, %v2118
      %v2303 = vpack.c.b16 %v2123, %v2119
      %v2304 = vpack.c.b16 %v2124, %v2120
      %v2305 = vpack.c.b16 %v2129, %v2125
      %v2306 = vpack.c.b16 %v2130, %v2126
      %v2307 = vpack.c.b16 %v2131, %v2127
      %v2308 = vpack.c.b16 %v2132, %v2128
      %v2309 = vpack.c.b16 %v2137, %v2133
      %v2310 = vpack.c.b16 %v2138, %v2134
      %v2311 = vpack.c.b16 %v2139, %v2135
      %v2312 = vpack.c.b16 %v2140, %v2136
      %v2313 = vpack.c.b16 %v2145, %v2141
      %v2314 = vpack.c.b16 %v2146, %v2142
      %v2315 = vpack.c.b16 %v2147, %v2143
      %v2316 = vpack.c.b16 %v2148, %v2144
      %v2317 = vpack.c.b16 %v2153, %v2149
      %v2318 = vpack.c.b16 %v2154, %v2150
      %v2319 = vpack.c.b16 %v2155, %v2151
      %v2320 = vpack.c.b16 %v2156, %v2152
      %v2321 = vpack.c.b16 %v2161, %v2157
      %v2322 = vpack.c.b16 %v2162, %v2158
      %v2323 = vpack.c.b16 %v2163, %v2159
      %v2324 = vpack.c.b16 %v2164, %v2160
      %v2325 = vpack.c.b16 %v2169, %v2165
      %v2326 = vpack.c.b16 %v2170, %v2166
      %v2327 = vpack.c.b16 %v2171, %v2167
      %v2328 = vpack.c.b16 %v2172, %v2168
      %v2329 = vpack.c.b16 %v2177, %v2173
      %v2330 = vpack.c.b16 %v2178, %v2174
      %v2331 = vpack.c.b16 %v2179, %v2175
      %v2332 = vpack.c.b16 %v2180, %v2176
      %v2333 = vpack.c.b16 %v2185, %v2181
      %v2334 = vpack.c.b16 %v2186, %v2182
      %v2335 = vpack.c.b16 %v2187, %v2183
      %v2336 = vpack.c.b16 %v2188, %v2184
      %v2337 = vpack.c.b16 %v2193, %v2189
      %v2338 = vpack.c.b16 %v2194, %v2190
      %v2339 = vpack.c.b16 %v2195, %v2191
      %v2340 = vpack.c.b16 %v2196, %v2192
      %v2341 = vpack.c.b16 %v2201, %v2197
      %v2342 = vpack.c.b16 %v2202, %v2198
      %v2343 = vpack.c.b16 %v2203, %v2199
      %v2344 = vpack.c.b16 %v2204, %v2200
      %v2345 = vpack.c.b16 %v2209, %v2205
      %v2346 = vpack.c.b16 %v2210, %v2206
      %v2347 = vpack.c.b16 %v2211, %v2207
      %v2348 = vpack.c.b16 %v2212, %v2208
      %v2349 = vpack.c.b16 %v2217, %v2213
      %v2350 = vpack.c.b16 %v2218, %v2214
      %v2351 = vpack.c.b16 %v2219, %v2215
      %v2352 = vpack.c.b16 %v2220, %v2216
      %v2353 = vpack.c.b16 %v2225, %v2221
      %v2354 = vpack.c.b16 %v2226, %v2222
      %v2355 = vpack.c.b16 %v2227, %v2223
      %v2356 = vpack.c.b16 %v2228, %v2224
      %v2357 = vpack.c.b16 %v2233, %v2229
      %v2358 = vpack.c.b16 %v2234, %v2230
      %v2359 = vpack.c.b16 %v2235, %v2231
      %v2360 = vpack.c.b16 %v2236, %v2232
      %v2361 = vpack.c.b16 %v2241, %v2237
      %v2362 = vpack.c.b16 %v2242, %v2238
      %v2363 = vpack.c.b16 %v2243, %v2239
      %v2364 = vpack.c.b16 %v2244, %v2240
      %v2365 = vpack.c.b16 %v2249, %v2245
      %v2366 = vpack.c.b16 %v2250, %v2246
      %v2367 = vpack.c.b16 %v2251, %v2247
      %v2368 = vpack.c.b16 %v2252, %v2248
      %v2369 = vpack.c.b16 %v2257, %v2253
      %v2370 = vpack.c.b16 %v2258, %v2254
      %v2371 = vpack.c.b16 %v2259, %v2255
      %v2372 = vpack.c.b16 %v2260, %v2256
      %v2373 = vpack.c.b16 %v2265, %v2261
      %v2374 = vpack.c.b16 %v2266, %v2262
      %v2375 = vpack.c.b16 %v2267, %v2263
      %v2376 = vpack.c.b16 %v2268, %v2264
      %v2377 = vpack.c.b16 %v2273, %v2269
      %v2378 = vpack.c.b16 %v2274, %v2270
      %v2379 = vpack.c.b16 %v2275, %v2271
      %v2380 = vpack.c.b16 %v2276, %v2272
      %v2381 = vpack.c.b16 %v2281, %v2277
      %v2382 = vpack.c.b16 %v2282, %v2278
      %v2383 = vpack.c.b16 %v2283, %v2279
      %v2384 = vpack.c.b16 %v2284, %v2280
      %v2385 = vpack.c.b16 %v2289, %v2285
      %v2386 = vpack.c.b16 %v2290, %v2286
      %v2387 = vpack.c.b16 %v2291, %v2287
      %v2388 = vpack.c.b16 %v2292, %v2288
      %2485 = vmatprep.subr.bf16.mxu0 %v2294
      %2486 = vmatpush1.bf16.msra.mxu0 %v2293
      %2487 = vmatprep.subr.bf16.mxu0 %v2298
      %2488 = vmatpush1.bf16.msra.mxu0 %v2297
      %2489 = vmatprep.subr.bf16.mxu0 %v2302
      %2490 = vmatpush1.bf16.msra.mxu0 %v2301
      %2491 = vmatprep.subr.bf16.mxu0 %v2306
      %2492 = vmatpush1.bf16.msra.mxu0 %v2305
      %2493 = vmatprep.subr.bf16.mxu0 %v2310
      %2494 = vmatpush1.bf16.msra.mxu0 %v2309
      %2495 = vmatprep.subr.bf16.mxu0 %v2314
      %2496 = vmatpush1.bf16.msra.mxu0 %v2313
      %2497 = vmatprep.subr.bf16.mxu0 %v2318
      %2498 = vmatpush1.bf16.msra.mxu0 %v2317
      %2499 = vmatprep.subr.bf16.mxu0 %v2322
      %2500 = vmatpush1.bf16.msra.mxu0 %v2321
      %2501 = vmatprep.subr.bf16.mxu0 %v2326
      %2502 = vmatpush1.bf16.msra.mxu0 %v2325
      %2503 = vmatprep.subr.bf16.mxu0 %v2330
      %2504 = vmatpush1.bf16.msra.mxu0 %v2329
      %2505 = vmatprep.subr.bf16.mxu0 %v2334
      %2506 = vmatpush1.bf16.msra.mxu0 %v2333
      %2507 = vmatprep.subr.bf16.mxu0 %v2338
      %2508 = vmatpush1.bf16.msra.mxu0 %v2337
      %2509 = vmatprep.subr.bf16.mxu0 %v2342
      %2510 = vmatpush1.bf16.msra.mxu0 %v2341
      %2511 = vmatprep.subr.bf16.mxu0 %v2346
      %2512 = vmatpush1.bf16.msra.mxu0 %v2345
      %2513 = vmatprep.subr.bf16.mxu0 %v2350
      %2514 = vmatpush1.bf16.msra.mxu0 %v2349
      %2515 = vmatprep.subr.bf16.mxu0 %v2354
      %2516 = vmatpush1.bf16.msra.mxu0 %v2353
      %2517 = vmatprep.mubr.bf16.mxu0 %v519
      %2518 = vmatmul.mubr.bf16.gmra.mrb[0].mxu0 %v520
      %v2519 = vpop.f32.mrb[0].mxu0
      %v2520 = vadd.f32 %v1988, %v2519
      %v2521 = vpop.f32.mrb[0].mxu0
      %v2522 = vadd.f32 %v1992, %v2521
      %v2523 = vpop.f32.mrb[0].mxu0
      %v2524 = vpop.f32.mrb[0].mxu0
      %2525 = vdwg.mxu0
      %2526 = vmatprep.subr.bf16.mxu0 %v2358
      %2527 = vmatpush1.bf16.msra.mxu0 %v2357
      %2528 = vmatprep.subr.bf16.mxu0 %v2362
      %2529 = vmatpush1.bf16.msra.mxu0 %v2361
      %2530 = vmatprep.subr.bf16.mxu0 %v2366
      %2531 = vmatpush1.bf16.msra.mxu0 %v2365
      %2532 = vmatprep.subr.bf16.mxu0 %v2370
      %2533 = vmatpush1.bf16.msra.mxu0 %v2369
      %2534 = vmatprep.subr.bf16.mxu0 %v2374
      %2535 = vmatpush1.bf16.msra.mxu0 %v2373
      %2536 = vmatprep.subr.bf16.mxu0 %v2378
      %2537 = vmatpush1.bf16.msra.mxu0 %v2377
      %2538 = vmatprep.subr.bf16.mxu0 %v2382
      %2539 = vmatpush1.bf16.msra.mxu0 %v2381
      %2540 = vmatprep.subr.bf16.mxu0 %v2386
      %2541 = vmatpush1.bf16.msra.mxu0 %v2385
      %2542 = vmatprep.subr.bf16.mxu0 0
      %2543 = vmatpush1.bf16.msra.mxu0 0
      %2544 = vmatprep.subr.bf16.mxu0 0
      %2545 = vmatpush1.bf16.msra.mxu0 0
      %2546 = vmatprep.subr.bf16.mxu0 0
      %2547 = vmatpush1.bf16.msra.mxu0 0
      %2548 = vmatprep.subr.bf16.mxu0 0
      %2549 = vmatpush1.bf16.msra.mxu0 0
      %2550 = vmatprep.subr.bf16.mxu0 0
      %2551 = vmatpush1.bf16.msra.mxu0 0
      %2552 = vmatprep.subr.bf16.mxu0 0
      %2553 = vmatpush1.bf16.msra.mxu0 0
      %2554 = vmatprep.subr.bf16.mxu0 0
      %2555 = vmatpush1.bf16.msra.mxu0 0
      %2556 = vmatprep.subr.bf16.mxu0 0
      %2557 = vmatpush1.bf16.msra.mxu0 0
      %2558 = vmatprep.mubr.bf16.mxu0 0
      %2559 = vmatmul.mubr.bf16.gmra.mrb[0].mxu0 %v1885
      %v2560 = vpop.f32.mrb[0].mxu0
      %v2561 = vadd.f32 %v2520, %v2560
      %v2562 = vpop.f32.mrb[0].mxu0
      %v2563 = vadd.f32 %v2522, %v2562
      %v2564 = vpop.f32.mrb[0].mxu0
      %v2565 = vpop.f32.mrb[0].mxu0
      %2566 = vdwg.mxu0
      %2567 = vmatprep.subr.bf16.mxu0 %v2296
      %2568 = vmatpush1.bf16.msra.mxu0 %v2295
      %2569 = vmatprep.subr.bf16.mxu0 %v2300
      %2570 = vmatpush1.bf16.msra.mxu0 %v2299
      %2571 = vmatprep.subr.bf16.mxu0 %v2304
      %2572 = vmatpush1.bf16.msra.mxu0 %v2303
      %2573 = vmatprep.subr.bf16.mxu0 %v2308
      %2574 = vmatpush1.bf16.msra.mxu0 %v2307
      %2575 = vmatprep.subr.bf16.mxu0 %v2312
      %2576 = vmatpush1.bf16.msra.mxu0 %v2311
      %2577 = vmatprep.subr.bf16.mxu0 %v2316
      %2578 = vmatpush1.bf16.msra.mxu0 %v2315
      %2579 = vmatprep.subr.bf16.mxu0 %v2320
      %2580 = vmatpush1.bf16.msra.mxu0 %v2319
      %2581 = vmatprep.subr.bf16.mxu0 %v2324
      %2582 = vmatpush1.bf16.msra.mxu0 %v2323
      %2583 = vmatprep.subr.bf16.mxu0 %v2328
      %2584 = vmatpush1.bf16.msra.mxu0 %v2327
      %2585 = vmatprep.subr.bf16.mxu0 %v2332
      %2586 = vmatpush1.bf16.msra.mxu0 %v2331
      %2587 = vmatprep.subr.bf16.mxu0 %v2336
      %2588 = vmatpush1.bf16.msra.mxu0 %v2335
      %2589 = vmatprep.subr.bf16.mxu0 %v2340
      %2590 = vmatpush1.bf16.msra.mxu0 %v2339
      %2591 = vmatprep.subr.bf16.mxu0 %v2344
      %2592 = vmatpush1.bf16.msra.mxu0 %v2343
      %2593 = vmatprep.subr.bf16.mxu0 %v2348
      %2594 = vmatpush1.bf16.msra.mxu0 %v2347
      %2595 = vmatprep.subr.bf16.mxu0 %v2352
      %2596 = vmatpush1.bf16.msra.mxu0 %v2351
      %2597 = vmatprep.subr.bf16.mxu0 %v2356
      %2598 = vmatpush1.bf16.msra.mxu0 %v2355
      %2599 = vmatprep.mubr.bf16.mxu0 %v519
      %2600 = vmatmul.mubr.bf16.gmra.mrb[0].mxu0 %v520
      %v2601 = vpop.f32.mrb[0].mxu0
      %v2602 = vadd.f32 %v1996, %v2601
      %v2603 = vpop.f32.mrb[0].mxu0
      %v2604 = vadd.f32 %v2000, %v2603
      %v2605 = vpop.f32.mrb[0].mxu0
      %v2606 = vpop.f32.mrb[0].mxu0
      %2607 = vdwg.mxu0
      %2608 = vmatprep.subr.bf16.mxu0 %v2360
      %2609 = vmatpush1.bf16.msra.mxu0 %v2359
      %2610 = vmatprep.subr.bf16.mxu0 %v2364
      %2611 = vmatpush1.bf16.msra.mxu0 %v2363
      %2612 = vmatprep.subr.bf16.mxu0 %v2368
      %2613 = vmatpush1.bf16.msra.mxu0 %v2367
      %2614 = vmatprep.subr.bf16.mxu0 %v2372
      %2615 = vmatpush1.bf16.msra.mxu0 %v2371
      %2616 = vmatprep.subr.bf16.mxu0 %v2376
      %2617 = vmatpush1.bf16.msra.mxu0 %v2375
      %2618 = vmatprep.subr.bf16.mxu0 %v2380
      %2619 = vmatpush1.bf16.msra.mxu0 %v2379
      %2620 = vmatprep.subr.bf16.mxu0 %v2384
      %2621 = vmatpush1.bf16.msra.mxu0 %v2383
      %2622 = vmatprep.subr.bf16.mxu0 %v2388
      %2623 = vmatpush1.bf16.msra.mxu0 %v2387
      %2624 = vmatprep.subr.bf16.mxu0 0
      %2625 = vmatpush1.bf16.msra.mxu0 0
      %2626 = vmatprep.subr.bf16.mxu0 0
      %2627 = vmatpush1.bf16.msra.mxu0 0
      %2628 = vmatprep.subr.bf16.mxu0 0
      %2629 = vmatpush1.bf16.msra.mxu0 0
      %2630 = vmatprep.subr.bf16.mxu0 0
      %2631 = vmatpush1.bf16.msra.mxu0 0
      %2632 = vmatprep.subr.bf16.mxu0 0
      %2633 = vmatpush1.bf16.msra.mxu0 0
      %2634 = vmatprep.subr.bf16.mxu0 0
      %2635 = vmatpush1.bf16.msra.mxu0 0
      %2636 = vmatprep.subr.bf16.mxu0 0
      %2637 = vmatpush1.bf16.msra.mxu0 0
      %2638 = vmatprep.subr.bf16.mxu0 0
      %2639 = vmatpush1.bf16.msra.mxu0 0
      %2640 = vmatprep.mubr.bf16.mxu0 0
      %2641 = vmatmul.mubr.bf16.gmra.mrb[0].mxu0 %v1885
      %v2642 = vpop.f32.mrb[0].mxu0
      %v2643 = vadd.f32 %v2602, %v2642
      %v2644 = vpop.f32.mrb[0].mxu0
      %v2645 = vadd.f32 %v2604, %v2644
      %v2646 = vpop.f32.mrb[0].mxu0
      %v2647 = vpop.f32.mrb[0].mxu0
      %2648 = vdwg.mxu0
      %v2649 = vxor.u32 %v2561, 2147483648
      %v2650 = vmul.f32 %v2649, 1.442695
      %v2651 = vpow.pop %v2650
      %v2652 = vadd.f32 %v2651, 1.0
      %v2653 = vrcp.pop %v2652
      %v2654 = vmul.f32 1.0, %v2653
      %v2655 = vxor.u32 %v2563, 2147483648
      %v2656 = vmul.f32 %v2655, 1.442695
      %v2657 = vpow.pop %v2656
      %v2658 = vadd.f32 %v2657, 1.0
      %v2659 = vrcp.pop %v2658
      %v2660 = vmul.f32 1.0, %v2659
      %v2661 = vxor.u32 %v2643, 2147483648
      %v2662 = vmul.f32 %v2661, 1.442695
      %v2663 = vpow.pop %v2662
      %v2664 = vadd.f32 %v2663, 1.0
      %v2665 = vrcp.pop %v2664
      %v2666 = vmul.f32 1.0, %v2665
      %v2667 = vtanh.pop %v2645
      %v2668 = vmul.f32 %v2660, %v518
      %v2669 = vmul.f32 %v2654, %v2667
      %v2670 = vadd.f32 %v2668, %v2669
      %v2671 = vtanh.pop %v2670
      %v2672 = vmul.f32 %v2666, %v2671
      %2673 = vst [vmem:[#allocation2] sm:$0xff] %v2672
      %2674 = vst [vmem:[#allocation3] sm:$0xff] %v2670
      %v2675 = vpack.c.bf16 %v2672, %v2672
      %v2676 = vld [vmem:[%s10] sm:$0xf]
      %v2677 = vld [vmem:[%s10 + $0x4] sm:$0xf]
      %v2678 = vld [vmem:[%s10 + $0x8] sm:$0xf]
      %v2679 = vld [vmem:[%s10 + $0xc] sm:$0xf]
      %v2680 = vld [vmem:[%s10 + $0x10] sm:$0xf]
      %v2681 = vld [vmem:[%s10 + $0x14] sm:$0xf]
      %v2682 = vld [vmem:[%s10 + $0x18] sm:$0xf]
      %v2683 = vld [vmem:[%s10 + $0x1c] sm:$0xf]
      %v2684 = vld [vmem:[%s10 + $0x20] sm:$0xf]
      %v2685 = vld [vmem:[%s10 + $0x24] sm:$0xf]
      %v2686 = vld [vmem:[%s10 + $0x28] sm:$0xf]
      %v2687 = vld [vmem:[%s10 + $0x2c] sm:$0xf]
      %v2688 = vld [vmem:[%s10 + $0x30] sm:$0xf]
      %v2689 = vld [vmem:[%s10 + $0x34] sm:$0xf]
      %v2690 = vld [vmem:[%s10 + $0x38] sm:$0xf]
      %v2691 = vld [vmem:[%s10 + $0x3c] sm:$0xf]
      %v2692 = vld [vmem:[%s11] sm:$0x1]
      %v2694 = vlaneseq
      %v2695 = vshrl.u32 %v2694, 7
      %v2696 = vsub.s32 0, %v2695
      %v2697 = vrot.slane %v2692, %v2696
      %v2715 = vunpack.c.l.b16 %v2676
      %v2716 = vunpack.c.l.b16 %v2677
      %v2717 = vunpack.c.l.b16 %v2678
      %v2718 = vunpack.c.l.b16 %v2679
      %v2719 = vunpack.c.l.b16 %v2680
      %v2720 = vunpack.c.l.b16 %v2681
      %v2721 = vunpack.c.l.b16 %v2682
      %v2722 = vunpack.c.l.b16 %v2683
      %v2723 = vunpack.c.l.b16 %v2684
      %v2724 = vunpack.c.l.b16 %v2685
      %v2725 = vunpack.c.l.b16 %v2686
      %v2726 = vunpack.c.l.b16 %v2687
      %v2727 = vunpack.c.l.b16 %v2688
      %v2728 = vunpack.c.l.b16 %v2689
      %v2729 = vunpack.c.l.b16 %v2690
      %v2730 = vunpack.c.l.b16 %v2691
      %v2731 = vpack.c.b16 %v2716, %v2715
      %v2732 = vpack.c.b16 %v2718, %v2717
      %v2733 = vpack.c.b16 %v2720, %v2719
      %v2734 = vpack.c.b16 %v2722, %v2721
      %v2735 = vpack.c.b16 %v2724, %v2723
      %v2736 = vpack.c.b16 %v2726, %v2725
      %v2737 = vpack.c.b16 %v2728, %v2727
      %v2738 = vpack.c.b16 %v2730, %v2729
      %2747 = vmatprep.subr.bf16.mxu0 0
      %2748 = vmatpush1.bf16.msra.mxu0 %v2731
      %2749 = vmatprep.subr.bf16.mxu0 0
      %2750 = vmatpush1.bf16.msra.mxu0 %v2732
      %2751 = vmatprep.subr.bf16.mxu0 0
      %2752 = vmatpush1.bf16.msra.mxu0 %v2733
      %2753 = vmatprep.subr.bf16.mxu0 0
      %2754 = vmatpush1.bf16.msra.mxu0 %v2734
      %2755 = vmatprep.subr.bf16.mxu0 0
      %2756 = vmatpush1.bf16.msra.mxu0 %v2735
      %2757 = vmatprep.subr.bf16.mxu0 0
      %2758 = vmatpush1.bf16.msra.mxu0 %v2736
      %2759 = vmatprep.subr.bf16.mxu0 0
      %2760 = vmatpush1.bf16.msra.mxu0 %v2737
      %2761 = vmatprep.subr.bf16.mxu0 0
      %2762 = vmatpush1.bf16.msra.mxu0 %v2738
      %2763 = vmatprep.subr.bf16.mxu0 0
      %2764 = vmatpush1.bf16.msra.mxu0 0
      %2765 = vmatprep.subr.bf16.mxu0 0
      %2766 = vmatpush1.bf16.msra.mxu0 0
      %2767 = vmatprep.subr.bf16.mxu0 0
      %2768 = vmatpush1.bf16.msra.mxu0 0
      %2769 = vmatprep.subr.bf16.mxu0 0
      %2770 = vmatpush1.bf16.msra.mxu0 0
      %2771 = vmatprep.subr.bf16.mxu0 0
      %2772 = vmatpush1.bf16.msra.mxu0 0
      %2773 = vmatprep.subr.bf16.mxu0 0
      %2774 = vmatpush1.bf16.msra.mxu0 0
      %2775 = vmatprep.subr.bf16.mxu0 0
      %2776 = vmatpush1.bf16.msra.mxu0 0
      %2777 = vmatprep.subr.bf16.mxu0 0
      %2778 = vmatpush1.bf16.msra.mxu0 0
      %2779 = vmatprep.mubr.bf16.mxu0 0
      %2780 = vmatmul.mubr.bf16.gmra.mrb[0].mxu0 %v2675
      %v2781 = vpop.f32.mrb[0].mxu0
      %v2782 = vadd.f32 %v2697, %v2781
      %v2783 = vpop.f32.mrb[0].mxu0
      %v2784 = vpop.f32.mrb[0].mxu0
      %v2785 = vpop.f32.mrb[0].mxu0
      %2786 = vdwg.mxu0
      %2787 = vmax.xlane.f32.xlu0 %v2782
      %v2788 = vpop.xlane.xlu0 %2787
      %v2789 = vsub.f32 %v2782, %v2788
      %v2790 = vmul.f32 %v2789, 1.442695
      %v2791 = vpow.pop %v2790
      %2792 = vadd.xlane.f32.xlu0 %v2791
      %v2793 = vpop.xlane.xlu0 %2792
      %v2794 = vlog2.pop %v2793
      %v2795 = vmul.f32 %v2794, 0.6931472
      %v2796 = vadd.f32 %v2795, %v2788
      %v2797 = vsub.f32 %v2782, %v2796
      %2798 = vst [vmem:[%s508] sm:$0xff] %v2797
      %p2799 = scmp.lt.s32.totalorder %s30, 6
      %s2800 = scalar_select %p2799, %s30, 6
      %p2801 = scmp.lt.s32.totalorder %s29, 0
      %s2802 = scalar_select %p2801, %s29, 0
      %s2803 = sadd.s32 %s2802, %s2800
      %s2804 = smul.addr %s2803, 8
      %s2805 = scalar_lea.vmem %s12, %s2804
      // Predicated region
      $region73: #{_forward_impl.1} parent=67 // pred_check
        %p2806 = pneg %p331
      $region74: #{_forward_impl.1} parent=67 // pred_check_branch
        %2808 = sbr.rel (%p2806) target = $region76
      $region75: #{_forward_impl.1} parent=67 // pred_region
        _
      $region76: #{_forward_impl.1} parent=67 // pred_fallthru
        _
    $region68: #{_forward_impl.1} parent=5 // pred_fallthru
      _
    %p2809 = scmp.le.s32.totalorder 2, %s20
    // Predicated region
    $region77: #{_forward_impl.1} parent=5 // pred_check
      %p2810 = pneg %p2809
    $region78: #{_forward_impl.1} parent=5 // pred_check_branch
      %2812 = sbr.rel (%p2810) target = $region80
    $region79: #{_forward_impl.1} parent=5 // pred_region
      %s2813 = ssub.s32 %s20, 2
      // Predicated region
      $region81: #{_forward_impl.1} parent=79 // pred_check
        %p2814 = pneg %p337
      $region82: #{_forward_impl.1} parent=79 // pred_check_branch
        %2816 = sbr.rel (%p2814) target = $region84
      $region83: #{_forward_impl.1} parent=79 // pred_region
        %p2817 = scmp.lt.s32.totalorder %s32, 6
        %s2818 = scalar_select %p2817, %s32, 6
        %p2819 = scmp.lt.s32.totalorder %s31, 0
        %s2820 = scalar_select %p2819, %s31, 0
        %s2821 = sadd.s32 %s2820, %s2818
        %s2822 = smul.addr %s2821, 8
        %s2823 = scalar_lea.vmem %s12, %s2822
      $region84: #{_forward_impl.1} parent=79 // pred_fallthru
        _
    $region80: #{_forward_impl.1} parent=5 // pred_fallthru
      _
  $region6: #{_forward_impl.1} parent=0 // loop_footer
    %s24 = sadd.s32 1, %s20
  $region7: #{_forward_impl.1} parent=0 // loop_footer_branch
    %19 = sbr.rel target = $region3
  $region8: #{_forward_impl.1} parent=0 // loop_exit
    _

</llo_original>
